<compile_context>
chip_gen: v7x
topology: tpu7x:2x2x1
jax: 0.10.0
libtpu: 0.0.40
codegen_flags: <defaults>
</compile_context>

<pallas_src>
import functools

import jax
import jax.numpy as jnp
from jax import lax
from jax.experimental import pallas as pl
from jax.experimental.pallas import tpu as pltpu

ECAL_FEATS = 25 * 25 * 25          # 15625
HCAL_FEATS = 5 * 5 * 60            # 1500
ECAL_PAD = 123 * 128               # 15744 (smallest 128-multiple >= ECAL_FEATS)
HCAL_PAD = 12 * 128                # 1536  (smallest 128-multiple >= HCAL_FEATS)
NUM_CLASSES = 2
OUT_PAD = 128                      # logits padded to one lane width


def _round_up(x, m):
    return (x + m - 1) // m * m


def _dot_nt(x, w_t):
    """x:(B,K) contracted with w_t:(N,K) on the lane dim -> (B,N), f32 acc."""
    return lax.dot_general(x, w_t, (((1,), (1,)), ((), ())),
                           preferred_element_type=jnp.float32)


def _classifier_kernel(*refs, n_hidden_layers, has_hcal):
    if has_hcal:
        (x_ecal_ref, x_hcal_ref, w_ecal_ref, w_hcal_ref,
         b_in_ref, w_h_ref, b_h_ref, w_out_ref, b_out_ref, out_ref) = refs
    else:
        (x_ecal_ref, w_ecal_ref,
         b_in_ref, w_h_ref, b_h_ref, w_out_ref, b_out_ref, out_ref) = refs

    # ---- input layer: bf16 operands, transposed weight, f32 accumulation ----
    h = _dot_nt(x_ecal_ref[...], w_ecal_ref[...])
    if has_hcal:
        h = h + _dot_nt(x_hcal_ref[...], w_hcal_ref[...])
    h = h + b_in_ref[...]                 # self.input(x): no activation here,
                                          # matching the PyTorch forward.

    # ---- hidden layers (tiny (Bt,H)x(H,H) dots, f32) ----
    for _ in range(n_hidden_layers - 1):
        h = jnp.dot(h, w_h_ref[...], preferred_element_type=jnp.float32) + b_h_ref[...]
        h = jnp.maximum(h, 0.0)           # F.relu
        # TODO(synk): nn.Dropout is identity at inference (eval mode); not applied.

    # ---- output layer + softmax over the 2 real classes ----
    logits = (jnp.dot(h, w_out_ref[...], preferred_element_type=jnp.float32)
              + b_out_ref[...])
    col = lax.broadcasted_iota(jnp.int32, logits.shape, 1)
    logits = jnp.where(col < NUM_CLASSES, logits, -jnp.inf)   # mask lane padding
    m = jnp.max(logits, axis=1, keepdims=True)
    e = jnp.exp(logits - m)
    denom = jnp.sum(e, axis=1, keepdims=True)
    out_ref[...] = (e * pl.reciprocal(denom, approx=True)).astype(out_ref.dtype)


def prepare_classifier_params(params, *, has_hcal):
    """One-time parameter prep, hoisted out of the forward hot path."""
    hidden = params["w_in"].shape[1]
    w_in = jnp.asarray(params["w_in"], jnp.float32)
    # Transposed (hidden, K_pad) layout: the minor dim is the 128-multiple
    # contraction dim, so the tiled HBM layout adds no lane padding (~4x fewer
    # bytes than the (K, 32) orientation on the dominant DMA).
    w_ecal_t = jnp.pad(w_in[:ECAL_FEATS].T,
                       ((0, 0), (0, ECAL_PAD - ECAL_FEATS))).astype(jnp.bfloat16)
    prepped = {
        "w_ecal_t": w_ecal_t,
        "b_in": jnp.asarray(params["b_in"], jnp.float32).reshape(1, hidden),
        "w_h": jnp.asarray(params["w_h"], jnp.float32),
        "b_h": jnp.asarray(params["b_h"], jnp.float32).reshape(1, hidden),
        "w_out": jnp.zeros((hidden, OUT_PAD), jnp.float32).at[:, :NUM_CLASSES].set(
            jnp.asarray(params["w_out"], jnp.float32)),
        "b_out": jnp.zeros((1, OUT_PAD), jnp.float32).at[0, :NUM_CLASSES].set(
            jnp.asarray(params["b_out"], jnp.float32)),
    }
    if has_hcal:
        prepped["w_hcal_t"] = jnp.pad(
            w_in[ECAL_FEATS:ECAL_FEATS + HCAL_FEATS].T,
            ((0, 0), (0, HCAL_PAD - HCAL_FEATS))).astype(jnp.bfloat16)
    return prepped


@functools.partial(jax.jit, static_argnames=("has_hcal", "n_hidden_layers"))
def classifier_net_forward(x1, x2, prepped, *, has_hcal, n_hidden_layers):
    B = x1.shape[0]
    hidden = prepped["w_h"].shape[0]

    # Batch tiling: "parallel" grid axis over batch tiles.  Weights map to block
    # (0,0) on every tile (stay resident); v7x shards tiles across its two TCs.
    # Bt=64 keeps the double-buffered activation blocks well inside v5e's
    # 16 MiB default scoped VMEM even at large B.
    Bt = min(64, _round_up(B, 8))
    Bpad = _round_up(B, Bt)
    n_btiles = Bpad // Bt

    # TODO(synk): at large B, fold this pad + bf16 cast into the kernel (read f32
    # directly) to halve wrapper-side activation traffic; irrelevant at small B.
    x1p = jnp.pad(x1.reshape(B, ECAL_FEATS),
                  ((0, Bpad - B), (0, ECAL_PAD - ECAL_FEATS))).astype(jnp.bfloat16)

    operands = [x1p]
    in_specs = [pl.BlockSpec((Bt, ECAL_PAD), lambda i: (i, 0))]
    if has_hcal:
        x2p = jnp.pad(x2.reshape(B, HCAL_FEATS),
                      ((0, Bpad - B), (0, HCAL_PAD - HCAL_FEATS))).astype(jnp.bfloat16)
        operands.append(x2p)
        in_specs.append(pl.BlockSpec((Bt, HCAL_PAD), lambda i: (i, 0)))

    operands.append(prepped["w_ecal_t"])
    in_specs.append(pl.BlockSpec((hidden, ECAL_PAD), lambda i: (0, 0)))
    if has_hcal:
        operands.append(prepped["w_hcal_t"])
        in_specs.append(pl.BlockSpec((hidden, HCAL_PAD), lambda i: (0, 0)))

    operands += [prepped["b_in"], prepped["w_h"], prepped["b_h"],
                 prepped["w_out"], prepped["b_out"]]
    in_specs += [
        pl.BlockSpec((1, hidden), lambda i: (0, 0)),
        pl.BlockSpec((hidden, hidden), lambda i: (0, 0)),
        pl.BlockSpec((1, hidden), lambda i: (0, 0)),
        pl.BlockSpec((hidden, OUT_PAD), lambda i: (0, 0)),
        pl.BlockSpec((1, OUT_PAD), lambda i: (0, 0)),
    ]

    kernel = functools.partial(_classifier_kernel,
                               n_hidden_layers=n_hidden_layers,
                               has_hcal=has_hcal)

    out = pl.pallas_call(
        kernel,
        out_shape=jax.ShapeDtypeStruct((Bpad, OUT_PAD), jnp.float32),
        grid=(n_btiles,),
        in_specs=in_specs,
        out_specs=pl.BlockSpec((Bt, OUT_PAD), lambda i: (i, 0)),
        compiler_params=pltpu.CompilerParams(dimension_semantics=("parallel",)),
    )(*operands)

    return out[:B, :NUM_CLASSES]


if __name__ == "__main__":
    key = jax.random.PRNGKey(0)
    B, HIDDEN, N_HIDDEN_LAYERS = 2, 32, 3
    HAS_HCAL = True

    k_x1, k_x2, k_params = jax.random.split(key, 3)
    x1 = jax.random.normal(k_x1, (B, 25, 25, 25), jnp.float32)
    x2 = jax.random.normal(k_x2, (B, 5, 5, 60), jnp.float32)

    f_in = ECAL_FEATS + HCAL_FEATS if HAS_HCAL else ECAL_FEATS
    kw = jax.random.split(k_params, 6)
    params = {
        "w_in":  jax.random.normal(kw[0], (f_in, HIDDEN), jnp.float32) / jnp.sqrt(f_in),
        "b_in":  jax.random.normal(kw[1], (HIDDEN,), jnp.float32) * 0.01,
        "w_h":   jax.random.normal(kw[2], (HIDDEN, HIDDEN), jnp.float32) / jnp.sqrt(HIDDEN),
        "b_h":   jax.random.normal(kw[3], (HIDDEN,), jnp.float32) * 0.01,
        "w_out": jax.random.normal(kw[4], (HIDDEN, NUM_CLASSES), jnp.float32) / jnp.sqrt(HIDDEN),
        "b_out": jax.random.normal(kw[5], (NUM_CLASSES,), jnp.float32) * 0.01,
    }

    prepped = prepare_classifier_params(params, has_hcal=HAS_HCAL)
    out = classifier_net_forward(x1, x2, prepped,
                                 has_hcal=HAS_HCAL,
                                 n_hidden_layers=N_HIDDEN_LAYERS)
    out = jax.block_until_ready(out)

    # Plain-JAX references (same semantics as the torch forward, eval-mode dropout).
    hp = jax.lax.Precision.HIGHEST
    if HAS_HCAL:
        x_cat = jnp.concatenate([x1.reshape(B, -1), x2.reshape(B, -1)], axis=1)
    else:
        x_cat = x1.reshape(B, -1)

    def ref_forward(x_in, w_in):
        h = jnp.dot(x_in, w_in, precision=hp) + params["b_in"]
        for _ in range(N_HIDDEN_LAYERS - 1):
            h = jax.nn.relu(jnp.dot(h, params["w_h"], precision=hp) + params["b_h"])
        return jax.nn.softmax(jnp.dot(h, params["w_out"], precision=hp) + params["b_out"], axis=1)

    ref_f32 = ref_forward(x_cat, params["w_in"])
    # Apples-to-apples reference: same bf16 rounding of the streamed operands.
    ref_bf16 = ref_forward(x_cat.astype(jnp.bfloat16).astype(jnp.float32),
                           params["w_in"].astype(jnp.bfloat16).astype(jnp.float32))

    assert out.shape == (B, NUM_CLASSES), out.shape
    assert jnp.allclose(out, ref_bf16, rtol=2e-3, atol=2e-3), (out, ref_bf16)
    assert jnp.allclose(out, ref_f32, rtol=1.5e-2, atol=1.5e-2), (out, ref_f32)
    print("KERNEL_OK")
</pallas_src>

<mosaic_0001>
module attributes {stable_mosaic.version = 11 : i64} {
  func.func @_classifier_kernel(%arg0: i32, %arg1: memref<8x15744xbf16, #tpu.memory_space<vmem>>, %arg2: memref<8x1536xbf16, #tpu.memory_space<vmem>>, %arg3: memref<32x15744xbf16, #tpu.memory_space<vmem>>, %arg4: memref<32x1536xbf16, #tpu.memory_space<vmem>>, %arg5: memref<1x32xf32, #tpu.memory_space<vmem>>, %arg6: memref<32x32xf32, #tpu.memory_space<vmem>>, %arg7: memref<1x32xf32, #tpu.memory_space<vmem>>, %arg8: memref<32x128xf32, #tpu.memory_space<vmem>>, %arg9: memref<1x128xf32, #tpu.memory_space<vmem>>, %arg10: memref<8x128xf32, #tpu.memory_space<vmem>>) attributes {dimension_semantics = [#tpu.dimension_semantics<parallel>], iteration_bounds = array<i64: 1>, scalar_prefetch = 0 : i64, scratch_operands = 0 : i64, tpu.core_type = #tpu.core_type<tc>, window_params = [{transform_indices = @transform_0, window_bounds = array<i64: 8, 15744>}, {transform_indices = @transform_1, window_bounds = array<i64: 8, 1536>}, {pipeline_mode = #tpu.pipeline_mode<synchronous>, transform_indices = @transform_2, window_bounds = array<i64: 32, 15744>}, {pipeline_mode = #tpu.pipeline_mode<synchronous>, transform_indices = @transform_3, window_bounds = array<i64: 32, 1536>}, {pipeline_mode = #tpu.pipeline_mode<synchronous>, transform_indices = @transform_4, window_bounds = array<i64: 1, 32>}, {pipeline_mode = #tpu.pipeline_mode<synchronous>, transform_indices = @transform_5, window_bounds = array<i64: 32, 32>}, {pipeline_mode = #tpu.pipeline_mode<synchronous>, transform_indices = @transform_6, window_bounds = array<i64: 1, 32>}, {pipeline_mode = #tpu.pipeline_mode<synchronous>, transform_indices = @transform_7, window_bounds = array<i64: 32, 128>}, {pipeline_mode = #tpu.pipeline_mode<synchronous>, transform_indices = @transform_8, window_bounds = array<i64: 1, 128>}, {transform_indices = @transform_9, window_bounds = array<i64: 8, 128>}]} {
    %c0 = arith.constant 0 : index
    %c0_0 = arith.constant 0 : index
    %0 = vector.load %arg1[%c0, %c0_0] : memref<8x15744xbf16, #tpu.memory_space<vmem>>, vector<8x15744xbf16>
    %c0_1 = arith.constant 0 : index
    %c0_2 = arith.constant 0 : index
    %1 = vector.load %arg3[%c0_1, %c0_2] : memref<32x15744xbf16, #tpu.memory_space<vmem>>, vector<32x15744xbf16>
    %cst = arith.constant dense<0.000000e+00> : vector<8x32xf32>
    %2 = tpu.matmul %0, %1, %cst {dimension_numbers = #tpu.dot_dimension_numbers<[1], [1], [0], [0], [0, 0, 1, 0], [], []>} : vector<8x15744xbf16>, vector<32x15744xbf16>, vector<8x32xf32> -> vector<8x32xf32>
    %c0_3 = arith.constant 0 : index
    %c0_4 = arith.constant 0 : index
    %3 = vector.load %arg2[%c0_3, %c0_4] : memref<8x1536xbf16, #tpu.memory_space<vmem>>, vector<8x1536xbf16>
    %c0_5 = arith.constant 0 : index
    %c0_6 = arith.constant 0 : index
    %4 = vector.load %arg4[%c0_5, %c0_6] : memref<32x1536xbf16, #tpu.memory_space<vmem>>, vector<32x1536xbf16>
    %cst_7 = arith.constant dense<0.000000e+00> : vector<8x32xf32>
    %5 = tpu.matmul %3, %4, %cst_7 {dimension_numbers = #tpu.dot_dimension_numbers<[1], [1], [0], [0], [0, 0, 1, 0], [], []>} : vector<8x1536xbf16>, vector<32x1536xbf16>, vector<8x32xf32> -> vector<8x32xf32>
    %6 = arith.addf %2, %5 : vector<8x32xf32>
    %c0_8 = arith.constant 0 : index
    %c0_9 = arith.constant 0 : index
    %7 = vector.load %arg5[%c0_8, %c0_9] : memref<1x32xf32, #tpu.memory_space<vmem>>, vector<1x32xf32>
    %8 = vector.broadcast %7 : vector<1x32xf32> to vector<8x32xf32>
    %9 = arith.addf %6, %8 : vector<8x32xf32>
    %c0_10 = arith.constant 0 : index
    %c0_11 = arith.constant 0 : index
    %10 = vector.load %arg6[%c0_10, %c0_11] : memref<32x32xf32, #tpu.memory_space<vmem>>, vector<32x32xf32>
    %cst_12 = arith.constant dense<0.000000e+00> : vector<8x32xf32>
    %11 = tpu.matmul %9, %10, %cst_12 {dimension_numbers = #tpu.dot_dimension_numbers<[1], [0], [0], [1], [0, 0, 1, 1], [], []>} : vector<8x32xf32>, vector<32x32xf32>, vector<8x32xf32> -> vector<8x32xf32>
    %c0_13 = arith.constant 0 : index
    %c0_14 = arith.constant 0 : index
    %12 = vector.load %arg7[%c0_13, %c0_14] : memref<1x32xf32, #tpu.memory_space<vmem>>, vector<1x32xf32>
    %13 = vector.broadcast %12 : vector<1x32xf32> to vector<8x32xf32>
    %14 = arith.addf %11, %13 : vector<8x32xf32>
    %cst_15 = arith.constant 0.000000e+00 : f32
    %15 = vector.broadcast %cst_15 : f32 to vector<8x32xf32>
    %16 = arith.maximumf %14, %15 : vector<8x32xf32>
    %c0_16 = arith.constant 0 : index
    %c0_17 = arith.constant 0 : index
    %17 = vector.load %arg6[%c0_16, %c0_17] : memref<32x32xf32, #tpu.memory_space<vmem>>, vector<32x32xf32>
    %cst_18 = arith.constant dense<0.000000e+00> : vector<8x32xf32>
    %18 = tpu.matmul %16, %17, %cst_18 {dimension_numbers = #tpu.dot_dimension_numbers<[1], [0], [0], [1], [0, 0, 1, 1], [], []>} : vector<8x32xf32>, vector<32x32xf32>, vector<8x32xf32> -> vector<8x32xf32>
    %c0_19 = arith.constant 0 : index
    %c0_20 = arith.constant 0 : index
    %19 = vector.load %arg7[%c0_19, %c0_20] : memref<1x32xf32, #tpu.memory_space<vmem>>, vector<1x32xf32>
    %20 = vector.broadcast %19 : vector<1x32xf32> to vector<8x32xf32>
    %21 = arith.addf %18, %20 : vector<8x32xf32>
    %cst_21 = arith.constant 0.000000e+00 : f32
    %22 = vector.broadcast %cst_21 : f32 to vector<8x32xf32>
    %23 = arith.maximumf %21, %22 : vector<8x32xf32>
    %c0_22 = arith.constant 0 : index
    %c0_23 = arith.constant 0 : index
    %24 = vector.load %arg8[%c0_22, %c0_23] : memref<32x128xf32, #tpu.memory_space<vmem>>, vector<32x128xf32>
    %cst_24 = arith.constant dense<0.000000e+00> : vector<8x128xf32>
    %25 = tpu.matmul %23, %24, %cst_24 {dimension_numbers = #tpu.dot_dimension_numbers<[1], [0], [0], [1], [0, 0, 1, 1], [], []>} : vector<8x32xf32>, vector<32x128xf32>, vector<8x128xf32> -> vector<8x128xf32>
    %c0_25 = arith.constant 0 : index
    %c0_26 = arith.constant 0 : index
    %26 = vector.load %arg9[%c0_25, %c0_26] : memref<1x128xf32, #tpu.memory_space<vmem>>, vector<1x128xf32>
    %27 = vector.broadcast %26 : vector<1x128xf32> to vector<8x128xf32>
    %28 = arith.addf %25, %27 : vector<8x128xf32>
    %29 = tpu.iota {dimensions = array<i32: 1>} : vector<8x128xi32>
    %c2_i32 = arith.constant 2 : i32
    %30 = vector.broadcast %c2_i32 : i32 to vector<8x128xi32>
    %31 = arith.cmpi slt, %29, %30 : vector<8x128xi32>
    %cst_27 = arith.constant 0xFF800000 : f32
    %32 = vector.broadcast %cst_27 : f32 to vector<8x128xf32>
    %33 = arith.select %31, %28, %32 : vector<8x128xi1>, vector<8x128xf32>
    %cst_28 = arith.constant dense<0xFF800000> : vector<8xf32>
    %34 = vector.multi_reduction <maximumf>, %33, %cst_28 [1] : vector<8x128xf32> to vector<8xf32>
    %35 = vector.shape_cast %34 : vector<8xf32> to vector<8x1xf32>
    %36 = vector.broadcast %35 : vector<8x1xf32> to vector<8x128xf32>
    %37 = arith.subf %33, %36 : vector<8x128xf32>
    %38 = math.exp %37 : vector<8x128xf32>
    %cst_29 = arith.constant dense<0.000000e+00> : vector<8xf32>
    %39 = vector.multi_reduction <add>, %38, %cst_29 [1] : vector<8x128xf32> to vector<8xf32>
    %40 = vector.shape_cast %39 : vector<8xf32> to vector<8x1xf32>
    %41 = tpu.reciprocal %40 {approx = true} : vector<8x1xf32> -> vector<8x1xf32>
    %42 = vector.broadcast %41 : vector<8x1xf32> to vector<8x128xf32>
    %43 = arith.mulf %38, %42 : vector<8x128xf32>
    %c0_30 = arith.constant 0 : index
    %c0_31 = arith.constant 0 : index
    %44 = vector.load %arg10[%c0_30, %c0_31] : memref<8x128xf32, #tpu.memory_space<vmem>>, vector<8x128xf32>
    tpu.vector_store %arg10[%c0_30, %c0_31], %43 {strides = array<i32>} : memref<8x128xf32, #tpu.memory_space<vmem>>, vector<8x128xf32>,
    return
  }
  func.func @transform_0(%arg0: i32) -> (i32, i32) {
    %c0_i32 = arith.constant 0 : i32
    %c0_i32_0 = arith.constant 0 : i32
    return %arg0, %c0_i32 : i32, i32
  }
  func.func @transform_1(%arg0: i32) -> (i32, i32) {
    %c0_i32 = arith.constant 0 : i32
    %c0_i32_0 = arith.constant 0 : i32
    return %arg0, %c0_i32 : i32, i32
  }
  func.func @transform_2(%arg0: i32) -> (i32, i32) {
    %c0_i32 = arith.constant 0 : i32
    %c0_i32_0 = arith.constant 0 : i32
    %c0_i32_1 = arith.constant 0 : i32
    return %c0_i32, %c0_i32_0 : i32, i32
  }
  func.func @transform_3(%arg0: i32) -> (i32, i32) {
    %c0_i32 = arith.constant 0 : i32
    %c0_i32_0 = arith.constant 0 : i32
    %c0_i32_1 = arith.constant 0 : i32
    return %c0_i32, %c0_i32_0 : i32, i32
  }
  func.func @transform_4(%arg0: i32) -> (i32, i32) {
    %c0_i32 = arith.constant 0 : i32
    %c0_i32_0 = arith.constant 0 : i32
    %c0_i32_1 = arith.constant 0 : i32
    return %c0_i32, %c0_i32_0 : i32, i32
  }
  func.func @transform_5(%arg0: i32) -> (i32, i32) {
    %c0_i32 = arith.constant 0 : i32
    %c0_i32_0 = arith.constant 0 : i32
    %c0_i32_1 = arith.constant 0 : i32
    return %c0_i32, %c0_i32_0 : i32, i32
  }
  func.func @transform_6(%arg0: i32) -> (i32, i32) {
    %c0_i32 = arith.constant 0 : i32
    %c0_i32_0 = arith.constant 0 : i32
    %c0_i32_1 = arith.constant 0 : i32
    return %c0_i32, %c0_i32_0 : i32, i32
  }
  func.func @transform_7(%arg0: i32) -> (i32, i32) {
    %c0_i32 = arith.constant 0 : i32
    %c0_i32_0 = arith.constant 0 : i32
    %c0_i32_1 = arith.constant 0 : i32
    return %c0_i32, %c0_i32_0 : i32, i32
  }
  func.func @transform_8(%arg0: i32) -> (i32, i32) {
    %c0_i32 = arith.constant 0 : i32
    %c0_i32_0 = arith.constant 0 : i32
    %c0_i32_1 = arith.constant 0 : i32
    return %c0_i32, %c0_i32_0 : i32, i32
  }
  func.func @transform_9(%arg0: i32) -> (i32, i32) {
    %c0_i32 = arith.constant 0 : i32
    %c0_i32_0 = arith.constant 0 : i32
    return %arg0, %c0_i32 : i32, i32
  }
}

</mosaic_0001>

<llo_original>
// kernel: classifier_net_forward.1
$region0: #{classifier_net_forward.1}
  #allocation0 [shape = 'u32[]', space=smem, size = 0x4, offset = 0x4, fixed_abs, tag = 'smem constant byte address 0x4 - core index']
  #allocation1 [shape = 'u32[144,128]{1,0:T(1,128)}', space=vmem, size = 0x12000, scoped, tag = 'internal scratch']
  %s0 = inlined_call_operand.vmem [shape: bf16[8,15744], index: 0, kind: input, shape index: {}]
  %s1 = inlined_call_operand.vmem [shape: bf16[8,1536], index: 1, kind: input, shape index: {}]
  %s2 = inlined_call_operand.vmem [shape: bf16[32,15744], index: 2, kind: input, shape index: {}]
  %s3 = inlined_call_operand.vmem [shape: bf16[32,1536], index: 3, kind: input, shape index: {}]
  %s4 = inlined_call_operand.vmem [shape: f32[1,32], index: 4, kind: input, shape index: {}]
  %s5 = inlined_call_operand.vmem [shape: f32[32,32], index: 5, kind: input, shape index: {}]
  %s6 = inlined_call_operand.vmem [shape: f32[1,32], index: 6, kind: input, shape index: {}]
  %s7 = inlined_call_operand.vmem [shape: f32[32,128], index: 7, kind: input, shape index: {}]
  %s8 = inlined_call_operand.vmem [shape: f32[1,128], index: 8, kind: input, shape index: {}]
  %s9 = inlined_call_operand.vmem [shape: f32[8,128], index: 9, kind: output, shape index: {}]
  %s10 = sld [smem:[#allocation0]]
  $region46: #{classifier_net_forward.1} parent=0
    _
  %s12 = ssub.s32 1, %s10
  %s13 = scalar_select 0, %s12, %s10
  // Predicated region
  $region2: #{classifier_net_forward.1} parent=0 // pred_check
    _
  $region3: #{classifier_net_forward.1} parent=0 // pred_check_branch
    %15 = sbr.rel (0) target = $region5
  $region4: #{classifier_net_forward.1} parent=0 // pred_region
    _
  $region5: #{classifier_net_forward.1} parent=0 // pred_fallthru
    _
  // Predicated region
  $region6: #{classifier_net_forward.1} parent=0 // pred_check
    _
  $region7: #{classifier_net_forward.1} parent=0 // pred_check_branch
    %17 = sbr.rel (0) target = $region9
  $region8: #{classifier_net_forward.1} parent=0 // pred_region
    _
  $region9: #{classifier_net_forward.1} parent=0 // pred_fallthru
    _
  // Predicated region
  $region10: #{classifier_net_forward.1} parent=0 // pred_check
    _
  $region11: #{classifier_net_forward.1} parent=0 // pred_check_branch
    %19 = sbr.rel (0) target = $region13
  $region12: #{classifier_net_forward.1} parent=0 // pred_region
    _
  $region13: #{classifier_net_forward.1} parent=0 // pred_fallthru
    _
  // Predicated region
  $region14: #{classifier_net_forward.1} parent=0 // pred_check
    _
  $region15: #{classifier_net_forward.1} parent=0 // pred_check_branch
    %21 = sbr.rel (0) target = $region17
  $region16: #{classifier_net_forward.1} parent=0 // pred_region
    _
  $region17: #{classifier_net_forward.1} parent=0 // pred_fallthru
    _
  // Predicated region
  $region18: #{classifier_net_forward.1} parent=0 // pred_check
    _
  $region19: #{classifier_net_forward.1} parent=0 // pred_check_branch
    %23 = sbr.rel (0) target = $region21
  $region20: #{classifier_net_forward.1} parent=0 // pred_region
    _
  $region21: #{classifier_net_forward.1} parent=0 // pred_fallthru
    _
  // Predicated region
  $region22: #{classifier_net_forward.1} parent=0 // pred_check
    _
  $region23: #{classifier_net_forward.1} parent=0 // pred_check_branch
    %25 = sbr.rel (0) target = $region25
  $region24: #{classifier_net_forward.1} parent=0 // pred_region
    _
  $region25: #{classifier_net_forward.1} parent=0 // pred_fallthru
    _
  // Predicated region
  $region26: #{classifier_net_forward.1} parent=0 // pred_check
    _
  $region27: #{classifier_net_forward.1} parent=0 // pred_check_branch
    %27 = sbr.rel (0) target = $region29
  $region28: #{classifier_net_forward.1} parent=0 // pred_region
    _
  $region29: #{classifier_net_forward.1} parent=0 // pred_fallthru
    _
  // Predicated region
  $region30: #{classifier_net_forward.1} parent=0 // pred_check
    _
  $region31: #{classifier_net_forward.1} parent=0 // pred_check_branch
    %29 = sbr.rel (0) target = $region33
  $region32: #{classifier_net_forward.1} parent=0 // pred_region
    _
  $region33: #{classifier_net_forward.1} parent=0 // pred_fallthru
    _
  // Predicated region
  $region34: #{classifier_net_forward.1} parent=0 // pred_check
    _
  $region35: #{classifier_net_forward.1} parent=0 // pred_check_branch
    %31 = sbr.rel (0) target = $region37
  $region36: #{classifier_net_forward.1} parent=0 // pred_region
    _
  $region37: #{classifier_net_forward.1} parent=0 // pred_fallthru
    _
  %v33 = vld [vmem:[%s0] sm:$0xff]
  %v34 = vld [vmem:[%s0 + $0x8] sm:$0xff]
  %v35 = vld [vmem:[%s0 + $0x10] sm:$0xff]
  %v36 = vld [vmem:[%s0 + $0x18] sm:$0xff]
  %v37 = vld [vmem:[%s0 + $0x20] sm:$0xff]
  %v38 = vld [vmem:[%s0 + $0x28] sm:$0xff]
  %v39 = vld [vmem:[%s0 + $0x30] sm:$0xff]
  %v40 = vld [vmem:[%s0 + $0x38] sm:$0xff]
  %v41 = vld [vmem:[%s0 + $0x40] sm:$0xff]
  %v42 = vld [vmem:[%s0 + $0x48] sm:$0xff]
  %v43 = vld [vmem:[%s0 + $0x50] sm:$0xff]
  %v44 = vld [vmem:[%s0 + $0x58] sm:$0xff]
  %v45 = vld [vmem:[%s0 + $0x60] sm:$0xff]
  %v46 = vld [vmem:[%s0 + $0x68] sm:$0xff]
  %v47 = vld [vmem:[%s0 + $0x70] sm:$0xff]
  %v48 = vld [vmem:[%s0 + $0x78] sm:$0xff]
  %v49 = vld [vmem:[%s0 + $0x80] sm:$0xff]
  %v50 = vld [vmem:[%s0 + $0x88] sm:$0xff]
  %v51 = vld [vmem:[%s0 + $0x90] sm:$0xff]
  %v52 = vld [vmem:[%s0 + $0x98] sm:$0xff]
  %v53 = vld [vmem:[%s0 + $0xa0] sm:$0xff]
  %v54 = vld [vmem:[%s0 + $0xa8] sm:$0xff]
  %v55 = vld [vmem:[%s0 + $0xb0] sm:$0xff]
  %v56 = vld [vmem:[%s0 + $0xb8] sm:$0xff]
  %v57 = vld [vmem:[%s0 + $0xc0] sm:$0xff]
  %v58 = vld [vmem:[%s0 + $0xc8] sm:$0xff]
  %v59 = vld [vmem:[%s0 + $0xd0] sm:$0xff]
  %v60 = vld [vmem:[%s0 + $0xd8] sm:$0xff]
  %v61 = vld [vmem:[%s0 + $0xe0] sm:$0xff]
  %v62 = vld [vmem:[%s0 + $0xe8] sm:$0xff]
  %v63 = vld [vmem:[%s0 + $0xf0] sm:$0xff]
  %v64 = vld [vmem:[%s0 + $0xf8] sm:$0xff]
  %v65 = vld [vmem:[%s0 + $0x100] sm:$0xff]
  %v66 = vld [vmem:[%s0 + $0x108] sm:$0xff]
  %v67 = vld [vmem:[%s0 + $0x110] sm:$0xff]
  %v68 = vld [vmem:[%s0 + $0x118] sm:$0xff]
  %v69 = vld [vmem:[%s0 + $0x120] sm:$0xff]
  %v70 = vld [vmem:[%s0 + $0x128] sm:$0xff]
  %v71 = vld [vmem:[%s0 + $0x130] sm:$0xff]
  %v72 = vld [vmem:[%s0 + $0x138] sm:$0xff]
  %v73 = vld [vmem:[%s0 + $0x140] sm:$0xff]
  %v74 = vld [vmem:[%s0 + $0x148] sm:$0xff]
  %v75 = vld [vmem:[%s0 + $0x150] sm:$0xff]
  %v76 = vld [vmem:[%s0 + $0x158] sm:$0xff]
  %v77 = vld [vmem:[%s0 + $0x160] sm:$0xff]
  %v78 = vld [vmem:[%s0 + $0x168] sm:$0xff]
  %v79 = vld [vmem:[%s0 + $0x170] sm:$0xff]
  %v80 = vld [vmem:[%s0 + $0x178] sm:$0xff]
  %v81 = vld [vmem:[%s0 + $0x180] sm:$0xff]
  %v82 = vld [vmem:[%s0 + $0x188] sm:$0xff]
  %v83 = vld [vmem:[%s0 + $0x190] sm:$0xff]
  %v84 = vld [vmem:[%s0 + $0x198] sm:$0xff]
  %v85 = vld [vmem:[%s0 + $0x1a0] sm:$0xff]
  %v86 = vld [vmem:[%s0 + $0x1a8] sm:$0xff]
  %v87 = vld [vmem:[%s0 + $0x1b0] sm:$0xff]
  %v88 = vld [vmem:[%s0 + $0x1b8] sm:$0xff]
  %v89 = vld [vmem:[%s0 + $0x1c0] sm:$0xff]
  %v90 = vld [vmem:[%s0 + $0x1c8] sm:$0xff]
  %v91 = vld [vmem:[%s0 + $0x1d0] sm:$0xff]
  %v92 = vld [vmem:[%s0 + $0x1d8] sm:$0xff]
  %v93 = vld [vmem:[%s0 + $0x1e0] sm:$0xff]
  %v94 = vld [vmem:[%s0 + $0x1e8] sm:$0xf]
  %v95 = vld [vmem:[%s2] sm:$0xff]
  %v96 = vld [vmem:[%s2 + $0x8] sm:$0xff]
  %v97 = vld [vmem:[%s2 + $0x10] sm:$0xff]
  %v98 = vld [vmem:[%s2 + $0x18] sm:$0xff]
  %v99 = vld [vmem:[%s2 + $0x20] sm:$0xff]
  %v100 = vld [vmem:[%s2 + $0x28] sm:$0xff]
  %v101 = vld [vmem:[%s2 + $0x30] sm:$0xff]
  %v102 = vld [vmem:[%s2 + $0x38] sm:$0xff]
  %v103 = vld [vmem:[%s2 + $0x40] sm:$0xff]
  %v104 = vld [vmem:[%s2 + $0x48] sm:$0xff]
  %v105 = vld [vmem:[%s2 + $0x50] sm:$0xff]
  %v106 = vld [vmem:[%s2 + $0x58] sm:$0xff]
  %v107 = vld [vmem:[%s2 + $0x60] sm:$0xff]
  %v108 = vld [vmem:[%s2 + $0x68] sm:$0xff]
  %v109 = vld [vmem:[%s2 + $0x70] sm:$0xff]
  %v110 = vld [vmem:[%s2 + $0x78] sm:$0xff]
  %v111 = vld [vmem:[%s2 + $0x80] sm:$0xff]
  %v112 = vld [vmem:[%s2 + $0x88] sm:$0xff]
  %v113 = vld [vmem:[%s2 + $0x90] sm:$0xff]
  %v114 = vld [vmem:[%s2 + $0x98] sm:$0xff]
  %v115 = vld [vmem:[%s2 + $0xa0] sm:$0xff]
  %v116 = vld [vmem:[%s2 + $0xa8] sm:$0xff]
  %v117 = vld [vmem:[%s2 + $0xb0] sm:$0xff]
  %v118 = vld [vmem:[%s2 + $0xb8] sm:$0xff]
  %v119 = vld [vmem:[%s2 + $0xc0] sm:$0xff]
  %v120 = vld [vmem:[%s2 + $0xc8] sm:$0xff]
  %v121 = vld [vmem:[%s2 + $0xd0] sm:$0xff]
  %v122 = vld [vmem:[%s2 + $0xd8] sm:$0xff]
  %v123 = vld [vmem:[%s2 + $0xe0] sm:$0xff]
  %v124 = vld [vmem:[%s2 + $0xe8] sm:$0xff]
  %v125 = vld [vmem:[%s2 + $0xf0] sm:$0xff]
  %v126 = vld [vmem:[%s2 + $0xf8] sm:$0xff]
  %v127 = vld [vmem:[%s2 + $0x100] sm:$0xff]
  %v128 = vld [vmem:[%s2 + $0x108] sm:$0xff]
  %v129 = vld [vmem:[%s2 + $0x110] sm:$0xff]
  %v130 = vld [vmem:[%s2 + $0x118] sm:$0xff]
  %v131 = vld [vmem:[%s2 + $0x120] sm:$0xff]
  %v132 = vld [vmem:[%s2 + $0x128] sm:$0xff]
  %v133 = vld [vmem:[%s2 + $0x130] sm:$0xff]
  %v134 = vld [vmem:[%s2 + $0x138] sm:$0xff]
  %v135 = vld [vmem:[%s2 + $0x140] sm:$0xff]
  %v136 = vld [vmem:[%s2 + $0x148] sm:$0xff]
  %v137 = vld [vmem:[%s2 + $0x150] sm:$0xff]
  %v138 = vld [vmem:[%s2 + $0x158] sm:$0xff]
  %v139 = vld [vmem:[%s2 + $0x160] sm:$0xff]
  %v140 = vld [vmem:[%s2 + $0x168] sm:$0xff]
  %v141 = vld [vmem:[%s2 + $0x170] sm:$0xff]
  %v142 = vld [vmem:[%s2 + $0x178] sm:$0xff]
  %v143 = vld [vmem:[%s2 + $0x180] sm:$0xff]
  %v144 = vld [vmem:[%s2 + $0x188] sm:$0xff]
  %v145 = vld [vmem:[%s2 + $0x190] sm:$0xff]
  %v146 = vld [vmem:[%s2 + $0x198] sm:$0xff]
  %v147 = vld [vmem:[%s2 + $0x1a0] sm:$0xff]
  %v148 = vld [vmem:[%s2 + $0x1a8] sm:$0xff]
  %v149 = vld [vmem:[%s2 + $0x1b0] sm:$0xff]
  %v150 = vld [vmem:[%s2 + $0x1b8] sm:$0xff]
  %v151 = vld [vmem:[%s2 + $0x1c0] sm:$0xff]
  %v152 = vld [vmem:[%s2 + $0x1c8] sm:$0xff]
  %v153 = vld [vmem:[%s2 + $0x1d0] sm:$0xff]
  %v154 = vld [vmem:[%s2 + $0x1d8] sm:$0xff]
  %v155 = vld [vmem:[%s2 + $0x1e0] sm:$0xff]
  %v156 = vld [vmem:[%s2 + $0x1e8] sm:$0xf]
  %v157 = vld [vmem:[%s2 + $0x1ec] sm:$0xff]
  %v158 = vld [vmem:[%s2 + $0x1f4] sm:$0xff]
  %v159 = vld [vmem:[%s2 + $0x1fc] sm:$0xff]
  %v160 = vld [vmem:[%s2 + $0x204] sm:$0xff]
  %v161 = vld [vmem:[%s2 + $0x20c] sm:$0xff]
  %v162 = vld [vmem:[%s2 + $0x214] sm:$0xff]
  %v163 = vld [vmem:[%s2 + $0x21c] sm:$0xff]
  %v164 = vld [vmem:[%s2 + $0x224] sm:$0xff]
  %v165 = vld [vmem:[%s2 + $0x22c] sm:$0xff]
  %v166 = vld [vmem:[%s2 + $0x234] sm:$0xff]
  %v167 = vld [vmem:[%s2 + $0x23c] sm:$0xff]
  %v168 = vld [vmem:[%s2 + $0x244] sm:$0xff]
  %v169 = vld [vmem:[%s2 + $0x24c] sm:$0xff]
  %v170 = vld [vmem:[%s2 + $0x254] sm:$0xff]
  %v171 = vld [vmem:[%s2 + $0x25c] sm:$0xff]
  %v172 = vld [vmem:[%s2 + $0x264] sm:$0xff]
  %v173 = vld [vmem:[%s2 + $0x26c] sm:$0xff]
  %v174 = vld [vmem:[%s2 + $0x274] sm:$0xff]
  %v175 = vld [vmem:[%s2 + $0x27c] sm:$0xff]
  %v176 = vld [vmem:[%s2 + $0x284] sm:$0xff]
  %v177 = vld [vmem:[%s2 + $0x28c] sm:$0xff]
  %v178 = vld [vmem:[%s2 + $0x294] sm:$0xff]
  %v179 = vld [vmem:[%s2 + $0x29c] sm:$0xff]
  %v180 = vld [vmem:[%s2 + $0x2a4] sm:$0xff]
  %v181 = vld [vmem:[%s2 + $0x2ac] sm:$0xff]
  %v182 = vld [vmem:[%s2 + $0x2b4] sm:$0xff]
  %v183 = vld [vmem:[%s2 + $0x2bc] sm:$0xff]
  %v184 = vld [vmem:[%s2 + $0x2c4] sm:$0xff]
  %v185 = vld [vmem:[%s2 + $0x2cc] sm:$0xff]
  %v186 = vld [vmem:[%s2 + $0x2d4] sm:$0xff]
  %v187 = vld [vmem:[%s2 + $0x2dc] sm:$0xff]
  %v188 = vld [vmem:[%s2 + $0x2e4] sm:$0xff]
  %v189 = vld [vmem:[%s2 + $0x2ec] sm:$0xff]
  %v190 = vld [vmem:[%s2 + $0x2f4] sm:$0xff]
  %v191 = vld [vmem:[%s2 + $0x2fc] sm:$0xff]
  %v192 = vld [vmem:[%s2 + $0x304] sm:$0xff]
  %v193 = vld [vmem:[%s2 + $0x30c] sm:$0xff]
  %v194 = vld [vmem:[%s2 + $0x314] sm:$0xff]
  %v195 = vld [vmem:[%s2 + $0x31c] sm:$0xff]
  %v196 = vld [vmem:[%s2 + $0x324] sm:$0xff]
  %v197 = vld [vmem:[%s2 + $0x32c] sm:$0xff]
  %v198 = vld [vmem:[%s2 + $0x334] sm:$0xff]
  %v199 = vld [vmem:[%s2 + $0x33c] sm:$0xff]
  %v200 = vld [vmem:[%s2 + $0x344] sm:$0xff]
  %v201 = vld [vmem:[%s2 + $0x34c] sm:$0xff]
  %v202 = vld [vmem:[%s2 + $0x354] sm:$0xff]
  %v203 = vld [vmem:[%s2 + $0x35c] sm:$0xff]
  %v204 = vld [vmem:[%s2 + $0x364] sm:$0xff]
  %v205 = vld [vmem:[%s2 + $0x36c] sm:$0xff]
  %v206 = vld [vmem:[%s2 + $0x374] sm:$0xff]
  %v207 = vld [vmem:[%s2 + $0x37c] sm:$0xff]
  %v208 = vld [vmem:[%s2 + $0x384] sm:$0xff]
  %v209 = vld [vmem:[%s2 + $0x38c] sm:$0xff]
  %v210 = vld [vmem:[%s2 + $0x394] sm:$0xff]
  %v211 = vld [vmem:[%s2 + $0x39c] sm:$0xff]
  %v212 = vld [vmem:[%s2 + $0x3a4] sm:$0xff]
  %v213 = vld [vmem:[%s2 + $0x3ac] sm:$0xff]
  %v214 = vld [vmem:[%s2 + $0x3b4] sm:$0xff]
  %v215 = vld [vmem:[%s2 + $0x3bc] sm:$0xff]
  %v216 = vld [vmem:[%s2 + $0x3c4] sm:$0xff]
  %v217 = vld [vmem:[%s2 + $0x3cc] sm:$0xff]
  %v218 = vld [vmem:[%s2 + $0x3d4] sm:$0xf]
  %v219 = vld [vmem:[%s2 + $0x3d8] sm:$0xff]
  %v220 = vld [vmem:[%s2 + $0x3e0] sm:$0xff]
  %v221 = vld [vmem:[%s2 + $0x3e8] sm:$0xff]
  %v222 = vld [vmem:[%s2 + $0x3f0] sm:$0xff]
  %v223 = vld [vmem:[%s2 + $0x3f8] sm:$0xff]
  %v224 = vld [vmem:[%s2 + $0x400] sm:$0xff]
  %v225 = vld [vmem:[%s2 + $0x408] sm:$0xff]
  %v226 = vld [vmem:[%s2 + $0x410] sm:$0xff]
  %v227 = vld [vmem:[%s2 + $0x418] sm:$0xff]
  %v228 = vld [vmem:[%s2 + $0x420] sm:$0xff]
  %v229 = vld [vmem:[%s2 + $0x428] sm:$0xff]
  %v230 = vld [vmem:[%s2 + $0x430] sm:$0xff]
  %v231 = vld [vmem:[%s2 + $0x438] sm:$0xff]
  %v232 = vld [vmem:[%s2 + $0x440] sm:$0xff]
  %v233 = vld [vmem:[%s2 + $0x448] sm:$0xff]
  %v234 = vld [vmem:[%s2 + $0x450] sm:$0xff]
  %v235 = vld [vmem:[%s2 + $0x458] sm:$0xff]
  %v236 = vld [vmem:[%s2 + $0x460] sm:$0xff]
  %v237 = vld [vmem:[%s2 + $0x468] sm:$0xff]
  %v238 = vld [vmem:[%s2 + $0x470] sm:$0xff]
  %v239 = vld [vmem:[%s2 + $0x478] sm:$0xff]
  %v240 = vld [vmem:[%s2 + $0x480] sm:$0xff]
  %v241 = vld [vmem:[%s2 + $0x488] sm:$0xff]
  %v242 = vld [vmem:[%s2 + $0x490] sm:$0xff]
  %v243 = vld [vmem:[%s2 + $0x498] sm:$0xff]
  %v244 = vld [vmem:[%s2 + $0x4a0] sm:$0xff]
  %v245 = vld [vmem:[%s2 + $0x4a8] sm:$0xff]
  %v246 = vld [vmem:[%s2 + $0x4b0] sm:$0xff]
  %v247 = vld [vmem:[%s2 + $0x4b8] sm:$0xff]
  %v248 = vld [vmem:[%s2 + $0x4c0] sm:$0xff]
  %v249 = vld [vmem:[%s2 + $0x4c8] sm:$0xff]
  %v250 = vld [vmem:[%s2 + $0x4d0] sm:$0xff]
  %v251 = vld [vmem:[%s2 + $0x4d8] sm:$0xff]
  %v252 = vld [vmem:[%s2 + $0x4e0] sm:$0xff]
  %v253 = vld [vmem:[%s2 + $0x4e8] sm:$0xff]
  %v254 = vld [vmem:[%s2 + $0x4f0] sm:$0xff]
  %v255 = vld [vmem:[%s2 + $0x4f8] sm:$0xff]
  %v256 = vld [vmem:[%s2 + $0x500] sm:$0xff]
  %v257 = vld [vmem:[%s2 + $0x508] sm:$0xff]
  %v258 = vld [vmem:[%s2 + $0x510] sm:$0xff]
  %v259 = vld [vmem:[%s2 + $0x518] sm:$0xff]
  %v260 = vld [vmem:[%s2 + $0x520] sm:$0xff]
  %v261 = vld [vmem:[%s2 + $0x528] sm:$0xff]
  %v262 = vld [vmem:[%s2 + $0x530] sm:$0xff]
  %v263 = vld [vmem:[%s2 + $0x538] sm:$0xff]
  %v264 = vld [vmem:[%s2 + $0x540] sm:$0xff]
  %v265 = vld [vmem:[%s2 + $0x548] sm:$0xff]
  %v266 = vld [vmem:[%s2 + $0x550] sm:$0xff]
  %v267 = vld [vmem:[%s2 + $0x558] sm:$0xff]
  %v268 = vld [vmem:[%s2 + $0x560] sm:$0xff]
  %v269 = vld [vmem:[%s2 + $0x568] sm:$0xff]
  %v270 = vld [vmem:[%s2 + $0x570] sm:$0xff]
  %v271 = vld [vmem:[%s2 + $0x578] sm:$0xff]
  %v272 = vld [vmem:[%s2 + $0x580] sm:$0xff]
  %v273 = vld [vmem:[%s2 + $0x588] sm:$0xff]
  %v274 = vld [vmem:[%s2 + $0x590] sm:$0xff]
  %v275 = vld [vmem:[%s2 + $0x598] sm:$0xff]
  %v276 = vld [vmem:[%s2 + $0x5a0] sm:$0xff]
  %v277 = vld [vmem:[%s2 + $0x5a8] sm:$0xff]
  %v278 = vld [vmem:[%s2 + $0x5b0] sm:$0xff]
  %v279 = vld [vmem:[%s2 + $0x5b8] sm:$0xff]
  %v280 = vld [vmem:[%s2 + $0x5c0] sm:$0xf]
  %v281 = vld [vmem:[%s2 + $0x5c4] sm:$0xff]
  %v282 = vld [vmem:[%s2 + $0x5cc] sm:$0xff]
  %v283 = vld [vmem:[%s2 + $0x5d4] sm:$0xff]
  %v284 = vld [vmem:[%s2 + $0x5dc] sm:$0xff]
  %v285 = vld [vmem:[%s2 + $0x5e4] sm:$0xff]
  %v286 = vld [vmem:[%s2 + $0x5ec] sm:$0xff]
  %v287 = vld [vmem:[%s2 + $0x5f4] sm:$0xff]
  %v288 = vld [vmem:[%s2 + $0x5fc] sm:$0xff]
  %v289 = vld [vmem:[%s2 + $0x604] sm:$0xff]
  %v290 = vld [vmem:[%s2 + $0x60c] sm:$0xff]
  %v291 = vld [vmem:[%s2 + $0x614] sm:$0xff]
  %v292 = vld [vmem:[%s2 + $0x61c] sm:$0xff]
  %v293 = vld [vmem:[%s2 + $0x624] sm:$0xff]
  %v294 = vld [vmem:[%s2 + $0x62c] sm:$0xff]
  %v295 = vld [vmem:[%s2 + $0x634] sm:$0xff]
  %v296 = vld [vmem:[%s2 + $0x63c] sm:$0xff]
  %v297 = vld [vmem:[%s2 + $0x644] sm:$0xff]
  %v298 = vld [vmem:[%s2 + $0x64c] sm:$0xff]
  %v299 = vld [vmem:[%s2 + $0x654] sm:$0xff]
  %v300 = vld [vmem:[%s2 + $0x65c] sm:$0xff]
  %v301 = vld [vmem:[%s2 + $0x664] sm:$0xff]
  %v302 = vld [vmem:[%s2 + $0x66c] sm:$0xff]
  %v303 = vld [vmem:[%s2 + $0x674] sm:$0xff]
  %v304 = vld [vmem:[%s2 + $0x67c] sm:$0xff]
  %v305 = vld [vmem:[%s2 + $0x684] sm:$0xff]
  %v306 = vld [vmem:[%s2 + $0x68c] sm:$0xff]
  %v307 = vld [vmem:[%s2 + $0x694] sm:$0xff]
  %v308 = vld [vmem:[%s2 + $0x69c] sm:$0xff]
  %v309 = vld [vmem:[%s2 + $0x6a4] sm:$0xff]
  %v310 = vld [vmem:[%s2 + $0x6ac] sm:$0xff]
  %v311 = vld [vmem:[%s2 + $0x6b4] sm:$0xff]
  %v312 = vld [vmem:[%s2 + $0x6bc] sm:$0xff]
  %v313 = vld [vmem:[%s2 + $0x6c4] sm:$0xff]
  %v314 = vld [vmem:[%s2 + $0x6cc] sm:$0xff]
  %v315 = vld [vmem:[%s2 + $0x6d4] sm:$0xff]
  %v316 = vld [vmem:[%s2 + $0x6dc] sm:$0xff]
  %v317 = vld [vmem:[%s2 + $0x6e4] sm:$0xff]
  %v318 = vld [vmem:[%s2 + $0x6ec] sm:$0xff]
  %v319 = vld [vmem:[%s2 + $0x6f4] sm:$0xff]
  %v320 = vld [vmem:[%s2 + $0x6fc] sm:$0xff]
  %v321 = vld [vmem:[%s2 + $0x704] sm:$0xff]
  %v322 = vld [vmem:[%s2 + $0x70c] sm:$0xff]
  %v323 = vld [vmem:[%s2 + $0x714] sm:$0xff]
  %v324 = vld [vmem:[%s2 + $0x71c] sm:$0xff]
  %v325 = vld [vmem:[%s2 + $0x724] sm:$0xff]
  %v326 = vld [vmem:[%s2 + $0x72c] sm:$0xff]
  %v327 = vld [vmem:[%s2 + $0x734] sm:$0xff]
  %v328 = vld [vmem:[%s2 + $0x73c] sm:$0xff]
  %v329 = vld [vmem:[%s2 + $0x744] sm:$0xff]
  %v330 = vld [vmem:[%s2 + $0x74c] sm:$0xff]
  %v331 = vld [vmem:[%s2 + $0x754] sm:$0xff]
  %v332 = vld [vmem:[%s2 + $0x75c] sm:$0xff]
  %v333 = vld [vmem:[%s2 + $0x764] sm:$0xff]
  %v334 = vld [vmem:[%s2 + $0x76c] sm:$0xff]
  %v335 = vld [vmem:[%s2 + $0x774] sm:$0xff]
  %v336 = vld [vmem:[%s2 + $0x77c] sm:$0xff]
  %v337 = vld [vmem:[%s2 + $0x784] sm:$0xff]
  %v338 = vld [vmem:[%s2 + $0x78c] sm:$0xff]
  %v339 = vld [vmem:[%s2 + $0x794] sm:$0xff]
  %v340 = vld [vmem:[%s2 + $0x79c] sm:$0xff]
  %v341 = vld [vmem:[%s2 + $0x7a4] sm:$0xff]
  %v342 = vld [vmem:[%s2 + $0x7ac] sm:$0xf]
  %v343 = vld [vmem:[%s1] sm:$0xff]
  %v344 = vld [vmem:[%s1 + $0x8] sm:$0xff]
  %v345 = vld [vmem:[%s1 + $0x10] sm:$0xff]
  %v346 = vld [vmem:[%s1 + $0x18] sm:$0xff]
  %v347 = vld [vmem:[%s1 + $0x20] sm:$0xff]
  %v348 = vld [vmem:[%s1 + $0x28] sm:$0xff]
  %v349 = vld [vmem:[%s3] sm:$0xff]
  %v350 = vld [vmem:[%s3 + $0x8] sm:$0xff]
  %v351 = vld [vmem:[%s3 + $0x10] sm:$0xff]
  %v352 = vld [vmem:[%s3 + $0x18] sm:$0xff]
  %v353 = vld [vmem:[%s3 + $0x20] sm:$0xff]
  %v354 = vld [vmem:[%s3 + $0x28] sm:$0xff]
  %v355 = vld [vmem:[%s3 + $0x30] sm:$0xff]
  %v356 = vld [vmem:[%s3 + $0x38] sm:$0xff]
  %v357 = vld [vmem:[%s3 + $0x40] sm:$0xff]
  %v358 = vld [vmem:[%s3 + $0x48] sm:$0xff]
  %v359 = vld [vmem:[%s3 + $0x50] sm:$0xff]
  %v360 = vld [vmem:[%s3 + $0x58] sm:$0xff]
  %v361 = vld [vmem:[%s3 + $0x60] sm:$0xff]
  %v362 = vld [vmem:[%s3 + $0x68] sm:$0xff]
  %v363 = vld [vmem:[%s3 + $0x70] sm:$0xff]
  %v364 = vld [vmem:[%s3 + $0x78] sm:$0xff]
  %v365 = vld [vmem:[%s3 + $0x80] sm:$0xff]
  %v366 = vld [vmem:[%s3 + $0x88] sm:$0xff]
  %v367 = vld [vmem:[%s3 + $0x90] sm:$0xff]
  %v368 = vld [vmem:[%s3 + $0x98] sm:$0xff]
  %v369 = vld [vmem:[%s3 + $0xa0] sm:$0xff]
  %v370 = vld [vmem:[%s3 + $0xa8] sm:$0xff]
  %v371 = vld [vmem:[%s3 + $0xb0] sm:$0xff]
  %v372 = vld [vmem:[%s3 + $0xb8] sm:$0xff]
  %v379 = vunpack.c.l.b16 %v343
  %v380 = vunpack.c.h.b16 %v343
  %v381 = vunpack.c.l.b16 %v344
  %v382 = vunpack.c.h.b16 %v344
  %v383 = vunpack.c.l.b16 %v345
  %v384 = vunpack.c.h.b16 %v345
  %v385 = vunpack.c.l.b16 %v346
  %v386 = vunpack.c.h.b16 %v346
  %v387 = vunpack.c.l.b16 %v347
  %v388 = vunpack.c.h.b16 %v347
  %v389 = vunpack.c.l.b16 %v348
  %v390 = vunpack.c.h.b16 %v348
  %v391 = vpack.c.b16 %v379, %v379
  %v392 = vpack.c.b16 %v380, %v380
  %v393 = vpack.c.b16 %v381, %v381
  %v394 = vpack.c.b16 %v382, %v382
  %v395 = vpack.c.b16 %v383, %v383
  %v396 = vpack.c.b16 %v384, %v384
  %v397 = vpack.c.b16 %v385, %v385
  %v398 = vpack.c.b16 %v386, %v386
  %v399 = vpack.c.b16 %v387, %v387
  %v400 = vpack.c.b16 %v388, %v388
  %v401 = vpack.c.b16 %v389, %v389
  %v402 = vpack.c.b16 %v390, %v390
  %v439 = vunpack.c.l.b16 %v349
  %v440 = vunpack.c.h.b16 %v349
  %v441 = vunpack.c.l.b16 %v350
  %v442 = vunpack.c.h.b16 %v350
  %v443 = vunpack.c.l.b16 %v351
  %v444 = vunpack.c.h.b16 %v351
  %v445 = vunpack.c.l.b16 %v352
  %v446 = vunpack.c.h.b16 %v352
  %v447 = vunpack.c.l.b16 %v353
  %v448 = vunpack.c.h.b16 %v353
  %v449 = vunpack.c.l.b16 %v354
  %v450 = vunpack.c.h.b16 %v354
  %v451 = vunpack.c.l.b16 %v355
  %v452 = vunpack.c.h.b16 %v355
  %v453 = vunpack.c.l.b16 %v356
  %v454 = vunpack.c.h.b16 %v356
  %v455 = vunpack.c.l.b16 %v357
  %v456 = vunpack.c.h.b16 %v357
  %v457 = vunpack.c.l.b16 %v358
  %v458 = vunpack.c.h.b16 %v358
  %v459 = vunpack.c.l.b16 %v359
  %v460 = vunpack.c.h.b16 %v359
  %v461 = vunpack.c.l.b16 %v360
  %v462 = vunpack.c.h.b16 %v360
  %v463 = vunpack.c.l.b16 %v361
  %v464 = vunpack.c.h.b16 %v361
  %v465 = vunpack.c.l.b16 %v362
  %v466 = vunpack.c.h.b16 %v362
  %v467 = vunpack.c.l.b16 %v363
  %v468 = vunpack.c.h.b16 %v363
  %v469 = vunpack.c.l.b16 %v364
  %v470 = vunpack.c.h.b16 %v364
  %v471 = vunpack.c.l.b16 %v365
  %v472 = vunpack.c.h.b16 %v365
  %v473 = vunpack.c.l.b16 %v366
  %v474 = vunpack.c.h.b16 %v366
  %v475 = vunpack.c.l.b16 %v367
  %v476 = vunpack.c.h.b16 %v367
  %v477 = vunpack.c.l.b16 %v368
  %v478 = vunpack.c.h.b16 %v368
  %v479 = vunpack.c.l.b16 %v369
  %v480 = vunpack.c.h.b16 %v369
  %v481 = vunpack.c.l.b16 %v370
  %v482 = vunpack.c.h.b16 %v370
  %v483 = vunpack.c.l.b16 %v371
  %v484 = vunpack.c.h.b16 %v371
  %v485 = vunpack.c.l.b16 %v372
  %v486 = vunpack.c.h.b16 %v372
  %v487 = vpack.c.b16 %v451, %v439
  %v488 = vpack.c.b16 %v452, %v440
  %v489 = vpack.c.b16 %v453, %v441
  %v490 = vpack.c.b16 %v454, %v442
  %v491 = vpack.c.b16 %v455, %v443
  %v492 = vpack.c.b16 %v456, %v444
  %v493 = vpack.c.b16 %v457, %v445
  %v494 = vpack.c.b16 %v458, %v446
  %v495 = vpack.c.b16 %v459, %v447
  %v496 = vpack.c.b16 %v460, %v448
  %v497 = vpack.c.b16 %v461, %v449
  %v498 = vpack.c.b16 %v462, %v450
  %v499 = vpack.c.b16 %v475, %v463
  %v500 = vpack.c.b16 %v476, %v464
  %v501 = vpack.c.b16 %v477, %v465
  %v502 = vpack.c.b16 %v478, %v466
  %v503 = vpack.c.b16 %v479, %v467
  %v504 = vpack.c.b16 %v480, %v468
  %v505 = vpack.c.b16 %v481, %v469
  %v506 = vpack.c.b16 %v482, %v470
  %v507 = vpack.c.b16 %v483, %v471
  %v508 = vpack.c.b16 %v484, %v472
  %v509 = vpack.c.b16 %v485, %v473
  %v510 = vpack.c.b16 %v486, %v474
  %535 = vmatprep.subr.bf16.mxu0 %v488
  %536 = vmatpush1.bf16.xpose.msra.mxu0 %v487
  %537 = vmatprep.subr.bf16.mxu0 %v500
  %538 = vmatpush1.bf16.xpose.msra.mxu0 %v499
  %539 = vmatprep.subr.bf16.mxu0 0
  %540 = vmatpush1.bf16.xpose.msra.mxu0 0
  %541 = vmatprep.subr.bf16.mxu0 0
  %542 = vmatpush1.bf16.xpose.msra.mxu0 0
  %543 = vmatprep.subr.bf16.mxu0 0
  %544 = vmatpush1.bf16.xpose.msra.mxu0 0
  %545 = vmatprep.subr.bf16.mxu0 0
  %546 = vmatpush1.bf16.xpose.msra.mxu0 0
  %547 = vmatprep.subr.bf16.mxu0 0
  %548 = vmatpush1.bf16.xpose.msra.mxu0 0
  %549 = vmatprep.subr.bf16.mxu0 0
  %550 = vmatpush1.bf16.xpose.msra.mxu0 0
  %551 = vmatprep.subr.bf16.mxu0 0
  %552 = vmatpush1.bf16.xpose.msra.mxu0 0
  %553 = vmatprep.subr.bf16.mxu0 0
  %554 = vmatpush1.bf16.xpose.msra.mxu0 0
  %555 = vmatprep.subr.bf16.mxu0 0
  %556 = vmatpush1.bf16.xpose.msra.mxu0 0
  %557 = vmatprep.subr.bf16.mxu0 0
  %558 = vmatpush1.bf16.xpose.msra.mxu0 0
  %559 = vmatprep.subr.bf16.mxu0 0
  %560 = vmatpush1.bf16.xpose.msra.mxu0 0
  %561 = vmatprep.subr.bf16.mxu0 0
  %562 = vmatpush1.bf16.xpose.msra.mxu0 0
  %563 = vmatprep.subr.bf16.mxu0 0
  %564 = vmatpush1.bf16.xpose.msra.mxu0 0
  %565 = vmatprep.subr.bf16.mxu0 0
  %566 = vmatpush1.bf16.xpose.msra.mxu0 0
  %567 = vmatprep.mubr.bf16.mxu0 %v392
  %568 = vmatmul.mubr.bf16.gmra.mrb[0].mxu0 %v391
  %v569 = vpop.f32.mrb[0].mxu0
  %v570 = vadd.f32 0.0, %v569
  %v571 = vpop.f32.mrb[0].mxu0
  %v572 = vpop.f32.mrb[0].mxu0
  %v573 = vpop.f32.mrb[0].mxu0
  %574 = vdwg.mxu0
  %575 = vmatprep.subr.bf16.mxu0 %v490
  %576 = vmatpush1.bf16.xpose.msra.mxu0 %v489
  %577 = vmatprep.subr.bf16.mxu0 %v502
  %578 = vmatpush1.bf16.xpose.msra.mxu0 %v501
  %579 = vmatprep.subr.bf16.mxu0 0
  %580 = vmatpush1.bf16.xpose.msra.mxu0 0
  %581 = vmatprep.subr.bf16.mxu0 0
  %582 = vmatpush1.bf16.xpose.msra.mxu0 0
  %583 = vmatprep.subr.bf16.mxu0 0
  %584 = vmatpush1.bf16.xpose.msra.mxu0 0
  %585 = vmatprep.subr.bf16.mxu0 0
  %586 = vmatpush1.bf16.xpose.msra.mxu0 0
  %587 = vmatprep.subr.bf16.mxu0 0
  %588 = vmatpush1.bf16.xpose.msra.mxu0 0
  %589 = vmatprep.subr.bf16.mxu0 0
  %590 = vmatpush1.bf16.xpose.msra.mxu0 0
  %591 = vmatprep.subr.bf16.mxu0 0
  %592 = vmatpush1.bf16.xpose.msra.mxu0 0
  %593 = vmatprep.subr.bf16.mxu0 0
  %594 = vmatpush1.bf16.xpose.msra.mxu0 0
  %595 = vmatprep.subr.bf16.mxu0 0
  %596 = vmatpush1.bf16.xpose.msra.mxu0 0
  %597 = vmatprep.subr.bf16.mxu0 0
  %598 = vmatpush1.bf16.xpose.msra.mxu0 0
  %599 = vmatprep.subr.bf16.mxu0 0
  %600 = vmatpush1.bf16.xpose.msra.mxu0 0
  %601 = vmatprep.subr.bf16.mxu0 0
  %602 = vmatpush1.bf16.xpose.msra.mxu0 0
  %603 = vmatprep.subr.bf16.mxu0 0
  %604 = vmatpush1.bf16.xpose.msra.mxu0 0
  %605 = vmatprep.subr.bf16.mxu0 0
  %606 = vmatpush1.bf16.xpose.msra.mxu0 0
  %607 = vmatprep.mubr.bf16.mxu0 %v394
  %608 = vmatmul.mubr.bf16.gmra.mrb[0].mxu0 %v393
  %v609 = vpop.f32.mrb[0].mxu0
  %v610 = vadd.f32 %v570, %v609
  %v611 = vpop.f32.mrb[0].mxu0
  %v612 = vpop.f32.mrb[0].mxu0
  %v613 = vpop.f32.mrb[0].mxu0
  %614 = vdwg.mxu0
  %615 = vmatprep.subr.bf16.mxu0 %v492
  %616 = vmatpush1.bf16.xpose.msra.mxu0 %v491
  %617 = vmatprep.subr.bf16.mxu0 %v504
  %618 = vmatpush1.bf16.xpose.msra.mxu0 %v503
  %619 = vmatprep.subr.bf16.mxu0 0
  %620 = vmatpush1.bf16.xpose.msra.mxu0 0
  %621 = vmatprep.subr.bf16.mxu0 0
  %622 = vmatpush1.bf16.xpose.msra.mxu0 0
  %623 = vmatprep.subr.bf16.mxu0 0
  %624 = vmatpush1.bf16.xpose.msra.mxu0 0
  %625 = vmatprep.subr.bf16.mxu0 0
  %626 = vmatpush1.bf16.xpose.msra.mxu0 0
  %627 = vmatprep.subr.bf16.mxu0 0
  %628 = vmatpush1.bf16.xpose.msra.mxu0 0
  %629 = vmatprep.subr.bf16.mxu0 0
  %630 = vmatpush1.bf16.xpose.msra.mxu0 0
  %631 = vmatprep.subr.bf16.mxu0 0
  %632 = vmatpush1.bf16.xpose.msra.mxu0 0
  %633 = vmatprep.subr.bf16.mxu0 0
  %634 = vmatpush1.bf16.xpose.msra.mxu0 0
  %635 = vmatprep.subr.bf16.mxu0 0
  %636 = vmatpush1.bf16.xpose.msra.mxu0 0
  %637 = vmatprep.subr.bf16.mxu0 0
  %638 = vmatpush1.bf16.xpose.msra.mxu0 0
  %639 = vmatprep.subr.bf16.mxu0 0
  %640 = vmatpush1.bf16.xpose.msra.mxu0 0
  %641 = vmatprep.subr.bf16.mxu0 0
  %642 = vmatpush1.bf16.xpose.msra.mxu0 0
  %643 = vmatprep.subr.bf16.mxu0 0
  %644 = vmatpush1.bf16.xpose.msra.mxu0 0
  %645 = vmatprep.subr.bf16.mxu0 0
  %646 = vmatpush1.bf16.xpose.msra.mxu0 0
  %647 = vmatprep.mubr.bf16.mxu0 %v396
  %648 = vmatmul.mubr.bf16.gmra.mrb[0].mxu0 %v395
  %v649 = vpop.f32.mrb[0].mxu0
  %v650 = vadd.f32 %v610, %v649
  %v651 = vpop.f32.mrb[0].mxu0
  %v652 = vpop.f32.mrb[0].mxu0
  %v653 = vpop.f32.mrb[0].mxu0
  %654 = vdwg.mxu0
  %655 = vmatprep.subr.bf16.mxu0 %v494
  %656 = vmatpush1.bf16.xpose.msra.mxu0 %v493
  %657 = vmatprep.subr.bf16.mxu0 %v506
  %658 = vmatpush1.bf16.xpose.msra.mxu0 %v505
  %659 = vmatprep.subr.bf16.mxu0 0
  %660 = vmatpush1.bf16.xpose.msra.mxu0 0
  %661 = vmatprep.subr.bf16.mxu0 0
  %662 = vmatpush1.bf16.xpose.msra.mxu0 0
  %663 = vmatprep.subr.bf16.mxu0 0
  %664 = vmatpush1.bf16.xpose.msra.mxu0 0
  %665 = vmatprep.subr.bf16.mxu0 0
  %666 = vmatpush1.bf16.xpose.msra.mxu0 0
  %667 = vmatprep.subr.bf16.mxu0 0
  %668 = vmatpush1.bf16.xpose.msra.mxu0 0
  %669 = vmatprep.subr.bf16.mxu0 0
  %670 = vmatpush1.bf16.xpose.msra.mxu0 0
  %671 = vmatprep.subr.bf16.mxu0 0
  %672 = vmatpush1.bf16.xpose.msra.mxu0 0
  %673 = vmatprep.subr.bf16.mxu0 0
  %674 = vmatpush1.bf16.xpose.msra.mxu0 0
  %675 = vmatprep.subr.bf16.mxu0 0
  %676 = vmatpush1.bf16.xpose.msra.mxu0 0
  %677 = vmatprep.subr.bf16.mxu0 0
  %678 = vmatpush1.bf16.xpose.msra.mxu0 0
  %679 = vmatprep.subr.bf16.mxu0 0
  %680 = vmatpush1.bf16.xpose.msra.mxu0 0
  %681 = vmatprep.subr.bf16.mxu0 0
  %682 = vmatpush1.bf16.xpose.msra.mxu0 0
  %683 = vmatprep.subr.bf16.mxu0 0
  %684 = vmatpush1.bf16.xpose.msra.mxu0 0
  %685 = vmatprep.subr.bf16.mxu0 0
  %686 = vmatpush1.bf16.xpose.msra.mxu0 0
  %687 = vmatprep.mubr.bf16.mxu0 %v398
  %688 = vmatmul.mubr.bf16.gmra.mrb[0].mxu0 %v397
  %v689 = vpop.f32.mrb[0].mxu0
  %v690 = vadd.f32 %v650, %v689
  %v691 = vpop.f32.mrb[0].mxu0
  %v692 = vpop.f32.mrb[0].mxu0
  %v693 = vpop.f32.mrb[0].mxu0
  %694 = vdwg.mxu0
  %695 = vmatprep.subr.bf16.mxu0 %v496
  %696 = vmatpush1.bf16.xpose.msra.mxu0 %v495
  %697 = vmatprep.subr.bf16.mxu0 %v508
  %698 = vmatpush1.bf16.xpose.msra.mxu0 %v507
  %699 = vmatprep.subr.bf16.mxu0 0
  %700 = vmatpush1.bf16.xpose.msra.mxu0 0
  %701 = vmatprep.subr.bf16.mxu0 0
  %702 = vmatpush1.bf16.xpose.msra.mxu0 0
  %703 = vmatprep.subr.bf16.mxu0 0
  %704 = vmatpush1.bf16.xpose.msra.mxu0 0
  %705 = vmatprep.subr.bf16.mxu0 0
  %706 = vmatpush1.bf16.xpose.msra.mxu0 0
  %707 = vmatprep.subr.bf16.mxu0 0
  %708 = vmatpush1.bf16.xpose.msra.mxu0 0
  %709 = vmatprep.subr.bf16.mxu0 0
  %710 = vmatpush1.bf16.xpose.msra.mxu0 0
  %711 = vmatprep.subr.bf16.mxu0 0
  %712 = vmatpush1.bf16.xpose.msra.mxu0 0
  %713 = vmatprep.subr.bf16.mxu0 0
  %714 = vmatpush1.bf16.xpose.msra.mxu0 0
  %715 = vmatprep.subr.bf16.mxu0 0
  %716 = vmatpush1.bf16.xpose.msra.mxu0 0
  %717 = vmatprep.subr.bf16.mxu0 0
  %718 = vmatpush1.bf16.xpose.msra.mxu0 0
  %719 = vmatprep.subr.bf16.mxu0 0
  %720 = vmatpush1.bf16.xpose.msra.mxu0 0
  %721 = vmatprep.subr.bf16.mxu0 0
  %722 = vmatpush1.bf16.xpose.msra.mxu0 0
  %723 = vmatprep.subr.bf16.mxu0 0
  %724 = vmatpush1.bf16.xpose.msra.mxu0 0
  %725 = vmatprep.subr.bf16.mxu0 0
  %726 = vmatpush1.bf16.xpose.msra.mxu0 0
  %727 = vmatprep.mubr.bf16.mxu0 %v400
  %728 = vmatmul.mubr.bf16.gmra.mrb[0].mxu0 %v399
  %v729 = vpop.f32.mrb[0].mxu0
  %v730 = vadd.f32 %v690, %v729
  %v731 = vpop.f32.mrb[0].mxu0
  %v732 = vpop.f32.mrb[0].mxu0
  %v733 = vpop.f32.mrb[0].mxu0
  %734 = vdwg.mxu0
  %735 = vmatprep.subr.bf16.mxu0 %v498
  %736 = vmatpush1.bf16.xpose.msra.mxu0 %v497
  %737 = vmatprep.subr.bf16.mxu0 %v510
  %738 = vmatpush1.bf16.xpose.msra.mxu0 %v509
  %739 = vmatprep.subr.bf16.mxu0 0
  %740 = vmatpush1.bf16.xpose.msra.mxu0 0
  %741 = vmatprep.subr.bf16.mxu0 0
  %742 = vmatpush1.bf16.xpose.msra.mxu0 0
  %743 = vmatprep.subr.bf16.mxu0 0
  %744 = vmatpush1.bf16.xpose.msra.mxu0 0
  %745 = vmatprep.subr.bf16.mxu0 0
  %746 = vmatpush1.bf16.xpose.msra.mxu0 0
  %747 = vmatprep.subr.bf16.mxu0 0
  %748 = vmatpush1.bf16.xpose.msra.mxu0 0
  %749 = vmatprep.subr.bf16.mxu0 0
  %750 = vmatpush1.bf16.xpose.msra.mxu0 0
  %751 = vmatprep.subr.bf16.mxu0 0
  %752 = vmatpush1.bf16.xpose.msra.mxu0 0
  %753 = vmatprep.subr.bf16.mxu0 0
  %754 = vmatpush1.bf16.xpose.msra.mxu0 0
  %755 = vmatprep.subr.bf16.mxu0 0
  %756 = vmatpush1.bf16.xpose.msra.mxu0 0
  %757 = vmatprep.subr.bf16.mxu0 0
  %758 = vmatpush1.bf16.xpose.msra.mxu0 0
  %759 = vmatprep.subr.bf16.mxu0 0
  %760 = vmatpush1.bf16.xpose.msra.mxu0 0
  %761 = vmatprep.subr.bf16.mxu0 0
  %762 = vmatpush1.bf16.xpose.msra.mxu0 0
  %763 = vmatprep.subr.bf16.mxu0 0
  %764 = vmatpush1.bf16.xpose.msra.mxu0 0
  %765 = vmatprep.subr.bf16.mxu0 0
  %766 = vmatpush1.bf16.xpose.msra.mxu0 0
  %767 = vmatprep.mubr.bf16.mxu0 %v402
  %768 = vmatmul.mubr.bf16.gmra.mrb[0].mxu0 %v401
  %v769 = vpop.f32.mrb[0].mxu0
  %v770 = vadd.f32 %v730, %v769
  %v771 = vpop.f32.mrb[0].mxu0
  %v772 = vpop.f32.mrb[0].mxu0
  %v773 = vpop.f32.mrb[0].mxu0
  %774 = vdwg.mxu0
  %v837 = vunpack.c.l.b16 %v33
  %v838 = vunpack.c.h.b16 %v33
  %v839 = vunpack.c.l.b16 %v34
  %v840 = vunpack.c.h.b16 %v34
  %v841 = vunpack.c.l.b16 %v35
  %v842 = vunpack.c.h.b16 %v35
  %v843 = vunpack.c.l.b16 %v36
  %v844 = vunpack.c.h.b16 %v36
  %v845 = vunpack.c.l.b16 %v37
  %v846 = vunpack.c.h.b16 %v37
  %v847 = vunpack.c.l.b16 %v38
  %v848 = vunpack.c.h.b16 %v38
  %v849 = vunpack.c.l.b16 %v39
  %v850 = vunpack.c.h.b16 %v39
  %v851 = vunpack.c.l.b16 %v40
  %v852 = vunpack.c.h.b16 %v40
  %v853 = vunpack.c.l.b16 %v41
  %v854 = vunpack.c.h.b16 %v41
  %v855 = vunpack.c.l.b16 %v42
  %v856 = vunpack.c.h.b16 %v42
  %v857 = vunpack.c.l.b16 %v43
  %v858 = vunpack.c.h.b16 %v43
  %v859 = vunpack.c.l.b16 %v44
  %v860 = vunpack.c.h.b16 %v44
  %v861 = vunpack.c.l.b16 %v45
  %v862 = vunpack.c.h.b16 %v45
  %v863 = vunpack.c.l.b16 %v46
  %v864 = vunpack.c.h.b16 %v46
  %v865 = vunpack.c.l.b16 %v47
  %v866 = vunpack.c.h.b16 %v47
  %v867 = vunpack.c.l.b16 %v48
  %v868 = vunpack.c.h.b16 %v48
  %v869 = vunpack.c.l.b16 %v49
  %v870 = vunpack.c.h.b16 %v49
  %v871 = vunpack.c.l.b16 %v50
  %v872 = vunpack.c.h.b16 %v50
  %v873 = vunpack.c.l.b16 %v51
  %v874 = vunpack.c.h.b16 %v51
  %v875 = vunpack.c.l.b16 %v52
  %v876 = vunpack.c.h.b16 %v52
  %v877 = vunpack.c.l.b16 %v53
  %v878 = vunpack.c.h.b16 %v53
  %v879 = vunpack.c.l.b16 %v54
  %v880 = vunpack.c.h.b16 %v54
  %v881 = vunpack.c.l.b16 %v55
  %v882 = vunpack.c.h.b16 %v55
  %v883 = vunpack.c.l.b16 %v56
  %v884 = vunpack.c.h.b16 %v56
  %v885 = vunpack.c.l.b16 %v57
  %v886 = vunpack.c.h.b16 %v57
  %v887 = vunpack.c.l.b16 %v58
  %v888 = vunpack.c.h.b16 %v58
  %v889 = vunpack.c.l.b16 %v59
  %v890 = vunpack.c.h.b16 %v59
  %v891 = vunpack.c.l.b16 %v60
  %v892 = vunpack.c.h.b16 %v60
  %v893 = vunpack.c.l.b16 %v61
  %v894 = vunpack.c.h.b16 %v61
  %v895 = vunpack.c.l.b16 %v62
  %v896 = vunpack.c.h.b16 %v62
  %v897 = vunpack.c.l.b16 %v63
  %v898 = vunpack.c.h.b16 %v63
  %v899 = vunpack.c.l.b16 %v64
  %v900 = vunpack.c.h.b16 %v64
  %v901 = vunpack.c.l.b16 %v65
  %v902 = vunpack.c.h.b16 %v65
  %v903 = vunpack.c.l.b16 %v66
  %v904 = vunpack.c.h.b16 %v66
  %v905 = vunpack.c.l.b16 %v67
  %v906 = vunpack.c.h.b16 %v67
  %v907 = vunpack.c.l.b16 %v68
  %v908 = vunpack.c.h.b16 %v68
  %v909 = vunpack.c.l.b16 %v69
  %v910 = vunpack.c.h.b16 %v69
  %v911 = vunpack.c.l.b16 %v70
  %v912 = vunpack.c.h.b16 %v70
  %v913 = vunpack.c.l.b16 %v71
  %v914 = vunpack.c.h.b16 %v71
  %v915 = vunpack.c.l.b16 %v72
  %v916 = vunpack.c.h.b16 %v72
  %v917 = vunpack.c.l.b16 %v73
  %v918 = vunpack.c.h.b16 %v73
  %v919 = vunpack.c.l.b16 %v74
  %v920 = vunpack.c.h.b16 %v74
  %v921 = vunpack.c.l.b16 %v75
  %v922 = vunpack.c.h.b16 %v75
  %v923 = vunpack.c.l.b16 %v76
  %v924 = vunpack.c.h.b16 %v76
  %v925 = vunpack.c.l.b16 %v77
  %v926 = vunpack.c.h.b16 %v77
  %v927 = vunpack.c.l.b16 %v78
  %v928 = vunpack.c.h.b16 %v78
  %v929 = vunpack.c.l.b16 %v79
  %v930 = vunpack.c.h.b16 %v79
  %v931 = vunpack.c.l.b16 %v80
  %v932 = vunpack.c.h.b16 %v80
  %v933 = vunpack.c.l.b16 %v81
  %v934 = vunpack.c.h.b16 %v81
  %v935 = vunpack.c.l.b16 %v82
  %v936 = vunpack.c.h.b16 %v82
  %v937 = vunpack.c.l.b16 %v83
  %v938 = vunpack.c.h.b16 %v83
  %v939 = vunpack.c.l.b16 %v84
  %v940 = vunpack.c.h.b16 %v84
  %v941 = vunpack.c.l.b16 %v85
  %v942 = vunpack.c.h.b16 %v85
  %v943 = vunpack.c.l.b16 %v86
  %v944 = vunpack.c.h.b16 %v86
  %v945 = vunpack.c.l.b16 %v87
  %v946 = vunpack.c.h.b16 %v87
  %v947 = vunpack.c.l.b16 %v88
  %v948 = vunpack.c.h.b16 %v88
  %v949 = vunpack.c.l.b16 %v89
  %v950 = vunpack.c.h.b16 %v89
  %v951 = vunpack.c.l.b16 %v90
  %v952 = vunpack.c.h.b16 %v90
  %v953 = vunpack.c.l.b16 %v91
  %v954 = vunpack.c.h.b16 %v91
  %v955 = vunpack.c.l.b16 %v92
  %v956 = vunpack.c.h.b16 %v92
  %v957 = vunpack.c.l.b16 %v93
  %v958 = vunpack.c.h.b16 %v93
  %v959 = vunpack.c.l.b16 %v94
  %v960 = vpack.c.b16 %v837, %v837
  %v961 = vpack.c.b16 %v838, %v838
  %v962 = vpack.c.b16 %v839, %v839
  %v963 = vpack.c.b16 %v840, %v840
  %v964 = vpack.c.b16 %v841, %v841
  %v965 = vpack.c.b16 %v842, %v842
  %v966 = vpack.c.b16 %v843, %v843
  %v967 = vpack.c.b16 %v844, %v844
  %v968 = vpack.c.b16 %v845, %v845
  %v969 = vpack.c.b16 %v846, %v846
  %v970 = vpack.c.b16 %v847, %v847
  %v971 = vpack.c.b16 %v848, %v848
  %v972 = vpack.c.b16 %v849, %v849
  %v973 = vpack.c.b16 %v850, %v850
  %v974 = vpack.c.b16 %v851, %v851
  %v975 = vpack.c.b16 %v852, %v852
  %v976 = vpack.c.b16 %v853, %v853
  %v977 = vpack.c.b16 %v854, %v854
  %v978 = vpack.c.b16 %v855, %v855
  %v979 = vpack.c.b16 %v856, %v856
  %v980 = vpack.c.b16 %v857, %v857
  %v981 = vpack.c.b16 %v858, %v858
  %v982 = vpack.c.b16 %v859, %v859
  %v983 = vpack.c.b16 %v860, %v860
  %v984 = vpack.c.b16 %v861, %v861
  %v985 = vpack.c.b16 %v862, %v862
  %v986 = vpack.c.b16 %v863, %v863
  %v987 = vpack.c.b16 %v864, %v864
  %v988 = vpack.c.b16 %v865, %v865
  %v989 = vpack.c.b16 %v866, %v866
  %v990 = vpack.c.b16 %v867, %v867
  %v991 = vpack.c.b16 %v868, %v868
  %v992 = vpack.c.b16 %v869, %v869
  %v993 = vpack.c.b16 %v870, %v870
  %v994 = vpack.c.b16 %v871, %v871
  %v995 = vpack.c.b16 %v872, %v872
  %v996 = vpack.c.b16 %v873, %v873
  %v997 = vpack.c.b16 %v874, %v874
  %v998 = vpack.c.b16 %v875, %v875
  %v999 = vpack.c.b16 %v876, %v876
  %v1000 = vpack.c.b16 %v877, %v877
  %v1001 = vpack.c.b16 %v878, %v878
  %v1002 = vpack.c.b16 %v879, %v879
  %v1003 = vpack.c.b16 %v880, %v880
  %v1004 = vpack.c.b16 %v881, %v881
  %v1005 = vpack.c.b16 %v882, %v882
  %v1006 = vpack.c.b16 %v883, %v883
  %v1007 = vpack.c.b16 %v884, %v884
  %v1008 = vpack.c.b16 %v885, %v885
  %v1009 = vpack.c.b16 %v886, %v886
  %v1010 = vpack.c.b16 %v887, %v887
  %v1011 = vpack.c.b16 %v888, %v888
  %v1012 = vpack.c.b16 %v889, %v889
  %v1013 = vpack.c.b16 %v890, %v890
  %v1014 = vpack.c.b16 %v891, %v891
  %v1015 = vpack.c.b16 %v892, %v892
  %v1016 = vpack.c.b16 %v893, %v893
  %v1017 = vpack.c.b16 %v894, %v894
  %v1018 = vpack.c.b16 %v895, %v895
  %v1019 = vpack.c.b16 %v896, %v896
  %v1020 = vpack.c.b16 %v897, %v897
  %v1021 = vpack.c.b16 %v898, %v898
  %v1022 = vpack.c.b16 %v899, %v899
  %v1023 = vpack.c.b16 %v900, %v900
  %v1024 = vpack.c.b16 %v901, %v901
  %v1025 = vpack.c.b16 %v902, %v902
  %v1026 = vpack.c.b16 %v903, %v903
  %v1027 = vpack.c.b16 %v904, %v904
  %v1028 = vpack.c.b16 %v905, %v905
  %v1029 = vpack.c.b16 %v906, %v906
  %v1030 = vpack.c.b16 %v907, %v907
  %v1031 = vpack.c.b16 %v908, %v908
  %v1032 = vpack.c.b16 %v909, %v909
  %v1033 = vpack.c.b16 %v910, %v910
  %v1034 = vpack.c.b16 %v911, %v911
  %v1035 = vpack.c.b16 %v912, %v912
  %v1036 = vpack.c.b16 %v913, %v913
  %v1037 = vpack.c.b16 %v914, %v914
  %v1038 = vpack.c.b16 %v915, %v915
  %v1039 = vpack.c.b16 %v916, %v916
  %v1040 = vpack.c.b16 %v917, %v917
  %v1041 = vpack.c.b16 %v918, %v918
  %v1042 = vpack.c.b16 %v919, %v919
  %v1043 = vpack.c.b16 %v920, %v920
  %v1044 = vpack.c.b16 %v921, %v921
  %v1045 = vpack.c.b16 %v922, %v922
  %v1046 = vpack.c.b16 %v923, %v923
  %v1047 = vpack.c.b16 %v924, %v924
  %v1048 = vpack.c.b16 %v925, %v925
  %v1049 = vpack.c.b16 %v926, %v926
  %v1050 = vpack.c.b16 %v927, %v927
  %v1051 = vpack.c.b16 %v928, %v928
  %v1052 = vpack.c.b16 %v929, %v929
  %v1053 = vpack.c.b16 %v930, %v930
  %v1054 = vpack.c.b16 %v931, %v931
  %v1055 = vpack.c.b16 %v932, %v932
  %v1056 = vpack.c.b16 %v933, %v933
  %v1057 = vpack.c.b16 %v934, %v934
  %v1058 = vpack.c.b16 %v935, %v935
  %v1059 = vpack.c.b16 %v936, %v936
  %v1060 = vpack.c.b16 %v937, %v937
  %v1061 = vpack.c.b16 %v938, %v938
  %v1062 = vpack.c.b16 %v939, %v939
  %v1063 = vpack.c.b16 %v940, %v940
  %v1064 = vpack.c.b16 %v941, %v941
  %v1065 = vpack.c.b16 %v942, %v942
  %v1066 = vpack.c.b16 %v943, %v943
  %v1067 = vpack.c.b16 %v944, %v944
  %v1068 = vpack.c.b16 %v945, %v945
  %v1069 = vpack.c.b16 %v946, %v946
  %v1070 = vpack.c.b16 %v947, %v947
  %v1071 = vpack.c.b16 %v948, %v948
  %v1072 = vpack.c.b16 %v949, %v949
  %v1073 = vpack.c.b16 %v950, %v950
  %v1074 = vpack.c.b16 %v951, %v951
  %v1075 = vpack.c.b16 %v952, %v952
  %v1076 = vpack.c.b16 %v953, %v953
  %v1077 = vpack.c.b16 %v954, %v954
  %v1078 = vpack.c.b16 %v955, %v955
  %v1079 = vpack.c.b16 %v956, %v956
  %v1080 = vpack.c.b16 %v957, %v957
  %v1081 = vpack.c.b16 %v958, %v958
  %v1082 = vpack.c.b16 %v959, %v959
  %v1454 = vunpack.c.l.b16 %v95
  %v1455 = vunpack.c.h.b16 %v95
  %v1456 = vunpack.c.l.b16 %v96
  %v1457 = vunpack.c.h.b16 %v96
  %v1458 = vunpack.c.l.b16 %v97
  %v1459 = vunpack.c.h.b16 %v97
  %v1460 = vunpack.c.l.b16 %v98
  %v1461 = vunpack.c.h.b16 %v98
  %v1462 = vunpack.c.l.b16 %v99
  %v1463 = vunpack.c.h.b16 %v99
  %v1464 = vunpack.c.l.b16 %v100
  %v1465 = vunpack.c.h.b16 %v100
  %v1466 = vunpack.c.l.b16 %v101
  %v1467 = vunpack.c.h.b16 %v101
  %v1468 = vunpack.c.l.b16 %v102
  %v1469 = vunpack.c.h.b16 %v102
  %v1470 = vunpack.c.l.b16 %v103
  %v1471 = vunpack.c.h.b16 %v103
  %v1472 = vunpack.c.l.b16 %v104
  %v1473 = vunpack.c.h.b16 %v104
  %v1474 = vunpack.c.l.b16 %v105
  %v1475 = vunpack.c.h.b16 %v105
  %v1476 = vunpack.c.l.b16 %v106
  %v1477 = vunpack.c.h.b16 %v106
  %v1478 = vunpack.c.l.b16 %v107
  %v1479 = vunpack.c.h.b16 %v107
  %v1480 = vunpack.c.l.b16 %v108
  %v1481 = vunpack.c.h.b16 %v108
  %v1482 = vunpack.c.l.b16 %v109
  %v1483 = vunpack.c.h.b16 %v109
  %v1484 = vunpack.c.l.b16 %v110
  %v1485 = vunpack.c.h.b16 %v110
  %v1486 = vunpack.c.l.b16 %v111
  %v1487 = vunpack.c.h.b16 %v111
  %v1488 = vunpack.c.l.b16 %v112
  %v1489 = vunpack.c.h.b16 %v112
  %v1490 = vunpack.c.l.b16 %v113
  %v1491 = vunpack.c.h.b16 %v113
  %v1492 = vunpack.c.l.b16 %v114
  %v1493 = vunpack.c.h.b16 %v114
  %v1494 = vunpack.c.l.b16 %v115
  %v1495 = vunpack.c.h.b16 %v115
  %v1496 = vunpack.c.l.b16 %v116
  %v1497 = vunpack.c.h.b16 %v116
  %v1498 = vunpack.c.l.b16 %v117
  %v1499 = vunpack.c.h.b16 %v117
  %v1500 = vunpack.c.l.b16 %v118
  %v1501 = vunpack.c.h.b16 %v118
  %v1502 = vunpack.c.l.b16 %v119
  %v1503 = vunpack.c.h.b16 %v119
  %v1504 = vunpack.c.l.b16 %v120
  %v1505 = vunpack.c.h.b16 %v120
  %v1506 = vunpack.c.l.b16 %v121
  %v1507 = vunpack.c.h.b16 %v121
  %v1508 = vunpack.c.l.b16 %v122
  %v1509 = vunpack.c.h.b16 %v122
  %v1510 = vunpack.c.l.b16 %v123
  %v1511 = vunpack.c.h.b16 %v123
  %v1512 = vunpack.c.l.b16 %v124
  %v1513 = vunpack.c.h.b16 %v124
  %v1514 = vunpack.c.l.b16 %v125
  %v1515 = vunpack.c.h.b16 %v125
  %v1516 = vunpack.c.l.b16 %v126
  %v1517 = vunpack.c.h.b16 %v126
  %v1518 = vunpack.c.l.b16 %v127
  %v1519 = vunpack.c.h.b16 %v127
  %v1520 = vunpack.c.l.b16 %v128
  %v1521 = vunpack.c.h.b16 %v128
  %v1522 = vunpack.c.l.b16 %v129
  %v1523 = vunpack.c.h.b16 %v129
  %v1524 = vunpack.c.l.b16 %v130
  %v1525 = vunpack.c.h.b16 %v130
  %v1526 = vunpack.c.l.b16 %v131
  %v1527 = vunpack.c.h.b16 %v131
  %v1528 = vunpack.c.l.b16 %v132
  %v1529 = vunpack.c.h.b16 %v132
  %v1530 = vunpack.c.l.b16 %v133
  %v1531 = vunpack.c.h.b16 %v133
  %v1532 = vunpack.c.l.b16 %v134
  %v1533 = vunpack.c.h.b16 %v134
  %v1534 = vunpack.c.l.b16 %v135
  %v1535 = vunpack.c.h.b16 %v135
  %v1536 = vunpack.c.l.b16 %v136
  %v1537 = vunpack.c.h.b16 %v136
  %v1538 = vunpack.c.l.b16 %v137
  %v1539 = vunpack.c.h.b16 %v137
  %v1540 = vunpack.c.l.b16 %v138
  %v1541 = vunpack.c.h.b16 %v138
  %v1542 = vunpack.c.l.b16 %v139
  %v1543 = vunpack.c.h.b16 %v139
  %v1544 = vunpack.c.l.b16 %v140
  %v1545 = vunpack.c.h.b16 %v140
  %v1546 = vunpack.c.l.b16 %v141
  %v1547 = vunpack.c.h.b16 %v141
  %v1548 = vunpack.c.l.b16 %v142
  %v1549 = vunpack.c.h.b16 %v142
  %v1550 = vunpack.c.l.b16 %v143
  %v1551 = vunpack.c.h.b16 %v143
  %v1552 = vunpack.c.l.b16 %v144
  %v1553 = vunpack.c.h.b16 %v144
  %v1554 = vunpack.c.l.b16 %v145
  %v1555 = vunpack.c.h.b16 %v145
  %v1556 = vunpack.c.l.b16 %v146
  %v1557 = vunpack.c.h.b16 %v146
  %v1558 = vunpack.c.l.b16 %v147
  %v1559 = vunpack.c.h.b16 %v147
  %v1560 = vunpack.c.l.b16 %v148
  %v1561 = vunpack.c.h.b16 %v148
  %v1562 = vunpack.c.l.b16 %v149
  %v1563 = vunpack.c.h.b16 %v149
  %v1564 = vunpack.c.l.b16 %v150
  %v1565 = vunpack.c.h.b16 %v150
  %v1566 = vunpack.c.l.b16 %v151
  %v1567 = vunpack.c.h.b16 %v151
  %v1568 = vunpack.c.l.b16 %v152
  %v1569 = vunpack.c.h.b16 %v152
  %v1570 = vunpack.c.l.b16 %v153
  %v1571 = vunpack.c.h.b16 %v153
  %v1572 = vunpack.c.l.b16 %v154
  %v1573 = vunpack.c.h.b16 %v154
  %v1574 = vunpack.c.l.b16 %v155
  %v1575 = vunpack.c.h.b16 %v155
  %v1576 = vunpack.c.l.b16 %v156
  %v1577 = vunpack.c.l.b16 %v157
  %v1578 = vunpack.c.h.b16 %v157
  %v1579 = vunpack.c.l.b16 %v158
  %v1580 = vunpack.c.h.b16 %v158
  %v1581 = vunpack.c.l.b16 %v159
  %v1582 = vunpack.c.h.b16 %v159
  %v1583 = vunpack.c.l.b16 %v160
  %v1584 = vunpack.c.h.b16 %v160
  %v1585 = vunpack.c.l.b16 %v161
  %v1586 = vunpack.c.h.b16 %v161
  %v1587 = vunpack.c.l.b16 %v162
  %v1588 = vunpack.c.h.b16 %v162
  %v1589 = vunpack.c.l.b16 %v163
  %v1590 = vunpack.c.h.b16 %v163
  %v1591 = vunpack.c.l.b16 %v164
  %v1592 = vunpack.c.h.b16 %v164
  %v1593 = vunpack.c.l.b16 %v165
  %v1594 = vunpack.c.h.b16 %v165
  %v1595 = vunpack.c.l.b16 %v166
  %v1596 = vunpack.c.h.b16 %v166
  %v1597 = vunpack.c.l.b16 %v167
  %v1598 = vunpack.c.h.b16 %v167
  %v1599 = vunpack.c.l.b16 %v168
  %v1600 = vunpack.c.h.b16 %v168
  %v1601 = vunpack.c.l.b16 %v169
  %v1602 = vunpack.c.h.b16 %v169
  %v1603 = vunpack.c.l.b16 %v170
  %v1604 = vunpack.c.h.b16 %v170
  %v1605 = vunpack.c.l.b16 %v171
  %v1606 = vunpack.c.h.b16 %v171
  %v1607 = vunpack.c.l.b16 %v172
  %v1608 = vunpack.c.h.b16 %v172
  %v1609 = vunpack.c.l.b16 %v173
  %v1610 = vunpack.c.h.b16 %v173
  %v1611 = vunpack.c.l.b16 %v174
  %v1612 = vunpack.c.h.b16 %v174
  %v1613 = vunpack.c.l.b16 %v175
  %v1614 = vunpack.c.h.b16 %v175
  %v1615 = vunpack.c.l.b16 %v176
  %v1616 = vunpack.c.h.b16 %v176
  %v1617 = vunpack.c.l.b16 %v177
  %v1618 = vunpack.c.h.b16 %v177
  %v1619 = vunpack.c.l.b16 %v178
  %v1620 = vunpack.c.h.b16 %v178
  %v1621 = vunpack.c.l.b16 %v179
  %v1622 = vunpack.c.h.b16 %v179
  %v1623 = vunpack.c.l.b16 %v180
  %v1624 = vunpack.c.h.b16 %v180
  %v1625 = vunpack.c.l.b16 %v181
  %v1626 = vunpack.c.h.b16 %v181
  %v1627 = vunpack.c.l.b16 %v182
  %v1628 = vunpack.c.h.b16 %v182
  %v1629 = vunpack.c.l.b16 %v183
  %v1630 = vunpack.c.h.b16 %v183
  %v1631 = vunpack.c.l.b16 %v184
  %v1632 = vunpack.c.h.b16 %v184
  %v1633 = vunpack.c.l.b16 %v185
  %v1634 = vunpack.c.h.b16 %v185
  %v1635 = vunpack.c.l.b16 %v186
  %v1636 = vunpack.c.h.b16 %v186
  %v1637 = vunpack.c.l.b16 %v187
  %v1638 = vunpack.c.h.b16 %v187
  %v1639 = vunpack.c.l.b16 %v188
  %v1640 = vunpack.c.h.b16 %v188
  %v1641 = vunpack.c.l.b16 %v189
  %v1642 = vunpack.c.h.b16 %v189
  %v1643 = vunpack.c.l.b16 %v190
  %v1644 = vunpack.c.h.b16 %v190
  %v1645 = vunpack.c.l.b16 %v191
  %v1646 = vunpack.c.h.b16 %v191
  %v1647 = vunpack.c.l.b16 %v192
  %v1648 = vunpack.c.h.b16 %v192
  %v1649 = vunpack.c.l.b16 %v193
  %v1650 = vunpack.c.h.b16 %v193
  %v1651 = vunpack.c.l.b16 %v194
  %v1652 = vunpack.c.h.b16 %v194
  %v1653 = vunpack.c.l.b16 %v195
  %v1654 = vunpack.c.h.b16 %v195
  %v1655 = vunpack.c.l.b16 %v196
  %v1656 = vunpack.c.h.b16 %v196
  %v1657 = vunpack.c.l.b16 %v197
  %v1658 = vunpack.c.h.b16 %v197
  %v1659 = vunpack.c.l.b16 %v198
  %v1660 = vunpack.c.h.b16 %v198
  %v1661 = vunpack.c.l.b16 %v199
  %v1662 = vunpack.c.h.b16 %v199
  %v1663 = vunpack.c.l.b16 %v200
  %v1664 = vunpack.c.h.b16 %v200
  %v1665 = vunpack.c.l.b16 %v201
  %v1666 = vunpack.c.h.b16 %v201
  %v1667 = vunpack.c.l.b16 %v202
  %v1668 = vunpack.c.h.b16 %v202
  %v1669 = vunpack.c.l.b16 %v203
  %v1670 = vunpack.c.h.b16 %v203
  %v1671 = vunpack.c.l.b16 %v204
  %v1672 = vunpack.c.h.b16 %v204
  %v1673 = vunpack.c.l.b16 %v205
  %v1674 = vunpack.c.h.b16 %v205
  %v1675 = vunpack.c.l.b16 %v206
  %v1676 = vunpack.c.h.b16 %v206
  %v1677 = vunpack.c.l.b16 %v207
  %v1678 = vunpack.c.h.b16 %v207
  %v1679 = vunpack.c.l.b16 %v208
  %v1680 = vunpack.c.h.b16 %v208
  %v1681 = vunpack.c.l.b16 %v209
  %v1682 = vunpack.c.h.b16 %v209
  %v1683 = vunpack.c.l.b16 %v210
  %v1684 = vunpack.c.h.b16 %v210
  %v1685 = vunpack.c.l.b16 %v211
  %v1686 = vunpack.c.h.b16 %v211
  %v1687 = vunpack.c.l.b16 %v212
  %v1688 = vunpack.c.h.b16 %v212
  %v1689 = vunpack.c.l.b16 %v213
  %v1690 = vunpack.c.h.b16 %v213
  %v1691 = vunpack.c.l.b16 %v214
  %v1692 = vunpack.c.h.b16 %v214
  %v1693 = vunpack.c.l.b16 %v215
  %v1694 = vunpack.c.h.b16 %v215
  %v1695 = vunpack.c.l.b16 %v216
  %v1696 = vunpack.c.h.b16 %v216
  %v1697 = vunpack.c.l.b16 %v217
  %v1698 = vunpack.c.h.b16 %v217
  %v1699 = vunpack.c.l.b16 %v218
  %v1700 = vunpack.c.l.b16 %v219
  %v1701 = vunpack.c.h.b16 %v219
  %v1702 = vunpack.c.l.b16 %v220
  %v1703 = vunpack.c.h.b16 %v220
  %v1704 = vunpack.c.l.b16 %v221
  %v1705 = vunpack.c.h.b16 %v221
  %v1706 = vunpack.c.l.b16 %v222
  %v1707 = vunpack.c.h.b16 %v222
  %v1708 = vunpack.c.l.b16 %v223
  %v1709 = vunpack.c.h.b16 %v223
  %v1710 = vunpack.c.l.b16 %v224
  %v1711 = vunpack.c.h.b16 %v224
  %v1712 = vunpack.c.l.b16 %v225
  %v1713 = vunpack.c.h.b16 %v225
  %v1714 = vunpack.c.l.b16 %v226
  %v1715 = vunpack.c.h.b16 %v226
  %v1716 = vunpack.c.l.b16 %v227
  %v1717 = vunpack.c.h.b16 %v227
  %v1718 = vunpack.c.l.b16 %v228
  %v1719 = vunpack.c.h.b16 %v228
  %v1720 = vunpack.c.l.b16 %v229
  %v1721 = vunpack.c.h.b16 %v229
  %v1722 = vunpack.c.l.b16 %v230
  %v1723 = vunpack.c.h.b16 %v230
  %v1724 = vunpack.c.l.b16 %v231
  %v1725 = vunpack.c.h.b16 %v231
  %v1726 = vunpack.c.l.b16 %v232
  %v1727 = vunpack.c.h.b16 %v232
  %v1728 = vunpack.c.l.b16 %v233
  %v1729 = vunpack.c.h.b16 %v233
  %v1730 = vunpack.c.l.b16 %v234
  %v1731 = vunpack.c.h.b16 %v234
  %v1732 = vunpack.c.l.b16 %v235
  %v1733 = vunpack.c.h.b16 %v235
  %v1734 = vunpack.c.l.b16 %v236
  %v1735 = vunpack.c.h.b16 %v236
  %v1736 = vunpack.c.l.b16 %v237
  %v1737 = vunpack.c.h.b16 %v237
  %v1738 = vunpack.c.l.b16 %v238
  %v1739 = vunpack.c.h.b16 %v238
  %v1740 = vunpack.c.l.b16 %v239
  %v1741 = vunpack.c.h.b16 %v239
  %v1742 = vunpack.c.l.b16 %v240
  %v1743 = vunpack.c.h.b16 %v240
  %v1744 = vunpack.c.l.b16 %v241
  %v1745 = vunpack.c.h.b16 %v241
  %v1746 = vunpack.c.l.b16 %v242
  %v1747 = vunpack.c.h.b16 %v242
  %v1748 = vunpack.c.l.b16 %v243
  %v1749 = vunpack.c.h.b16 %v243
  %v1750 = vunpack.c.l.b16 %v244
  %v1751 = vunpack.c.h.b16 %v244
  %v1752 = vunpack.c.l.b16 %v245
  %v1753 = vunpack.c.h.b16 %v245
  %v1754 = vunpack.c.l.b16 %v246
  %v1755 = vunpack.c.h.b16 %v246
  %v1756 = vunpack.c.l.b16 %v247
  %v1757 = vunpack.c.h.b16 %v247
  %v1758 = vunpack.c.l.b16 %v248
  %v1759 = vunpack.c.h.b16 %v248
  %v1760 = vunpack.c.l.b16 %v249
  %v1761 = vunpack.c.h.b16 %v249
  %v1762 = vunpack.c.l.b16 %v250
  %v1763 = vunpack.c.h.b16 %v250
  %v1764 = vunpack.c.l.b16 %v251
  %v1765 = vunpack.c.h.b16 %v251
  %v1766 = vunpack.c.l.b16 %v252
  %v1767 = vunpack.c.h.b16 %v252
  %v1768 = vunpack.c.l.b16 %v253
  %v1769 = vunpack.c.h.b16 %v253
  %v1770 = vunpack.c.l.b16 %v254
  %v1771 = vunpack.c.h.b16 %v254
  %v1772 = vunpack.c.l.b16 %v255
  %v1773 = vunpack.c.h.b16 %v255
  %v1774 = vunpack.c.l.b16 %v256
  %v1775 = vunpack.c.h.b16 %v256
  %v1776 = vunpack.c.l.b16 %v257
  %v1777 = vunpack.c.h.b16 %v257
  %v1778 = vunpack.c.l.b16 %v258
  %v1779 = vunpack.c.h.b16 %v258
  %v1780 = vunpack.c.l.b16 %v259
  %v1781 = vunpack.c.h.b16 %v259
  %v1782 = vunpack.c.l.b16 %v260
  %v1783 = vunpack.c.h.b16 %v260
  %v1784 = vunpack.c.l.b16 %v261
  %v1785 = vunpack.c.h.b16 %v261
  %v1786 = vunpack.c.l.b16 %v262
  %v1787 = vunpack.c.h.b16 %v262
  %v1788 = vunpack.c.l.b16 %v263
  %v1789 = vunpack.c.h.b16 %v263
  %v1790 = vunpack.c.l.b16 %v264
  %v1791 = vunpack.c.h.b16 %v264
  %v1792 = vunpack.c.l.b16 %v265
  %v1793 = vunpack.c.h.b16 %v265
  %v1794 = vunpack.c.l.b16 %v266
  %v1795 = vunpack.c.h.b16 %v266
  %v1796 = vunpack.c.l.b16 %v267
  %v1797 = vunpack.c.h.b16 %v267
  %v1798 = vunpack.c.l.b16 %v268
  %v1799 = vunpack.c.h.b16 %v268
  %v1800 = vunpack.c.l.b16 %v269
  %v1801 = vunpack.c.h.b16 %v269
  %v1802 = vunpack.c.l.b16 %v270
  %v1803 = vunpack.c.h.b16 %v270
  %v1804 = vunpack.c.l.b16 %v271
  %v1805 = vunpack.c.h.b16 %v271
  %v1806 = vunpack.c.l.b16 %v272
  %v1807 = vunpack.c.h.b16 %v272
  %v1808 = vunpack.c.l.b16 %v273
  %v1809 = vunpack.c.h.b16 %v273
  %v1810 = vunpack.c.l.b16 %v274
  %v1811 = vunpack.c.h.b16 %v274
  %v1812 = vunpack.c.l.b16 %v275
  %v1813 = vunpack.c.h.b16 %v275
  %v1814 = vunpack.c.l.b16 %v276
  %v1815 = vunpack.c.h.b16 %v276
  %v1816 = vunpack.c.l.b16 %v277
  %v1817 = vunpack.c.h.b16 %v277
  %v1818 = vunpack.c.l.b16 %v278
  %v1819 = vunpack.c.h.b16 %v278
  %v1820 = vunpack.c.l.b16 %v279
  %v1821 = vunpack.c.h.b16 %v279
  %v1822 = vunpack.c.l.b16 %v280
  %v1823 = vunpack.c.l.b16 %v281
  %v1824 = vunpack.c.h.b16 %v281
  %v1825 = vunpack.c.l.b16 %v282
  %v1826 = vunpack.c.h.b16 %v282
  %v1827 = vunpack.c.l.b16 %v283
  %v1828 = vunpack.c.h.b16 %v283
  %v1829 = vunpack.c.l.b16 %v284
  %v1830 = vunpack.c.h.b16 %v284
  %v1831 = vunpack.c.l.b16 %v285
  %v1832 = vunpack.c.h.b16 %v285
  %v1833 = vunpack.c.l.b16 %v286
  %v1834 = vunpack.c.h.b16 %v286
  %v1835 = vunpack.c.l.b16 %v287
  %v1836 = vunpack.c.h.b16 %v287
  %v1837 = vunpack.c.l.b16 %v288
  %v1838 = vunpack.c.h.b16 %v288
  %v1839 = vunpack.c.l.b16 %v289
  %v1840 = vunpack.c.h.b16 %v289
  %v1841 = vunpack.c.l.b16 %v290
  %v1842 = vunpack.c.h.b16 %v290
  %v1843 = vunpack.c.l.b16 %v291
  %v1844 = vunpack.c.h.b16 %v291
  %v1845 = vunpack.c.l.b16 %v292
  %v1846 = vunpack.c.h.b16 %v292
  %v1847 = vunpack.c.l.b16 %v293
  %v1848 = vunpack.c.h.b16 %v293
  %v1849 = vunpack.c.l.b16 %v294
  %v1850 = vunpack.c.h.b16 %v294
  %v1851 = vunpack.c.l.b16 %v295
  %v1852 = vunpack.c.h.b16 %v295
  %v1853 = vunpack.c.l.b16 %v296
  %v1854 = vunpack.c.h.b16 %v296
  %v1855 = vunpack.c.l.b16 %v297
  %v1856 = vunpack.c.h.b16 %v297
  %v1857 = vunpack.c.l.b16 %v298
  %v1858 = vunpack.c.h.b16 %v298
  %v1859 = vunpack.c.l.b16 %v299
  %v1860 = vunpack.c.h.b16 %v299
  %v1861 = vunpack.c.l.b16 %v300
  %v1862 = vunpack.c.h.b16 %v300
  %v1863 = vunpack.c.l.b16 %v301
  %v1864 = vunpack.c.h.b16 %v301
  %v1865 = vunpack.c.l.b16 %v302
  %v1866 = vunpack.c.h.b16 %v302
  %v1867 = vunpack.c.l.b16 %v303
  %v1868 = vunpack.c.h.b16 %v303
  %v1869 = vunpack.c.l.b16 %v304
  %v1870 = vunpack.c.h.b16 %v304
  %v1871 = vunpack.c.l.b16 %v305
  %v1872 = vunpack.c.h.b16 %v305
  %v1873 = vunpack.c.l.b16 %v306
  %v1874 = vunpack.c.h.b16 %v306
  %v1875 = vunpack.c.l.b16 %v307
  %v1876 = vunpack.c.h.b16 %v307
  %v1877 = vunpack.c.l.b16 %v308
  %v1878 = vunpack.c.h.b16 %v308
  %v1879 = vunpack.c.l.b16 %v309
  %v1880 = vunpack.c.h.b16 %v309
  %v1881 = vunpack.c.l.b16 %v310
  %v1882 = vunpack.c.h.b16 %v310
  %v1883 = vunpack.c.l.b16 %v311
  %v1884 = vunpack.c.h.b16 %v311
  %v1885 = vunpack.c.l.b16 %v312
  %v1886 = vunpack.c.h.b16 %v312
  %v1887 = vunpack.c.l.b16 %v313
  %v1888 = vunpack.c.h.b16 %v313
  %v1889 = vunpack.c.l.b16 %v314
  %v1890 = vunpack.c.h.b16 %v314
  %v1891 = vunpack.c.l.b16 %v315
  %v1892 = vunpack.c.h.b16 %v315
  %v1893 = vunpack.c.l.b16 %v316
  %v1894 = vunpack.c.h.b16 %v316
  %v1895 = vunpack.c.l.b16 %v317
  %v1896 = vunpack.c.h.b16 %v317
  %v1897 = vunpack.c.l.b16 %v318
  %v1898 = vunpack.c.h.b16 %v318
  %v1899 = vunpack.c.l.b16 %v319
  %v1900 = vunpack.c.h.b16 %v319
  %v1901 = vunpack.c.l.b16 %v320
  %v1902 = vunpack.c.h.b16 %v320
  %v1903 = vunpack.c.l.b16 %v321
  %v1904 = vunpack.c.h.b16 %v321
  %v1905 = vunpack.c.l.b16 %v322
  %v1906 = vunpack.c.h.b16 %v322
  %v1907 = vunpack.c.l.b16 %v323
  %v1908 = vunpack.c.h.b16 %v323
  %v1909 = vunpack.c.l.b16 %v324
  %v1910 = vunpack.c.h.b16 %v324
  %v1911 = vunpack.c.l.b16 %v325
  %v1912 = vunpack.c.h.b16 %v325
  %v1913 = vunpack.c.l.b16 %v326
  %v1914 = vunpack.c.h.b16 %v326
  %v1915 = vunpack.c.l.b16 %v327
  %v1916 = vunpack.c.h.b16 %v327
  %v1917 = vunpack.c.l.b16 %v328
  %v1918 = vunpack.c.h.b16 %v328
  %v1919 = vunpack.c.l.b16 %v329
  %v1920 = vunpack.c.h.b16 %v329
  %v1921 = vunpack.c.l.b16 %v330
  %v1922 = vunpack.c.h.b16 %v330
  %v1923 = vunpack.c.l.b16 %v331
  %v1924 = vunpack.c.h.b16 %v331
  %v1925 = vunpack.c.l.b16 %v332
  %v1926 = vunpack.c.h.b16 %v332
  %v1927 = vunpack.c.l.b16 %v333
  %v1928 = vunpack.c.h.b16 %v333
  %v1929 = vunpack.c.l.b16 %v334
  %v1930 = vunpack.c.h.b16 %v334
  %v1931 = vunpack.c.l.b16 %v335
  %v1932 = vunpack.c.h.b16 %v335
  %v1933 = vunpack.c.l.b16 %v336
  %v1934 = vunpack.c.h.b16 %v336
  %v1935 = vunpack.c.l.b16 %v337
  %v1936 = vunpack.c.h.b16 %v337
  %v1937 = vunpack.c.l.b16 %v338
  %v1938 = vunpack.c.h.b16 %v338
  %v1939 = vunpack.c.l.b16 %v339
  %v1940 = vunpack.c.h.b16 %v339
  %v1941 = vunpack.c.l.b16 %v340
  %v1942 = vunpack.c.h.b16 %v340
  %v1943 = vunpack.c.l.b16 %v341
  %v1944 = vunpack.c.h.b16 %v341
  %v1945 = vunpack.c.l.b16 %v342
  %v1946 = vpack.c.b16 %v1577, %v1454
  %v1947 = vpack.c.b16 %v1578, %v1455
  %v1948 = vpack.c.b16 %v1579, %v1456
  %v1949 = vpack.c.b16 %v1580, %v1457
  %v1950 = vpack.c.b16 %v1581, %v1458
  %v1951 = vpack.c.b16 %v1582, %v1459
  %v1952 = vpack.c.b16 %v1583, %v1460
  %v1953 = vpack.c.b16 %v1584, %v1461
  %v1954 = vpack.c.b16 %v1585, %v1462
  %v1955 = vpack.c.b16 %v1586, %v1463
  %v1956 = vpack.c.b16 %v1587, %v1464
  %v1957 = vpack.c.b16 %v1588, %v1465
  %v1958 = vpack.c.b16 %v1589, %v1466
  %v1959 = vpack.c.b16 %v1590, %v1467
  %v1960 = vpack.c.b16 %v1591, %v1468
  %v1961 = vpack.c.b16 %v1592, %v1469
  %v1962 = vpack.c.b16 %v1593, %v1470
  %v1963 = vpack.c.b16 %v1594, %v1471
  %v1964 = vpack.c.b16 %v1595, %v1472
  %v1965 = vpack.c.b16 %v1596, %v1473
  %v1966 = vpack.c.b16 %v1597, %v1474
  %v1967 = vpack.c.b16 %v1598, %v1475
  %v1968 = vpack.c.b16 %v1599, %v1476
  %v1969 = vpack.c.b16 %v1600, %v1477
  %v1970 = vpack.c.b16 %v1601, %v1478
  %v1971 = vpack.c.b16 %v1602, %v1479
  %v1972 = vpack.c.b16 %v1603, %v1480
  %v1973 = vpack.c.b16 %v1604, %v1481
  %v1974 = vpack.c.b16 %v1605, %v1482
  %v1975 = vpack.c.b16 %v1606, %v1483
  %v1976 = vpack.c.b16 %v1607, %v1484
  %v1977 = vpack.c.b16 %v1608, %v1485
  %v1978 = vpack.c.b16 %v1609, %v1486
  %v1979 = vpack.c.b16 %v1610, %v1487
  %v1980 = vpack.c.b16 %v1611, %v1488
  %v1981 = vpack.c.b16 %v1612, %v1489
  %v1982 = vpack.c.b16 %v1613, %v1490
  %v1983 = vpack.c.b16 %v1614, %v1491
  %v1984 = vpack.c.b16 %v1615, %v1492
  %v1985 = vpack.c.b16 %v1616, %v1493
  %v1986 = vpack.c.b16 %v1617, %v1494
  %v1987 = vpack.c.b16 %v1618, %v1495
  %v1988 = vpack.c.b16 %v1619, %v1496
  %v1989 = vpack.c.b16 %v1620, %v1497
  %v1990 = vpack.c.b16 %v1621, %v1498
  %v1991 = vpack.c.b16 %v1622, %v1499
  %v1992 = vpack.c.b16 %v1623, %v1500
  %v1993 = vpack.c.b16 %v1624, %v1501
  %v1994 = vpack.c.b16 %v1625, %v1502
  %v1995 = vpack.c.b16 %v1626, %v1503
  %v1996 = vpack.c.b16 %v1627, %v1504
  %v1997 = vpack.c.b16 %v1628, %v1505
  %v1998 = vpack.c.b16 %v1629, %v1506
  %v1999 = vpack.c.b16 %v1630, %v1507
  %v2000 = vpack.c.b16 %v1631, %v1508
  %v2001 = vpack.c.b16 %v1632, %v1509
  %v2002 = vpack.c.b16 %v1633, %v1510
  %v2003 = vpack.c.b16 %v1634, %v1511
  %v2004 = vpack.c.b16 %v1635, %v1512
  %v2005 = vpack.c.b16 %v1636, %v1513
  %v2006 = vpack.c.b16 %v1637, %v1514
  %v2007 = vpack.c.b16 %v1638, %v1515
  %v2008 = vpack.c.b16 %v1639, %v1516
  %v2009 = vpack.c.b16 %v1640, %v1517
  %v2010 = vpack.c.b16 %v1641, %v1518
  %v2011 = vpack.c.b16 %v1642, %v1519
  %v2012 = vpack.c.b16 %v1643, %v1520
  %v2013 = vpack.c.b16 %v1644, %v1521
  %v2014 = vpack.c.b16 %v1645, %v1522
  %v2015 = vpack.c.b16 %v1646, %v1523
  %v2016 = vpack.c.b16 %v1647, %v1524
  %v2017 = vpack.c.b16 %v1648, %v1525
  %v2018 = vpack.c.b16 %v1649, %v1526
  %v2019 = vpack.c.b16 %v1650, %v1527
  %v2020 = vpack.c.b16 %v1651, %v1528
  %v2021 = vpack.c.b16 %v1652, %v1529
  %v2022 = vpack.c.b16 %v1653, %v1530
  %v2023 = vpack.c.b16 %v1654, %v1531
  %v2024 = vpack.c.b16 %v1655, %v1532
  %v2025 = vpack.c.b16 %v1656, %v1533
  %v2026 = vpack.c.b16 %v1657, %v1534
  %v2027 = vpack.c.b16 %v1658, %v1535
  %v2028 = vpack.c.b16 %v1659, %v1536
  %v2029 = vpack.c.b16 %v1660, %v1537
  %v2030 = vpack.c.b16 %v1661, %v1538
  %v2031 = vpack.c.b16 %v1662, %v1539
  %v2032 = vpack.c.b16 %v1663, %v1540
  %v2033 = vpack.c.b16 %v1664, %v1541
  %v2034 = vpack.c.b16 %v1665, %v1542
  %v2035 = vpack.c.b16 %v1666, %v1543
  %v2036 = vpack.c.b16 %v1667, %v1544
  %v2037 = vpack.c.b16 %v1668, %v1545
  %v2038 = vpack.c.b16 %v1669, %v1546
  %v2039 = vpack.c.b16 %v1670, %v1547
  %v2040 = vpack.c.b16 %v1671, %v1548
  %v2041 = vpack.c.b16 %v1672, %v1549
  %v2042 = vpack.c.b16 %v1673, %v1550
  %v2043 = vpack.c.b16 %v1674, %v1551
  %v2044 = vpack.c.b16 %v1675, %v1552
  %v2045 = vpack.c.b16 %v1676, %v1553
  %v2046 = vpack.c.b16 %v1677, %v1554
  %v2047 = vpack.c.b16 %v1678, %v1555
  %v2048 = vpack.c.b16 %v1679, %v1556
  %v2049 = vpack.c.b16 %v1680, %v1557
  %v2050 = vpack.c.b16 %v1681, %v1558
  %v2051 = vpack.c.b16 %v1682, %v1559
  %v2052 = vpack.c.b16 %v1683, %v1560
  %v2053 = vpack.c.b16 %v1684, %v1561
  %v2054 = vpack.c.b16 %v1685, %v1562
  %v2055 = vpack.c.b16 %v1686, %v1563
  %v2056 = vpack.c.b16 %v1687, %v1564
  %v2057 = vpack.c.b16 %v1688, %v1565
  %v2058 = vpack.c.b16 %v1689, %v1566
  %v2059 = vpack.c.b16 %v1690, %v1567
  %v2060 = vpack.c.b16 %v1691, %v1568
  %v2061 = vpack.c.b16 %v1692, %v1569
  %v2062 = vpack.c.b16 %v1693, %v1570
  %v2063 = vpack.c.b16 %v1694, %v1571
  %v2064 = vpack.c.b16 %v1695, %v1572
  %v2065 = vpack.c.b16 %v1696, %v1573
  %v2066 = vpack.c.b16 %v1697, %v1574
  %v2067 = vpack.c.b16 %v1698, %v1575
  %v2068 = vpack.c.b16 %v1699, %v1576
  %v2069 = vpack.c.b16 %v1823, %v1700
  %v2070 = vpack.c.b16 %v1824, %v1701
  %v2071 = vpack.c.b16 %v1825, %v1702
  %v2072 = vpack.c.b16 %v1826, %v1703
  %v2073 = vpack.c.b16 %v1827, %v1704
  %v2074 = vpack.c.b16 %v1828, %v1705
  %v2075 = vpack.c.b16 %v1829, %v1706
  %v2076 = vpack.c.b16 %v1830, %v1707
  %v2077 = vpack.c.b16 %v1831, %v1708
  %v2078 = vpack.c.b16 %v1832, %v1709
  %v2079 = vpack.c.b16 %v1833, %v1710
  %v2080 = vpack.c.b16 %v1834, %v1711
  %v2081 = vpack.c.b16 %v1835, %v1712
  %v2082 = vpack.c.b16 %v1836, %v1713
  %v2083 = vpack.c.b16 %v1837, %v1714
  %v2084 = vpack.c.b16 %v1838, %v1715
  %v2085 = vpack.c.b16 %v1839, %v1716
  %v2086 = vpack.c.b16 %v1840, %v1717
  %v2087 = vpack.c.b16 %v1841, %v1718
  %v2088 = vpack.c.b16 %v1842, %v1719
  %v2089 = vpack.c.b16 %v1843, %v1720
  %v2090 = vpack.c.b16 %v1844, %v1721
  %v2091 = vpack.c.b16 %v1845, %v1722
  %v2092 = vpack.c.b16 %v1846, %v1723
  %v2093 = vpack.c.b16 %v1847, %v1724
  %v2094 = vpack.c.b16 %v1848, %v1725
  %v2095 = vpack.c.b16 %v1849, %v1726
  %v2096 = vpack.c.b16 %v1850, %v1727
  %v2097 = vpack.c.b16 %v1851, %v1728
  %v2098 = vpack.c.b16 %v1852, %v1729
  %v2099 = vpack.c.b16 %v1853, %v1730
  %v2100 = vpack.c.b16 %v1854, %v1731
  %v2101 = vpack.c.b16 %v1855, %v1732
  %v2102 = vpack.c.b16 %v1856, %v1733
  %v2103 = vpack.c.b16 %v1857, %v1734
  %v2104 = vpack.c.b16 %v1858, %v1735
  %v2105 = vpack.c.b16 %v1859, %v1736
  %v2106 = vpack.c.b16 %v1860, %v1737
  %v2107 = vpack.c.b16 %v1861, %v1738
  %v2108 = vpack.c.b16 %v1862, %v1739
  %v2109 = vpack.c.b16 %v1863, %v1740
  %v2110 = vpack.c.b16 %v1864, %v1741
  %v2111 = vpack.c.b16 %v1865, %v1742
  %v2112 = vpack.c.b16 %v1866, %v1743
  %v2113 = vpack.c.b16 %v1867, %v1744
  %v2114 = vpack.c.b16 %v1868, %v1745
  %v2115 = vpack.c.b16 %v1869, %v1746
  %v2116 = vpack.c.b16 %v1870, %v1747
  %v2117 = vpack.c.b16 %v1871, %v1748
  %v2118 = vpack.c.b16 %v1872, %v1749
  %v2119 = vpack.c.b16 %v1873, %v1750
  %v2120 = vpack.c.b16 %v1874, %v1751
  %v2121 = vpack.c.b16 %v1875, %v1752
  %v2122 = vpack.c.b16 %v1876, %v1753
  %v2123 = vpack.c.b16 %v1877, %v1754
  %v2124 = vpack.c.b16 %v1878, %v1755
  %v2125 = vpack.c.b16 %v1879, %v1756
  %v2126 = vpack.c.b16 %v1880, %v1757
  %v2127 = vpack.c.b16 %v1881, %v1758
  %v2128 = vpack.c.b16 %v1882, %v1759
  %v2129 = vpack.c.b16 %v1883, %v1760
  %v2130 = vpack.c.b16 %v1884, %v1761
  %v2131 = vpack.c.b16 %v1885, %v1762
  %v2132 = vpack.c.b16 %v1886, %v1763
  %v2133 = vpack.c.b16 %v1887, %v1764
  %v2134 = vpack.c.b16 %v1888, %v1765
  %v2135 = vpack.c.b16 %v1889, %v1766
  %v2136 = vpack.c.b16 %v1890, %v1767
  %v2137 = vpack.c.b16 %v1891, %v1768
  %v2138 = vpack.c.b16 %v1892, %v1769
  %v2139 = vpack.c.b16 %v1893, %v1770
  %v2140 = vpack.c.b16 %v1894, %v1771
  %v2141 = vpack.c.b16 %v1895, %v1772
  %v2142 = vpack.c.b16 %v1896, %v1773
  %v2143 = vpack.c.b16 %v1897, %v1774
  %v2144 = vpack.c.b16 %v1898, %v1775
  %v2145 = vpack.c.b16 %v1899, %v1776
  %v2146 = vpack.c.b16 %v1900, %v1777
  %v2147 = vpack.c.b16 %v1901, %v1778
  %v2148 = vpack.c.b16 %v1902, %v1779
  %v2149 = vpack.c.b16 %v1903, %v1780
  %v2150 = vpack.c.b16 %v1904, %v1781
  %v2151 = vpack.c.b16 %v1905, %v1782
  %v2152 = vpack.c.b16 %v1906, %v1783
  %v2153 = vpack.c.b16 %v1907, %v1784
  %v2154 = vpack.c.b16 %v1908, %v1785
  %v2155 = vpack.c.b16 %v1909, %v1786
  %v2156 = vpack.c.b16 %v1910, %v1787
  %v2157 = vpack.c.b16 %v1911, %v1788
  %v2158 = vpack.c.b16 %v1912, %v1789
  %v2159 = vpack.c.b16 %v1913, %v1790
  %v2160 = vpack.c.b16 %v1914, %v1791
  %v2161 = vpack.c.b16 %v1915, %v1792
  %v2162 = vpack.c.b16 %v1916, %v1793
  %v2163 = vpack.c.b16 %v1917, %v1794
  %v2164 = vpack.c.b16 %v1918, %v1795
  %v2165 = vpack.c.b16 %v1919, %v1796
  %v2166 = vpack.c.b16 %v1920, %v1797
  %v2167 = vpack.c.b16 %v1921, %v1798
  %v2168 = vpack.c.b16 %v1922, %v1799
  %v2169 = vpack.c.b16 %v1923, %v1800
  %v2170 = vpack.c.b16 %v1924, %v1801
  %v2171 = vpack.c.b16 %v1925, %v1802
  %v2172 = vpack.c.b16 %v1926, %v1803
  %v2173 = vpack.c.b16 %v1927, %v1804
  %v2174 = vpack.c.b16 %v1928, %v1805
  %v2175 = vpack.c.b16 %v1929, %v1806
  %v2176 = vpack.c.b16 %v1930, %v1807
  %v2177 = vpack.c.b16 %v1931, %v1808
  %v2178 = vpack.c.b16 %v1932, %v1809
  %v2179 = vpack.c.b16 %v1933, %v1810
  %v2180 = vpack.c.b16 %v1934, %v1811
  %v2181 = vpack.c.b16 %v1935, %v1812
  %v2182 = vpack.c.b16 %v1936, %v1813
  %v2183 = vpack.c.b16 %v1937, %v1814
  %v2184 = vpack.c.b16 %v1938, %v1815
  %v2185 = vpack.c.b16 %v1939, %v1816
  %v2186 = vpack.c.b16 %v1940, %v1817
  %v2187 = vpack.c.b16 %v1941, %v1818
  %v2188 = vpack.c.b16 %v1942, %v1819
  %v2189 = vpack.c.b16 %v1943, %v1820
  %v2190 = vpack.c.b16 %v1944, %v1821
  %v2191 = vpack.c.b16 %v1945, %v1822
  %2438 = vmatprep.subr.bf16.mxu0 %v1947
  %2439 = vmatpush1.bf16.xpose.msra.mxu0 %v1946
  %2440 = vmatprep.subr.bf16.mxu0 %v2070
  %2441 = vmatpush1.bf16.xpose.msra.mxu0 %v2069
  %2442 = vmatprep.subr.bf16.mxu0 0
  %2443 = vmatpush1.bf16.xpose.msra.mxu0 0
  %2444 = vmatprep.subr.bf16.mxu0 0
  %2445 = vmatpush1.bf16.xpose.msra.mxu0 0
  %2446 = vmatprep.subr.bf16.mxu0 0
  %2447 = vmatpush1.bf16.xpose.msra.mxu0 0
  %2448 = vmatprep.subr.bf16.mxu0 0
  %2449 = vmatpush1.bf16.xpose.msra.mxu0 0
  %2450 = vmatprep.subr.bf16.mxu0 0
  %2451 = vmatpush1.bf16.xpose.msra.mxu0 0
  %2452 = vmatprep.subr.bf16.mxu0 0
  %2453 = vmatpush1.bf16.xpose.msra.mxu0 0
  %2454 = vmatprep.subr.bf16.mxu0 0
  %2455 = vmatpush1.bf16.xpose.msra.mxu0 0
  %2456 = vmatprep.subr.bf16.mxu0 0
  %2457 = vmatpush1.bf16.xpose.msra.mxu0 0
  %2458 = vmatprep.subr.bf16.mxu0 0
  %2459 = vmatpush1.bf16.xpose.msra.mxu0 0
  %2460 = vmatprep.subr.bf16.mxu0 0
  %2461 = vmatpush1.bf16.xpose.msra.mxu0 0
  %2462 = vmatprep.subr.bf16.mxu0 0
  %2463 = vmatpush1.bf16.xpose.msra.mxu0 0
  %2464 = vmatprep.subr.bf16.mxu0 0
  %2465 = vmatpush1.bf16.xpose.msra.mxu0 0
  %2466 = vmatprep.subr.bf16.mxu0 0
  %2467 = vmatpush1.bf16.xpose.msra.mxu0 0
  %2468 = vmatprep.subr.bf16.mxu0 0
  %2469 = vmatpush1.bf16.xpose.msra.mxu0 0
  %2470 = vmatprep.mubr.bf16.mxu0 %v961
  %2471 = vmatmul.mubr.bf16.gmra.mrb[0].mxu0 %v960
  %v2472 = vpop.f32.mrb[0].mxu0
  %v2473 = vadd.f32 %v770, %v2472
  %v2474 = vpop.f32.mrb[0].mxu0
  %v2475 = vpop.f32.mrb[0].mxu0
  %v2476 = vpop.f32.mrb[0].mxu0
  %2477 = vdwg.mxu0
  %2478 = vmatprep.subr.bf16.mxu0 %v1949
  %2479 = vmatpush1.bf16.xpose.msra.mxu0 %v1948
  %2480 = vmatprep.subr.bf16.mxu0 %v2072
  %2481 = vmatpush1.bf16.xpose.msra.mxu0 %v2071
  %2482 = vmatprep.subr.bf16.mxu0 0
  %2483 = vmatpush1.bf16.xpose.msra.mxu0 0
  %2484 = vmatprep.subr.bf16.mxu0 0
  %2485 = vmatpush1.bf16.xpose.msra.mxu0 0
  %2486 = vmatprep.subr.bf16.mxu0 0
  %2487 = vmatpush1.bf16.xpose.msra.mxu0 0
  %2488 = vmatprep.subr.bf16.mxu0 0
  %2489 = vmatpush1.bf16.xpose.msra.mxu0 0
  %2490 = vmatprep.subr.bf16.mxu0 0
  %2491 = vmatpush1.bf16.xpose.msra.mxu0 0
  %2492 = vmatprep.subr.bf16.mxu0 0
  %2493 = vmatpush1.bf16.xpose.msra.mxu0 0
  %2494 = vmatprep.subr.bf16.mxu0 0
  %2495 = vmatpush1.bf16.xpose.msra.mxu0 0
  %2496 = vmatprep.subr.bf16.mxu0 0
  %2497 = vmatpush1.bf16.xpose.msra.mxu0 0
  %2498 = vmatprep.subr.bf16.mxu0 0
  %2499 = vmatpush1.bf16.xpose.msra.mxu0 0
  %2500 = vmatprep.subr.bf16.mxu0 0
  %2501 = vmatpush1.bf16.xpose.msra.mxu0 0
  %2502 = vmatprep.subr.bf16.mxu0 0
  %2503 = vmatpush1.bf16.xpose.msra.mxu0 0
  %2504 = vmatprep.subr.bf16.mxu0 0
  %2505 = vmatpush1.bf16.xpose.msra.mxu0 0
  %2506 = vmatprep.subr.bf16.mxu0 0
  %2507 = vmatpush1.bf16.xpose.msra.mxu0 0
  %2508 = vmatprep.subr.bf16.mxu0 0
  %2509 = vmatpush1.bf16.xpose.msra.mxu0 0
  %2510 = vmatprep.mubr.bf16.mxu0 %v963
  %2511 = vmatmul.mubr.bf16.gmra.mrb[0].mxu0 %v962
  %v2512 = vpop.f32.mrb[0].mxu0
  %v2513 = vadd.f32 %v2473, %v2512
  %v2514 = vpop.f32.mrb[0].mxu0
  %v2515 = vpop.f32.mrb[0].mxu0
  %v2516 = vpop.f32.mrb[0].mxu0
  %2517 = vdwg.mxu0
  %2518 = vmatprep.subr.bf16.mxu0 %v1951
  %2519 = vmatpush1.bf16.xpose.msra.mxu0 %v1950
  %2520 = vmatprep.subr.bf16.mxu0 %v2074
  %2521 = vmatpush1.bf16.xpose.msra.mxu0 %v2073
  %2522 = vmatprep.subr.bf16.mxu0 0
  %2523 = vmatpush1.bf16.xpose.msra.mxu0 0
  %2524 = vmatprep.subr.bf16.mxu0 0
  %2525 = vmatpush1.bf16.xpose.msra.mxu0 0
  %2526 = vmatprep.subr.bf16.mxu0 0
  %2527 = vmatpush1.bf16.xpose.msra.mxu0 0
  %2528 = vmatprep.subr.bf16.mxu0 0
  %2529 = vmatpush1.bf16.xpose.msra.mxu0 0
  %2530 = vmatprep.subr.bf16.mxu0 0
  %2531 = vmatpush1.bf16.xpose.msra.mxu0 0
  %2532 = vmatprep.subr.bf16.mxu0 0
  %2533 = vmatpush1.bf16.xpose.msra.mxu0 0
  %2534 = vmatprep.subr.bf16.mxu0 0
  %2535 = vmatpush1.bf16.xpose.msra.mxu0 0
  %2536 = vmatprep.subr.bf16.mxu0 0
  %2537 = vmatpush1.bf16.xpose.msra.mxu0 0
  %2538 = vmatprep.subr.bf16.mxu0 0
  %2539 = vmatpush1.bf16.xpose.msra.mxu0 0
  %2540 = vmatprep.subr.bf16.mxu0 0
  %2541 = vmatpush1.bf16.xpose.msra.mxu0 0
  %2542 = vmatprep.subr.bf16.mxu0 0
  %2543 = vmatpush1.bf16.xpose.msra.mxu0 0
  %2544 = vmatprep.subr.bf16.mxu0 0
  %2545 = vmatpush1.bf16.xpose.msra.mxu0 0
  %2546 = vmatprep.subr.bf16.mxu0 0
  %2547 = vmatpush1.bf16.xpose.msra.mxu0 0
  %2548 = vmatprep.subr.bf16.mxu0 0
  %2549 = vmatpush1.bf16.xpose.msra.mxu0 0
  %2550 = vmatprep.mubr.bf16.mxu0 %v965
  %2551 = vmatmul.mubr.bf16.gmra.mrb[0].mxu0 %v964
  %v2552 = vpop.f32.mrb[0].mxu0
  %v2553 = vadd.f32 %v2513, %v2552
  %v2554 = vpop.f32.mrb[0].mxu0
  %v2555 = vpop.f32.mrb[0].mxu0
  %v2556 = vpop.f32.mrb[0].mxu0
  %2557 = vdwg.mxu0
  %2558 = vmatprep.subr.bf16.mxu0 %v1953
  %2559 = vmatpush1.bf16.xpose.msra.mxu0 %v1952
  %2560 = vmatprep.subr.bf16.mxu0 %v2076
  %2561 = vmatpush1.bf16.xpose.msra.mxu0 %v2075
  %2562 = vmatprep.subr.bf16.mxu0 0
  %2563 = vmatpush1.bf16.xpose.msra.mxu0 0
  %2564 = vmatprep.subr.bf16.mxu0 0
  %2565 = vmatpush1.bf16.xpose.msra.mxu0 0
  %2566 = vmatprep.subr.bf16.mxu0 0
  %2567 = vmatpush1.bf16.xpose.msra.mxu0 0
  %2568 = vmatprep.subr.bf16.mxu0 0
  %2569 = vmatpush1.bf16.xpose.msra.mxu0 0
  %2570 = vmatprep.subr.bf16.mxu0 0
  %2571 = vmatpush1.bf16.xpose.msra.mxu0 0
  %2572 = vmatprep.subr.bf16.mxu0 0
  %2573 = vmatpush1.bf16.xpose.msra.mxu0 0
  %2574 = vmatprep.subr.bf16.mxu0 0
  %2575 = vmatpush1.bf16.xpose.msra.mxu0 0
  %2576 = vmatprep.subr.bf16.mxu0 0
  %2577 = vmatpush1.bf16.xpose.msra.mxu0 0
  %2578 = vmatprep.subr.bf16.mxu0 0
  %2579 = vmatpush1.bf16.xpose.msra.mxu0 0
  %2580 = vmatprep.subr.bf16.mxu0 0
  %2581 = vmatpush1.bf16.xpose.msra.mxu0 0
  %2582 = vmatprep.subr.bf16.mxu0 0
  %2583 = vmatpush1.bf16.xpose.msra.mxu0 0
  %2584 = vmatprep.subr.bf16.mxu0 0
  %2585 = vmatpush1.bf16.xpose.msra.mxu0 0
  %2586 = vmatprep.subr.bf16.mxu0 0
  %2587 = vmatpush1.bf16.xpose.msra.mxu0 0
  %2588 = vmatprep.subr.bf16.mxu0 0
  %2589 = vmatpush1.bf16.xpose.msra.mxu0 0
  %2590 = vmatprep.mubr.bf16.mxu0 %v967
  %2591 = vmatmul.mubr.bf16.gmra.mrb[0].mxu0 %v966
  %v2592 = vpop.f32.mrb[0].mxu0
  %v2593 = vadd.f32 %v2553, %v2592
  %v2594 = vpop.f32.mrb[0].mxu0
  %v2595 = vpop.f32.mrb[0].mxu0
  %v2596 = vpop.f32.mrb[0].mxu0
  %2597 = vdwg.mxu0
  %2598 = vmatprep.subr.bf16.mxu0 %v1955
  %2599 = vmatpush1.bf16.xpose.msra.mxu0 %v1954
  %2600 = vmatprep.subr.bf16.mxu0 %v2078
  %2601 = vmatpush1.bf16.xpose.msra.mxu0 %v2077
  %2602 = vmatprep.subr.bf16.mxu0 0
  %2603 = vmatpush1.bf16.xpose.msra.mxu0 0
  %2604 = vmatprep.subr.bf16.mxu0 0
  %2605 = vmatpush1.bf16.xpose.msra.mxu0 0
  %2606 = vmatprep.subr.bf16.mxu0 0
  %2607 = vmatpush1.bf16.xpose.msra.mxu0 0
  %2608 = vmatprep.subr.bf16.mxu0 0
  %2609 = vmatpush1.bf16.xpose.msra.mxu0 0
  %2610 = vmatprep.subr.bf16.mxu0 0
  %2611 = vmatpush1.bf16.xpose.msra.mxu0 0
  %2612 = vmatprep.subr.bf16.mxu0 0
  %2613 = vmatpush1.bf16.xpose.msra.mxu0 0
  %2614 = vmatprep.subr.bf16.mxu0 0
  %2615 = vmatpush1.bf16.xpose.msra.mxu0 0
  %2616 = vmatprep.subr.bf16.mxu0 0
  %2617 = vmatpush1.bf16.xpose.msra.mxu0 0
  %2618 = vmatprep.subr.bf16.mxu0 0
  %2619 = vmatpush1.bf16.xpose.msra.mxu0 0
  %2620 = vmatprep.subr.bf16.mxu0 0
  %2621 = vmatpush1.bf16.xpose.msra.mxu0 0
  %2622 = vmatprep.subr.bf16.mxu0 0
  %2623 = vmatpush1.bf16.xpose.msra.mxu0 0
  %2624 = vmatprep.subr.bf16.mxu0 0
  %2625 = vmatpush1.bf16.xpose.msra.mxu0 0
  %2626 = vmatprep.subr.bf16.mxu0 0
  %2627 = vmatpush1.bf16.xpose.msra.mxu0 0
  %2628 = vmatprep.subr.bf16.mxu0 0
  %2629 = vmatpush1.bf16.xpose.msra.mxu0 0
  %2630 = vmatprep.mubr.bf16.mxu0 %v969
  %2631 = vmatmul.mubr.bf16.gmra.mrb[0].mxu0 %v968
  %v2632 = vpop.f32.mrb[0].mxu0
  %v2633 = vadd.f32 %v2593, %v2632
  %v2634 = vpop.f32.mrb[0].mxu0
  %v2635 = vpop.f32.mrb[0].mxu0
  %v2636 = vpop.f32.mrb[0].mxu0
  %2637 = vdwg.mxu0
  %2638 = vmatprep.subr.bf16.mxu0 %v1957
  %2639 = vmatpush1.bf16.xpose.msra.mxu0 %v1956
  %2640 = vmatprep.subr.bf16.mxu0 %v2080
  %2641 = vmatpush1.bf16.xpose.msra.mxu0 %v2079
  %2642 = vmatprep.subr.bf16.mxu0 0
  %2643 = vmatpush1.bf16.xpose.msra.mxu0 0
  %2644 = vmatprep.subr.bf16.mxu0 0
  %2645 = vmatpush1.bf16.xpose.msra.mxu0 0
  %2646 = vmatprep.subr.bf16.mxu0 0
  %2647 = vmatpush1.bf16.xpose.msra.mxu0 0
  %2648 = vmatprep.subr.bf16.mxu0 0
  %2649 = vmatpush1.bf16.xpose.msra.mxu0 0
  %2650 = vmatprep.subr.bf16.mxu0 0
  %2651 = vmatpush1.bf16.xpose.msra.mxu0 0
  %2652 = vmatprep.subr.bf16.mxu0 0
  %2653 = vmatpush1.bf16.xpose.msra.mxu0 0
  %2654 = vmatprep.subr.bf16.mxu0 0
  %2655 = vmatpush1.bf16.xpose.msra.mxu0 0
  %2656 = vmatprep.subr.bf16.mxu0 0
  %2657 = vmatpush1.bf16.xpose.msra.mxu0 0
  %2658 = vmatprep.subr.bf16.mxu0 0
  %2659 = vmatpush1.bf16.xpose.msra.mxu0 0
  %2660 = vmatprep.subr.bf16.mxu0 0
  %2661 = vmatpush1.bf16.xpose.msra.mxu0 0
  %2662 = vmatprep.subr.bf16.mxu0 0
  %2663 = vmatpush1.bf16.xpose.msra.mxu0 0
  %2664 = vmatprep.subr.bf16.mxu0 0
  %2665 = vmatpush1.bf16.xpose.msra.mxu0 0
  %2666 = vmatprep.subr.bf16.mxu0 0
  %2667 = vmatpush1.bf16.xpose.msra.mxu0 0
  %2668 = vmatprep.subr.bf16.mxu0 0
  %2669 = vmatpush1.bf16.xpose.msra.mxu0 0
  %2670 = vmatprep.mubr.bf16.mxu0 %v971
  %2671 = vmatmul.mubr.bf16.gmra.mrb[0].mxu0 %v970
  %v2672 = vpop.f32.mrb[0].mxu0
  %v2673 = vadd.f32 %v2633, %v2672
  %v2674 = vpop.f32.mrb[0].mxu0
  %v2675 = vpop.f32.mrb[0].mxu0
  %v2676 = vpop.f32.mrb[0].mxu0
  %2677 = vdwg.mxu0
  %2678 = vmatprep.subr.bf16.mxu0 %v1959
  %2679 = vmatpush1.bf16.xpose.msra.mxu0 %v1958
  %2680 = vmatprep.subr.bf16.mxu0 %v2082
  %2681 = vmatpush1.bf16.xpose.msra.mxu0 %v2081
  %2682 = vmatprep.subr.bf16.mxu0 0
  %2683 = vmatpush1.bf16.xpose.msra.mxu0 0
  %2684 = vmatprep.subr.bf16.mxu0 0
  %2685 = vmatpush1.bf16.xpose.msra.mxu0 0
  %2686 = vmatprep.subr.bf16.mxu0 0
  %2687 = vmatpush1.bf16.xpose.msra.mxu0 0
  %2688 = vmatprep.subr.bf16.mxu0 0
  %2689 = vmatpush1.bf16.xpose.msra.mxu0 0
  %2690 = vmatprep.subr.bf16.mxu0 0
  %2691 = vmatpush1.bf16.xpose.msra.mxu0 0
  %2692 = vmatprep.subr.bf16.mxu0 0
  %2693 = vmatpush1.bf16.xpose.msra.mxu0 0
  %2694 = vmatprep.subr.bf16.mxu0 0
  %2695 = vmatpush1.bf16.xpose.msra.mxu0 0
  %2696 = vmatprep.subr.bf16.mxu0 0
  %2697 = vmatpush1.bf16.xpose.msra.mxu0 0
  %2698 = vmatprep.subr.bf16.mxu0 0
  %2699 = vmatpush1.bf16.xpose.msra.mxu0 0
  %2700 = vmatprep.subr.bf16.mxu0 0
  %2701 = vmatpush1.bf16.xpose.msra.mxu0 0
  %2702 = vmatprep.subr.bf16.mxu0 0
  %2703 = vmatpush1.bf16.xpose.msra.mxu0 0
  %2704 = vmatprep.subr.bf16.mxu0 0
  %2705 = vmatpush1.bf16.xpose.msra.mxu0 0
  %2706 = vmatprep.subr.bf16.mxu0 0
  %2707 = vmatpush1.bf16.xpose.msra.mxu0 0
  %2708 = vmatprep.subr.bf16.mxu0 0
  %2709 = vmatpush1.bf16.xpose.msra.mxu0 0
  %2710 = vmatprep.mubr.bf16.mxu0 %v973
  %2711 = vmatmul.mubr.bf16.gmra.mrb[0].mxu0 %v972
  %v2712 = vpop.f32.mrb[0].mxu0
  %v2713 = vadd.f32 %v2673, %v2712
  %v2714 = vpop.f32.mrb[0].mxu0
  %v2715 = vpop.f32.mrb[0].mxu0
  %v2716 = vpop.f32.mrb[0].mxu0
  %2717 = vdwg.mxu0
  %2718 = vmatprep.subr.bf16.mxu0 %v1961
  %2719 = vmatpush1.bf16.xpose.msra.mxu0 %v1960
  %2720 = vmatprep.subr.bf16.mxu0 %v2084
  %2721 = vmatpush1.bf16.xpose.msra.mxu0 %v2083
  %2722 = vmatprep.subr.bf16.mxu0 0
  %2723 = vmatpush1.bf16.xpose.msra.mxu0 0
  %2724 = vmatprep.subr.bf16.mxu0 0
  %2725 = vmatpush1.bf16.xpose.msra.mxu0 0
  %2726 = vmatprep.subr.bf16.mxu0 0
  %2727 = vmatpush1.bf16.xpose.msra.mxu0 0
  %2728 = vmatprep.subr.bf16.mxu0 0
  %2729 = vmatpush1.bf16.xpose.msra.mxu0 0
  %2730 = vmatprep.subr.bf16.mxu0 0
  %2731 = vmatpush1.bf16.xpose.msra.mxu0 0
  %2732 = vmatprep.subr.bf16.mxu0 0
  %2733 = vmatpush1.bf16.xpose.msra.mxu0 0
  %2734 = vmatprep.subr.bf16.mxu0 0
  %2735 = vmatpush1.bf16.xpose.msra.mxu0 0
  %2736 = vmatprep.subr.bf16.mxu0 0
  %2737 = vmatpush1.bf16.xpose.msra.mxu0 0
  %2738 = vmatprep.subr.bf16.mxu0 0
  %2739 = vmatpush1.bf16.xpose.msra.mxu0 0
  %2740 = vmatprep.subr.bf16.mxu0 0
  %2741 = vmatpush1.bf16.xpose.msra.mxu0 0
  %2742 = vmatprep.subr.bf16.mxu0 0
  %2743 = vmatpush1.bf16.xpose.msra.mxu0 0
  %2744 = vmatprep.subr.bf16.mxu0 0
  %2745 = vmatpush1.bf16.xpose.msra.mxu0 0
  %2746 = vmatprep.subr.bf16.mxu0 0
  %2747 = vmatpush1.bf16.xpose.msra.mxu0 0
  %2748 = vmatprep.subr.bf16.mxu0 0
  %2749 = vmatpush1.bf16.xpose.msra.mxu0 0
  %2750 = vmatprep.mubr.bf16.mxu0 %v975
  %2751 = vmatmul.mubr.bf16.gmra.mrb[0].mxu0 %v974
  %v2752 = vpop.f32.mrb[0].mxu0
  %v2753 = vadd.f32 %v2713, %v2752
  %v2754 = vpop.f32.mrb[0].mxu0
  %v2755 = vpop.f32.mrb[0].mxu0
  %v2756 = vpop.f32.mrb[0].mxu0
  %2757 = vdwg.mxu0
  %2758 = vmatprep.subr.bf16.mxu0 %v1963
  %2759 = vmatpush1.bf16.xpose.msra.mxu0 %v1962
  %2760 = vmatprep.subr.bf16.mxu0 %v2086
  %2761 = vmatpush1.bf16.xpose.msra.mxu0 %v2085
  %2762 = vmatprep.subr.bf16.mxu0 0
  %2763 = vmatpush1.bf16.xpose.msra.mxu0 0
  %2764 = vmatprep.subr.bf16.mxu0 0
  %2765 = vmatpush1.bf16.xpose.msra.mxu0 0
  %2766 = vmatprep.subr.bf16.mxu0 0
  %2767 = vmatpush1.bf16.xpose.msra.mxu0 0
  %2768 = vmatprep.subr.bf16.mxu0 0
  %2769 = vmatpush1.bf16.xpose.msra.mxu0 0
  %2770 = vmatprep.subr.bf16.mxu0 0
  %2771 = vmatpush1.bf16.xpose.msra.mxu0 0
  %2772 = vmatprep.subr.bf16.mxu0 0
  %2773 = vmatpush1.bf16.xpose.msra.mxu0 0
  %2774 = vmatprep.subr.bf16.mxu0 0
  %2775 = vmatpush1.bf16.xpose.msra.mxu0 0
  %2776 = vmatprep.subr.bf16.mxu0 0
  %2777 = vmatpush1.bf16.xpose.msra.mxu0 0
  %2778 = vmatprep.subr.bf16.mxu0 0
  %2779 = vmatpush1.bf16.xpose.msra.mxu0 0
  %2780 = vmatprep.subr.bf16.mxu0 0
  %2781 = vmatpush1.bf16.xpose.msra.mxu0 0
  %2782 = vmatprep.subr.bf16.mxu0 0
  %2783 = vmatpush1.bf16.xpose.msra.mxu0 0
  %2784 = vmatprep.subr.bf16.mxu0 0
  %2785 = vmatpush1.bf16.xpose.msra.mxu0 0
  %2786 = vmatprep.subr.bf16.mxu0 0
  %2787 = vmatpush1.bf16.xpose.msra.mxu0 0
  %2788 = vmatprep.subr.bf16.mxu0 0
  %2789 = vmatpush1.bf16.xpose.msra.mxu0 0
  %2790 = vmatprep.mubr.bf16.mxu0 %v977
  %2791 = vmatmul.mubr.bf16.gmra.mrb[0].mxu0 %v976
  %v2792 = vpop.f32.mrb[0].mxu0
  %v2793 = vadd.f32 %v2753, %v2792
  %v2794 = vpop.f32.mrb[0].mxu0
  %v2795 = vpop.f32.mrb[0].mxu0
  %v2796 = vpop.f32.mrb[0].mxu0
  %2797 = vdwg.mxu0
  %2798 = vmatprep.subr.bf16.mxu0 %v1965
  %2799 = vmatpush1.bf16.xpose.msra.mxu0 %v1964
  %2800 = vmatprep.subr.bf16.mxu0 %v2088
  %2801 = vmatpush1.bf16.xpose.msra.mxu0 %v2087
  %2802 = vmatprep.subr.bf16.mxu0 0
  %2803 = vmatpush1.bf16.xpose.msra.mxu0 0
  %2804 = vmatprep.subr.bf16.mxu0 0
  %2805 = vmatpush1.bf16.xpose.msra.mxu0 0
  %2806 = vmatprep.subr.bf16.mxu0 0
  %2807 = vmatpush1.bf16.xpose.msra.mxu0 0
  %2808 = vmatprep.subr.bf16.mxu0 0
  %2809 = vmatpush1.bf16.xpose.msra.mxu0 0
  %2810 = vmatprep.subr.bf16.mxu0 0
  %2811 = vmatpush1.bf16.xpose.msra.mxu0 0
  %2812 = vmatprep.subr.bf16.mxu0 0
  %2813 = vmatpush1.bf16.xpose.msra.mxu0 0
  %2814 = vmatprep.subr.bf16.mxu0 0
  %2815 = vmatpush1.bf16.xpose.msra.mxu0 0
  %2816 = vmatprep.subr.bf16.mxu0 0
  %2817 = vmatpush1.bf16.xpose.msra.mxu0 0
  %2818 = vmatprep.subr.bf16.mxu0 0
  %2819 = vmatpush1.bf16.xpose.msra.mxu0 0
  %2820 = vmatprep.subr.bf16.mxu0 0
  %2821 = vmatpush1.bf16.xpose.msra.mxu0 0
  %2822 = vmatprep.subr.bf16.mxu0 0
  %2823 = vmatpush1.bf16.xpose.msra.mxu0 0
  %2824 = vmatprep.subr.bf16.mxu0 0
  %2825 = vmatpush1.bf16.xpose.msra.mxu0 0
  %2826 = vmatprep.subr.bf16.mxu0 0
  %2827 = vmatpush1.bf16.xpose.msra.mxu0 0
  %2828 = vmatprep.subr.bf16.mxu0 0
  %2829 = vmatpush1.bf16.xpose.msra.mxu0 0
  %2830 = vmatprep.mubr.bf16.mxu0 %v979
  %2831 = vmatmul.mubr.bf16.gmra.mrb[0].mxu0 %v978
  %v2832 = vpop.f32.mrb[0].mxu0
  %v2833 = vadd.f32 %v2793, %v2832
  %v2834 = vpop.f32.mrb[0].mxu0
  %v2835 = vpop.f32.mrb[0].mxu0
  %v2836 = vpop.f32.mrb[0].mxu0
  %2837 = vdwg.mxu0
  %2838 = vmatprep.subr.bf16.mxu0 %v1967
  %2839 = vmatpush1.bf16.xpose.msra.mxu0 %v1966
  %2840 = vmatprep.subr.bf16.mxu0 %v2090
  %2841 = vmatpush1.bf16.xpose.msra.mxu0 %v2089
  %2842 = vmatprep.subr.bf16.mxu0 0
  %2843 = vmatpush1.bf16.xpose.msra.mxu0 0
  %2844 = vmatprep.subr.bf16.mxu0 0
  %2845 = vmatpush1.bf16.xpose.msra.mxu0 0
  %2846 = vmatprep.subr.bf16.mxu0 0
  %2847 = vmatpush1.bf16.xpose.msra.mxu0 0
  %2848 = vmatprep.subr.bf16.mxu0 0
  %2849 = vmatpush1.bf16.xpose.msra.mxu0 0
  %2850 = vmatprep.subr.bf16.mxu0 0
  %2851 = vmatpush1.bf16.xpose.msra.mxu0 0
  %2852 = vmatprep.subr.bf16.mxu0 0
  %2853 = vmatpush1.bf16.xpose.msra.mxu0 0
  %2854 = vmatprep.subr.bf16.mxu0 0
  %2855 = vmatpush1.bf16.xpose.msra.mxu0 0
  %2856 = vmatprep.subr.bf16.mxu0 0
  %2857 = vmatpush1.bf16.xpose.msra.mxu0 0
  %2858 = vmatprep.subr.bf16.mxu0 0
  %2859 = vmatpush1.bf16.xpose.msra.mxu0 0
  %2860 = vmatprep.subr.bf16.mxu0 0
  %2861 = vmatpush1.bf16.xpose.msra.mxu0 0
  %2862 = vmatprep.subr.bf16.mxu0 0
  %2863 = vmatpush1.bf16.xpose.msra.mxu0 0
  %2864 = vmatprep.subr.bf16.mxu0 0
  %2865 = vmatpush1.bf16.xpose.msra.mxu0 0
  %2866 = vmatprep.subr.bf16.mxu0 0
  %2867 = vmatpush1.bf16.xpose.msra.mxu0 0
  %2868 = vmatprep.subr.bf16.mxu0 0
  %2869 = vmatpush1.bf16.xpose.msra.mxu0 0
  %2870 = vmatprep.mubr.bf16.mxu0 %v981
  %2871 = vmatmul.mubr.bf16.gmra.mrb[0].mxu0 %v980
  %v2872 = vpop.f32.mrb[0].mxu0
  %v2873 = vadd.f32 %v2833, %v2872
  %v2874 = vpop.f32.mrb[0].mxu0
  %v2875 = vpop.f32.mrb[0].mxu0
  %v2876 = vpop.f32.mrb[0].mxu0
  %2877 = vdwg.mxu0
  %2878 = vmatprep.subr.bf16.mxu0 %v1969
  %2879 = vmatpush1.bf16.xpose.msra.mxu0 %v1968
  %2880 = vmatprep.subr.bf16.mxu0 %v2092
  %2881 = vmatpush1.bf16.xpose.msra.mxu0 %v2091
  %2882 = vmatprep.subr.bf16.mxu0 0
  %2883 = vmatpush1.bf16.xpose.msra.mxu0 0
  %2884 = vmatprep.subr.bf16.mxu0 0
  %2885 = vmatpush1.bf16.xpose.msra.mxu0 0
  %2886 = vmatprep.subr.bf16.mxu0 0
  %2887 = vmatpush1.bf16.xpose.msra.mxu0 0
  %2888 = vmatprep.subr.bf16.mxu0 0
  %2889 = vmatpush1.bf16.xpose.msra.mxu0 0
  %2890 = vmatprep.subr.bf16.mxu0 0
  %2891 = vmatpush1.bf16.xpose.msra.mxu0 0
  %2892 = vmatprep.subr.bf16.mxu0 0
  %2893 = vmatpush1.bf16.xpose.msra.mxu0 0
  %2894 = vmatprep.subr.bf16.mxu0 0
  %2895 = vmatpush1.bf16.xpose.msra.mxu0 0
  %2896 = vmatprep.subr.bf16.mxu0 0
  %2897 = vmatpush1.bf16.xpose.msra.mxu0 0
  %2898 = vmatprep.subr.bf16.mxu0 0
  %2899 = vmatpush1.bf16.xpose.msra.mxu0 0
  %2900 = vmatprep.subr.bf16.mxu0 0
  %2901 = vmatpush1.bf16.xpose.msra.mxu0 0
  %2902 = vmatprep.subr.bf16.mxu0 0
  %2903 = vmatpush1.bf16.xpose.msra.mxu0 0
  %2904 = vmatprep.subr.bf16.mxu0 0
  %2905 = vmatpush1.bf16.xpose.msra.mxu0 0
  %2906 = vmatprep.subr.bf16.mxu0 0
  %2907 = vmatpush1.bf16.xpose.msra.mxu0 0
  %2908 = vmatprep.subr.bf16.mxu0 0
  %2909 = vmatpush1.bf16.xpose.msra.mxu0 0
  %2910 = vmatprep.mubr.bf16.mxu0 %v983
  %2911 = vmatmul.mubr.bf16.gmra.mrb[0].mxu0 %v982
  %v2912 = vpop.f32.mrb[0].mxu0
  %v2913 = vadd.f32 %v2873, %v2912
  %v2914 = vpop.f32.mrb[0].mxu0
  %v2915 = vpop.f32.mrb[0].mxu0
  %v2916 = vpop.f32.mrb[0].mxu0
  %2917 = vdwg.mxu0
  %2918 = vmatprep.subr.bf16.mxu0 %v1971
  %2919 = vmatpush1.bf16.xpose.msra.mxu0 %v1970
  %2920 = vmatprep.subr.bf16.mxu0 %v2094
  %2921 = vmatpush1.bf16.xpose.msra.mxu0 %v2093
  %2922 = vmatprep.subr.bf16.mxu0 0
  %2923 = vmatpush1.bf16.xpose.msra.mxu0 0
  %2924 = vmatprep.subr.bf16.mxu0 0
  %2925 = vmatpush1.bf16.xpose.msra.mxu0 0
  %2926 = vmatprep.subr.bf16.mxu0 0
  %2927 = vmatpush1.bf16.xpose.msra.mxu0 0
  %2928 = vmatprep.subr.bf16.mxu0 0
  %2929 = vmatpush1.bf16.xpose.msra.mxu0 0
  %2930 = vmatprep.subr.bf16.mxu0 0
  %2931 = vmatpush1.bf16.xpose.msra.mxu0 0
  %2932 = vmatprep.subr.bf16.mxu0 0
  %2933 = vmatpush1.bf16.xpose.msra.mxu0 0
  %2934 = vmatprep.subr.bf16.mxu0 0
  %2935 = vmatpush1.bf16.xpose.msra.mxu0 0
  %2936 = vmatprep.subr.bf16.mxu0 0
  %2937 = vmatpush1.bf16.xpose.msra.mxu0 0
  %2938 = vmatprep.subr.bf16.mxu0 0
  %2939 = vmatpush1.bf16.xpose.msra.mxu0 0
  %2940 = vmatprep.subr.bf16.mxu0 0
  %2941 = vmatpush1.bf16.xpose.msra.mxu0 0
  %2942 = vmatprep.subr.bf16.mxu0 0
  %2943 = vmatpush1.bf16.xpose.msra.mxu0 0
  %2944 = vmatprep.subr.bf16.mxu0 0
  %2945 = vmatpush1.bf16.xpose.msra.mxu0 0
  %2946 = vmatprep.subr.bf16.mxu0 0
  %2947 = vmatpush1.bf16.xpose.msra.mxu0 0
  %2948 = vmatprep.subr.bf16.mxu0 0
  %2949 = vmatpush1.bf16.xpose.msra.mxu0 0
  %2950 = vmatprep.mubr.bf16.mxu0 %v985
  %2951 = vmatmul.mubr.bf16.gmra.mrb[0].mxu0 %v984
  %v2952 = vpop.f32.mrb[0].mxu0
  %v2953 = vadd.f32 %v2913, %v2952
  %v2954 = vpop.f32.mrb[0].mxu0
  %v2955 = vpop.f32.mrb[0].mxu0
  %v2956 = vpop.f32.mrb[0].mxu0
  %2957 = vdwg.mxu0
  %2958 = vmatprep.subr.bf16.mxu0 %v1973
  %2959 = vmatpush1.bf16.xpose.msra.mxu0 %v1972
  %2960 = vmatprep.subr.bf16.mxu0 %v2096
  %2961 = vmatpush1.bf16.xpose.msra.mxu0 %v2095
  %2962 = vmatprep.subr.bf16.mxu0 0
  %2963 = vmatpush1.bf16.xpose.msra.mxu0 0
  %2964 = vmatprep.subr.bf16.mxu0 0
  %2965 = vmatpush1.bf16.xpose.msra.mxu0 0
  %2966 = vmatprep.subr.bf16.mxu0 0
  %2967 = vmatpush1.bf16.xpose.msra.mxu0 0
  %2968 = vmatprep.subr.bf16.mxu0 0
  %2969 = vmatpush1.bf16.xpose.msra.mxu0 0
  %2970 = vmatprep.subr.bf16.mxu0 0
  %2971 = vmatpush1.bf16.xpose.msra.mxu0 0
  %2972 = vmatprep.subr.bf16.mxu0 0
  %2973 = vmatpush1.bf16.xpose.msra.mxu0 0
  %2974 = vmatprep.subr.bf16.mxu0 0
  %2975 = vmatpush1.bf16.xpose.msra.mxu0 0
  %2976 = vmatprep.subr.bf16.mxu0 0
  %2977 = vmatpush1.bf16.xpose.msra.mxu0 0
  %2978 = vmatprep.subr.bf16.mxu0 0
  %2979 = vmatpush1.bf16.xpose.msra.mxu0 0
  %2980 = vmatprep.subr.bf16.mxu0 0
  %2981 = vmatpush1.bf16.xpose.msra.mxu0 0
  %2982 = vmatprep.subr.bf16.mxu0 0
  %2983 = vmatpush1.bf16.xpose.msra.mxu0 0
  %2984 = vmatprep.subr.bf16.mxu0 0
  %2985 = vmatpush1.bf16.xpose.msra.mxu0 0
  %2986 = vmatprep.subr.bf16.mxu0 0
  %2987 = vmatpush1.bf16.xpose.msra.mxu0 0
  %2988 = vmatprep.subr.bf16.mxu0 0
  %2989 = vmatpush1.bf16.xpose.msra.mxu0 0
  %2990 = vmatprep.mubr.bf16.mxu0 %v987
  %2991 = vmatmul.mubr.bf16.gmra.mrb[0].mxu0 %v986
  %v2992 = vpop.f32.mrb[0].mxu0
  %v2993 = vadd.f32 %v2953, %v2992
  %v2994 = vpop.f32.mrb[0].mxu0
  %v2995 = vpop.f32.mrb[0].mxu0
  %v2996 = vpop.f32.mrb[0].mxu0
  %2997 = vdwg.mxu0
  %2998 = vmatprep.subr.bf16.mxu0 %v1975
  %2999 = vmatpush1.bf16.xpose.msra.mxu0 %v1974
  %3000 = vmatprep.subr.bf16.mxu0 %v2098
  %3001 = vmatpush1.bf16.xpose.msra.mxu0 %v2097
  %3002 = vmatprep.subr.bf16.mxu0 0
  %3003 = vmatpush1.bf16.xpose.msra.mxu0 0
  %3004 = vmatprep.subr.bf16.mxu0 0
  %3005 = vmatpush1.bf16.xpose.msra.mxu0 0
  %3006 = vmatprep.subr.bf16.mxu0 0
  %3007 = vmatpush1.bf16.xpose.msra.mxu0 0
  %3008 = vmatprep.subr.bf16.mxu0 0
  %3009 = vmatpush1.bf16.xpose.msra.mxu0 0
  %3010 = vmatprep.subr.bf16.mxu0 0
  %3011 = vmatpush1.bf16.xpose.msra.mxu0 0
  %3012 = vmatprep.subr.bf16.mxu0 0
  %3013 = vmatpush1.bf16.xpose.msra.mxu0 0
  %3014 = vmatprep.subr.bf16.mxu0 0
  %3015 = vmatpush1.bf16.xpose.msra.mxu0 0
  %3016 = vmatprep.subr.bf16.mxu0 0
  %3017 = vmatpush1.bf16.xpose.msra.mxu0 0
  %3018 = vmatprep.subr.bf16.mxu0 0
  %3019 = vmatpush1.bf16.xpose.msra.mxu0 0
  %3020 = vmatprep.subr.bf16.mxu0 0
  %3021 = vmatpush1.bf16.xpose.msra.mxu0 0
  %3022 = vmatprep.subr.bf16.mxu0 0
  %3023 = vmatpush1.bf16.xpose.msra.mxu0 0
  %3024 = vmatprep.subr.bf16.mxu0 0
  %3025 = vmatpush1.bf16.xpose.msra.mxu0 0
  %3026 = vmatprep.subr.bf16.mxu0 0
  %3027 = vmatpush1.bf16.xpose.msra.mxu0 0
  %3028 = vmatprep.subr.bf16.mxu0 0
  %3029 = vmatpush1.bf16.xpose.msra.mxu0 0
  %3030 = vmatprep.mubr.bf16.mxu0 %v989
  %3031 = vmatmul.mubr.bf16.gmra.mrb[0].mxu0 %v988
  %v3032 = vpop.f32.mrb[0].mxu0
  %v3033 = vadd.f32 %v2993, %v3032
  %v3034 = vpop.f32.mrb[0].mxu0
  %v3035 = vpop.f32.mrb[0].mxu0
  %v3036 = vpop.f32.mrb[0].mxu0
  %3037 = vdwg.mxu0
  %3038 = vmatprep.subr.bf16.mxu0 %v1977
  %3039 = vmatpush1.bf16.xpose.msra.mxu0 %v1976
  %3040 = vmatprep.subr.bf16.mxu0 %v2100
  %3041 = vmatpush1.bf16.xpose.msra.mxu0 %v2099
  %3042 = vmatprep.subr.bf16.mxu0 0
  %3043 = vmatpush1.bf16.xpose.msra.mxu0 0
  %3044 = vmatprep.subr.bf16.mxu0 0
  %3045 = vmatpush1.bf16.xpose.msra.mxu0 0
  %3046 = vmatprep.subr.bf16.mxu0 0
  %3047 = vmatpush1.bf16.xpose.msra.mxu0 0
  %3048 = vmatprep.subr.bf16.mxu0 0
  %3049 = vmatpush1.bf16.xpose.msra.mxu0 0
  %3050 = vmatprep.subr.bf16.mxu0 0
  %3051 = vmatpush1.bf16.xpose.msra.mxu0 0
  %3052 = vmatprep.subr.bf16.mxu0 0
  %3053 = vmatpush1.bf16.xpose.msra.mxu0 0
  %3054 = vmatprep.subr.bf16.mxu0 0
  %3055 = vmatpush1.bf16.xpose.msra.mxu0 0
  %3056 = vmatprep.subr.bf16.mxu0 0
  %3057 = vmatpush1.bf16.xpose.msra.mxu0 0
  %3058 = vmatprep.subr.bf16.mxu0 0
  %3059 = vmatpush1.bf16.xpose.msra.mxu0 0
  %3060 = vmatprep.subr.bf16.mxu0 0
  %3061 = vmatpush1.bf16.xpose.msra.mxu0 0
  %3062 = vmatprep.subr.bf16.mxu0 0
  %3063 = vmatpush1.bf16.xpose.msra.mxu0 0
  %3064 = vmatprep.subr.bf16.mxu0 0
  %3065 = vmatpush1.bf16.xpose.msra.mxu0 0
  %3066 = vmatprep.subr.bf16.mxu0 0
  %3067 = vmatpush1.bf16.xpose.msra.mxu0 0
  %3068 = vmatprep.subr.bf16.mxu0 0
  %3069 = vmatpush1.bf16.xpose.msra.mxu0 0
  %3070 = vmatprep.mubr.bf16.mxu0 %v991
  %3071 = vmatmul.mubr.bf16.gmra.mrb[0].mxu0 %v990
  %v3072 = vpop.f32.mrb[0].mxu0
  %v3073 = vadd.f32 %v3033, %v3072
  %v3074 = vpop.f32.mrb[0].mxu0
  %v3075 = vpop.f32.mrb[0].mxu0
  %v3076 = vpop.f32.mrb[0].mxu0
  %3077 = vdwg.mxu0
  %3078 = vmatprep.subr.bf16.mxu0 %v1979
  %3079 = vmatpush1.bf16.xpose.msra.mxu0 %v1978
  %3080 = vmatprep.subr.bf16.mxu0 %v2102
  %3081 = vmatpush1.bf16.xpose.msra.mxu0 %v2101
  %3082 = vmatprep.subr.bf16.mxu0 0
  %3083 = vmatpush1.bf16.xpose.msra.mxu0 0
  %3084 = vmatprep.subr.bf16.mxu0 0
  %3085 = vmatpush1.bf16.xpose.msra.mxu0 0
  %3086 = vmatprep.subr.bf16.mxu0 0
  %3087 = vmatpush1.bf16.xpose.msra.mxu0 0
  %3088 = vmatprep.subr.bf16.mxu0 0
  %3089 = vmatpush1.bf16.xpose.msra.mxu0 0
  %3090 = vmatprep.subr.bf16.mxu0 0
  %3091 = vmatpush1.bf16.xpose.msra.mxu0 0
  %3092 = vmatprep.subr.bf16.mxu0 0
  %3093 = vmatpush1.bf16.xpose.msra.mxu0 0
  %3094 = vmatprep.subr.bf16.mxu0 0
  %3095 = vmatpush1.bf16.xpose.msra.mxu0 0
  %3096 = vmatprep.subr.bf16.mxu0 0
  %3097 = vmatpush1.bf16.xpose.msra.mxu0 0
  %3098 = vmatprep.subr.bf16.mxu0 0
  %3099 = vmatpush1.bf16.xpose.msra.mxu0 0
  %3100 = vmatprep.subr.bf16.mxu0 0
  %3101 = vmatpush1.bf16.xpose.msra.mxu0 0
  %3102 = vmatprep.subr.bf16.mxu0 0
  %3103 = vmatpush1.bf16.xpose.msra.mxu0 0
  %3104 = vmatprep.subr.bf16.mxu0 0
  %3105 = vmatpush1.bf16.xpose.msra.mxu0 0
  %3106 = vmatprep.subr.bf16.mxu0 0
  %3107 = vmatpush1.bf16.xpose.msra.mxu0 0
  %3108 = vmatprep.subr.bf16.mxu0 0
  %3109 = vmatpush1.bf16.xpose.msra.mxu0 0
  %3110 = vmatprep.mubr.bf16.mxu0 %v993
  %3111 = vmatmul.mubr.bf16.gmra.mrb[0].mxu0 %v992
  %v3112 = vpop.f32.mrb[0].mxu0
  %v3113 = vadd.f32 %v3073, %v3112
  %v3114 = vpop.f32.mrb[0].mxu0
  %v3115 = vpop.f32.mrb[0].mxu0
  %v3116 = vpop.f32.mrb[0].mxu0
  %3117 = vdwg.mxu0
  %3118 = vmatprep.subr.bf16.mxu0 %v1981
  %3119 = vmatpush1.bf16.xpose.msra.mxu0 %v1980
  %3120 = vmatprep.subr.bf16.mxu0 %v2104
  %3121 = vmatpush1.bf16.xpose.msra.mxu0 %v2103
  %3122 = vmatprep.subr.bf16.mxu0 0
  %3123 = vmatpush1.bf16.xpose.msra.mxu0 0
  %3124 = vmatprep.subr.bf16.mxu0 0
  %3125 = vmatpush1.bf16.xpose.msra.mxu0 0
  %3126 = vmatprep.subr.bf16.mxu0 0
  %3127 = vmatpush1.bf16.xpose.msra.mxu0 0
  %3128 = vmatprep.subr.bf16.mxu0 0
  %3129 = vmatpush1.bf16.xpose.msra.mxu0 0
  %3130 = vmatprep.subr.bf16.mxu0 0
  %3131 = vmatpush1.bf16.xpose.msra.mxu0 0
  %3132 = vmatprep.subr.bf16.mxu0 0
  %3133 = vmatpush1.bf16.xpose.msra.mxu0 0
  %3134 = vmatprep.subr.bf16.mxu0 0
  %3135 = vmatpush1.bf16.xpose.msra.mxu0 0
  %3136 = vmatprep.subr.bf16.mxu0 0
  %3137 = vmatpush1.bf16.xpose.msra.mxu0 0
  %3138 = vmatprep.subr.bf16.mxu0 0
  %3139 = vmatpush1.bf16.xpose.msra.mxu0 0
  %3140 = vmatprep.subr.bf16.mxu0 0
  %3141 = vmatpush1.bf16.xpose.msra.mxu0 0
  %3142 = vmatprep.subr.bf16.mxu0 0
  %3143 = vmatpush1.bf16.xpose.msra.mxu0 0
  %3144 = vmatprep.subr.bf16.mxu0 0
  %3145 = vmatpush1.bf16.xpose.msra.mxu0 0
  %3146 = vmatprep.subr.bf16.mxu0 0
  %3147 = vmatpush1.bf16.xpose.msra.mxu0 0
  %3148 = vmatprep.subr.bf16.mxu0 0
  %3149 = vmatpush1.bf16.xpose.msra.mxu0 0
  %3150 = vmatprep.mubr.bf16.mxu0 %v995
  %3151 = vmatmul.mubr.bf16.gmra.mrb[0].mxu0 %v994
  %v3152 = vpop.f32.mrb[0].mxu0
  %v3153 = vadd.f32 %v3113, %v3152
  %v3154 = vpop.f32.mrb[0].mxu0
  %v3155 = vpop.f32.mrb[0].mxu0
  %v3156 = vpop.f32.mrb[0].mxu0
  %3157 = vdwg.mxu0
  %3158 = vmatprep.subr.bf16.mxu0 %v1983
  %3159 = vmatpush1.bf16.xpose.msra.mxu0 %v1982
  %3160 = vmatprep.subr.bf16.mxu0 %v2106
  %3161 = vmatpush1.bf16.xpose.msra.mxu0 %v2105
  %3162 = vmatprep.subr.bf16.mxu0 0
  %3163 = vmatpush1.bf16.xpose.msra.mxu0 0
  %3164 = vmatprep.subr.bf16.mxu0 0
  %3165 = vmatpush1.bf16.xpose.msra.mxu0 0
  %3166 = vmatprep.subr.bf16.mxu0 0
  %3167 = vmatpush1.bf16.xpose.msra.mxu0 0
  %3168 = vmatprep.subr.bf16.mxu0 0
  %3169 = vmatpush1.bf16.xpose.msra.mxu0 0
  %3170 = vmatprep.subr.bf16.mxu0 0
  %3171 = vmatpush1.bf16.xpose.msra.mxu0 0
  %3172 = vmatprep.subr.bf16.mxu0 0
  %3173 = vmatpush1.bf16.xpose.msra.mxu0 0
  %3174 = vmatprep.subr.bf16.mxu0 0
  %3175 = vmatpush1.bf16.xpose.msra.mxu0 0
  %3176 = vmatprep.subr.bf16.mxu0 0
  %3177 = vmatpush1.bf16.xpose.msra.mxu0 0
  %3178 = vmatprep.subr.bf16.mxu0 0
  %3179 = vmatpush1.bf16.xpose.msra.mxu0 0
  %3180 = vmatprep.subr.bf16.mxu0 0
  %3181 = vmatpush1.bf16.xpose.msra.mxu0 0
  %3182 = vmatprep.subr.bf16.mxu0 0
  %3183 = vmatpush1.bf16.xpose.msra.mxu0 0
  %3184 = vmatprep.subr.bf16.mxu0 0
  %3185 = vmatpush1.bf16.xpose.msra.mxu0 0
  %3186 = vmatprep.subr.bf16.mxu0 0
  %3187 = vmatpush1.bf16.xpose.msra.mxu0 0
  %3188 = vmatprep.subr.bf16.mxu0 0
  %3189 = vmatpush1.bf16.xpose.msra.mxu0 0
  %3190 = vmatprep.mubr.bf16.mxu0 %v997
  %3191 = vmatmul.mubr.bf16.gmra.mrb[0].mxu0 %v996
  %v3192 = vpop.f32.mrb[0].mxu0
  %v3193 = vadd.f32 %v3153, %v3192
  %v3194 = vpop.f32.mrb[0].mxu0
  %v3195 = vpop.f32.mrb[0].mxu0
  %v3196 = vpop.f32.mrb[0].mxu0
  %3197 = vdwg.mxu0
  %3198 = vmatprep.subr.bf16.mxu0 %v1985
  %3199 = vmatpush1.bf16.xpose.msra.mxu0 %v1984
  %3200 = vmatprep.subr.bf16.mxu0 %v2108
  %3201 = vmatpush1.bf16.xpose.msra.mxu0 %v2107
  %3202 = vmatprep.subr.bf16.mxu0 0
  %3203 = vmatpush1.bf16.xpose.msra.mxu0 0
  %3204 = vmatprep.subr.bf16.mxu0 0
  %3205 = vmatpush1.bf16.xpose.msra.mxu0 0
  %3206 = vmatprep.subr.bf16.mxu0 0
  %3207 = vmatpush1.bf16.xpose.msra.mxu0 0
  %3208 = vmatprep.subr.bf16.mxu0 0
  %3209 = vmatpush1.bf16.xpose.msra.mxu0 0
  %3210 = vmatprep.subr.bf16.mxu0 0
  %3211 = vmatpush1.bf16.xpose.msra.mxu0 0
  %3212 = vmatprep.subr.bf16.mxu0 0
  %3213 = vmatpush1.bf16.xpose.msra.mxu0 0
  %3214 = vmatprep.subr.bf16.mxu0 0
  %3215 = vmatpush1.bf16.xpose.msra.mxu0 0
  %3216 = vmatprep.subr.bf16.mxu0 0
  %3217 = vmatpush1.bf16.xpose.msra.mxu0 0
  %3218 = vmatprep.subr.bf16.mxu0 0
  %3219 = vmatpush1.bf16.xpose.msra.mxu0 0
  %3220 = vmatprep.subr.bf16.mxu0 0
  %3221 = vmatpush1.bf16.xpose.msra.mxu0 0
  %3222 = vmatprep.subr.bf16.mxu0 0
  %3223 = vmatpush1.bf16.xpose.msra.mxu0 0
  %3224 = vmatprep.subr.bf16.mxu0 0
  %3225 = vmatpush1.bf16.xpose.msra.mxu0 0
  %3226 = vmatprep.subr.bf16.mxu0 0
  %3227 = vmatpush1.bf16.xpose.msra.mxu0 0
  %3228 = vmatprep.subr.bf16.mxu0 0
  %3229 = vmatpush1.bf16.xpose.msra.mxu0 0
  %3230 = vmatprep.mubr.bf16.mxu0 %v999
  %3231 = vmatmul.mubr.bf16.gmra.mrb[0].mxu0 %v998
  %v3232 = vpop.f32.mrb[0].mxu0
  %v3233 = vadd.f32 %v3193, %v3232
  %v3234 = vpop.f32.mrb[0].mxu0
  %v3235 = vpop.f32.mrb[0].mxu0
  %v3236 = vpop.f32.mrb[0].mxu0
  %3237 = vdwg.mxu0
  %3238 = vmatprep.subr.bf16.mxu0 %v1987
  %3239 = vmatpush1.bf16.xpose.msra.mxu0 %v1986
  %3240 = vmatprep.subr.bf16.mxu0 %v2110
  %3241 = vmatpush1.bf16.xpose.msra.mxu0 %v2109
  %3242 = vmatprep.subr.bf16.mxu0 0
  %3243 = vmatpush1.bf16.xpose.msra.mxu0 0
  %3244 = vmatprep.subr.bf16.mxu0 0
  %3245 = vmatpush1.bf16.xpose.msra.mxu0 0
  %3246 = vmatprep.subr.bf16.mxu0 0
  %3247 = vmatpush1.bf16.xpose.msra.mxu0 0
  %3248 = vmatprep.subr.bf16.mxu0 0
  %3249 = vmatpush1.bf16.xpose.msra.mxu0 0
  %3250 = vmatprep.subr.bf16.mxu0 0
  %3251 = vmatpush1.bf16.xpose.msra.mxu0 0
  %3252 = vmatprep.subr.bf16.mxu0 0
  %3253 = vmatpush1.bf16.xpose.msra.mxu0 0
  %3254 = vmatprep.subr.bf16.mxu0 0
  %3255 = vmatpush1.bf16.xpose.msra.mxu0 0
  %3256 = vmatprep.subr.bf16.mxu0 0
  %3257 = vmatpush1.bf16.xpose.msra.mxu0 0
  %3258 = vmatprep.subr.bf16.mxu0 0
  %3259 = vmatpush1.bf16.xpose.msra.mxu0 0
  %3260 = vmatprep.subr.bf16.mxu0 0
  %3261 = vmatpush1.bf16.xpose.msra.mxu0 0
  %3262 = vmatprep.subr.bf16.mxu0 0
  %3263 = vmatpush1.bf16.xpose.msra.mxu0 0
  %3264 = vmatprep.subr.bf16.mxu0 0
  %3265 = vmatpush1.bf16.xpose.msra.mxu0 0
  %3266 = vmatprep.subr.bf16.mxu0 0
  %3267 = vmatpush1.bf16.xpose.msra.mxu0 0
  %3268 = vmatprep.subr.bf16.mxu0 0
  %3269 = vmatpush1.bf16.xpose.msra.mxu0 0
  %3270 = vmatprep.mubr.bf16.mxu0 %v1001
  %3271 = vmatmul.mubr.bf16.gmra.mrb[0].mxu0 %v1000
  %v3272 = vpop.f32.mrb[0].mxu0
  %v3273 = vadd.f32 %v3233, %v3272
  %v3274 = vpop.f32.mrb[0].mxu0
  %v3275 = vpop.f32.mrb[0].mxu0
  %v3276 = vpop.f32.mrb[0].mxu0
  %3277 = vdwg.mxu0
  %3278 = vmatprep.subr.bf16.mxu0 %v1989
  %3279 = vmatpush1.bf16.xpose.msra.mxu0 %v1988
  %3280 = vmatprep.subr.bf16.mxu0 %v2112
  %3281 = vmatpush1.bf16.xpose.msra.mxu0 %v2111
  %3282 = vmatprep.subr.bf16.mxu0 0
  %3283 = vmatpush1.bf16.xpose.msra.mxu0 0
  %3284 = vmatprep.subr.bf16.mxu0 0
  %3285 = vmatpush1.bf16.xpose.msra.mxu0 0
  %3286 = vmatprep.subr.bf16.mxu0 0
  %3287 = vmatpush1.bf16.xpose.msra.mxu0 0
  %3288 = vmatprep.subr.bf16.mxu0 0
  %3289 = vmatpush1.bf16.xpose.msra.mxu0 0
  %3290 = vmatprep.subr.bf16.mxu0 0
  %3291 = vmatpush1.bf16.xpose.msra.mxu0 0
  %3292 = vmatprep.subr.bf16.mxu0 0
  %3293 = vmatpush1.bf16.xpose.msra.mxu0 0
  %3294 = vmatprep.subr.bf16.mxu0 0
  %3295 = vmatpush1.bf16.xpose.msra.mxu0 0
  %3296 = vmatprep.subr.bf16.mxu0 0
  %3297 = vmatpush1.bf16.xpose.msra.mxu0 0
  %3298 = vmatprep.subr.bf16.mxu0 0
  %3299 = vmatpush1.bf16.xpose.msra.mxu0 0
  %3300 = vmatprep.subr.bf16.mxu0 0
  %3301 = vmatpush1.bf16.xpose.msra.mxu0 0
  %3302 = vmatprep.subr.bf16.mxu0 0
  %3303 = vmatpush1.bf16.xpose.msra.mxu0 0
  %3304 = vmatprep.subr.bf16.mxu0 0
  %3305 = vmatpush1.bf16.xpose.msra.mxu0 0
  %3306 = vmatprep.subr.bf16.mxu0 0
  %3307 = vmatpush1.bf16.xpose.msra.mxu0 0
  %3308 = vmatprep.subr.bf16.mxu0 0
  %3309 = vmatpush1.bf16.xpose.msra.mxu0 0
  %3310 = vmatprep.mubr.bf16.mxu0 %v1003
  %3311 = vmatmul.mubr.bf16.gmra.mrb[0].mxu0 %v1002
  %v3312 = vpop.f32.mrb[0].mxu0
  %v3313 = vadd.f32 %v3273, %v3312
  %v3314 = vpop.f32.mrb[0].mxu0
  %v3315 = vpop.f32.mrb[0].mxu0
  %v3316 = vpop.f32.mrb[0].mxu0
  %3317 = vdwg.mxu0
  %3318 = vmatprep.subr.bf16.mxu0 %v1991
  %3319 = vmatpush1.bf16.xpose.msra.mxu0 %v1990
  %3320 = vmatprep.subr.bf16.mxu0 %v2114
  %3321 = vmatpush1.bf16.xpose.msra.mxu0 %v2113
  %3322 = vmatprep.subr.bf16.mxu0 0
  %3323 = vmatpush1.bf16.xpose.msra.mxu0 0
  %3324 = vmatprep.subr.bf16.mxu0 0
  %3325 = vmatpush1.bf16.xpose.msra.mxu0 0
  %3326 = vmatprep.subr.bf16.mxu0 0
  %3327 = vmatpush1.bf16.xpose.msra.mxu0 0
  %3328 = vmatprep.subr.bf16.mxu0 0
  %3329 = vmatpush1.bf16.xpose.msra.mxu0 0
  %3330 = vmatprep.subr.bf16.mxu0 0
  %3331 = vmatpush1.bf16.xpose.msra.mxu0 0
  %3332 = vmatprep.subr.bf16.mxu0 0
  %3333 = vmatpush1.bf16.xpose.msra.mxu0 0
  %3334 = vmatprep.subr.bf16.mxu0 0
  %3335 = vmatpush1.bf16.xpose.msra.mxu0 0
  %3336 = vmatprep.subr.bf16.mxu0 0
  %3337 = vmatpush1.bf16.xpose.msra.mxu0 0
  %3338 = vmatprep.subr.bf16.mxu0 0
  %3339 = vmatpush1.bf16.xpose.msra.mxu0 0
  %3340 = vmatprep.subr.bf16.mxu0 0
  %3341 = vmatpush1.bf16.xpose.msra.mxu0 0
  %3342 = vmatprep.subr.bf16.mxu0 0
  %3343 = vmatpush1.bf16.xpose.msra.mxu0 0
  %3344 = vmatprep.subr.bf16.mxu0 0
  %3345 = vmatpush1.bf16.xpose.msra.mxu0 0
  %3346 = vmatprep.subr.bf16.mxu0 0
  %3347 = vmatpush1.bf16.xpose.msra.mxu0 0
  %3348 = vmatprep.subr.bf16.mxu0 0
  %3349 = vmatpush1.bf16.xpose.msra.mxu0 0
  %3350 = vmatprep.mubr.bf16.mxu0 %v1005
  %3351 = vmatmul.mubr.bf16.gmra.mrb[0].mxu0 %v1004
  %v3352 = vpop.f32.mrb[0].mxu0
  %v3353 = vadd.f32 %v3313, %v3352
  %v3354 = vpop.f32.mrb[0].mxu0
  %v3355 = vpop.f32.mrb[0].mxu0
  %v3356 = vpop.f32.mrb[0].mxu0
  %3357 = vdwg.mxu0
  %3358 = vmatprep.subr.bf16.mxu0 %v1993
  %3359 = vmatpush1.bf16.xpose.msra.mxu0 %v1992
  %3360 = vmatprep.subr.bf16.mxu0 %v2116
  %3361 = vmatpush1.bf16.xpose.msra.mxu0 %v2115
  %3362 = vmatprep.subr.bf16.mxu0 0
  %3363 = vmatpush1.bf16.xpose.msra.mxu0 0
  %3364 = vmatprep.subr.bf16.mxu0 0
  %3365 = vmatpush1.bf16.xpose.msra.mxu0 0
  %3366 = vmatprep.subr.bf16.mxu0 0
  %3367 = vmatpush1.bf16.xpose.msra.mxu0 0
  %3368 = vmatprep.subr.bf16.mxu0 0
  %3369 = vmatpush1.bf16.xpose.msra.mxu0 0
  %3370 = vmatprep.subr.bf16.mxu0 0
  %3371 = vmatpush1.bf16.xpose.msra.mxu0 0
  %3372 = vmatprep.subr.bf16.mxu0 0
  %3373 = vmatpush1.bf16.xpose.msra.mxu0 0
  %3374 = vmatprep.subr.bf16.mxu0 0
  %3375 = vmatpush1.bf16.xpose.msra.mxu0 0
  %3376 = vmatprep.subr.bf16.mxu0 0
  %3377 = vmatpush1.bf16.xpose.msra.mxu0 0
  %3378 = vmatprep.subr.bf16.mxu0 0
  %3379 = vmatpush1.bf16.xpose.msra.mxu0 0
  %3380 = vmatprep.subr.bf16.mxu0 0
  %3381 = vmatpush1.bf16.xpose.msra.mxu0 0
  %3382 = vmatprep.subr.bf16.mxu0 0
  %3383 = vmatpush1.bf16.xpose.msra.mxu0 0
  %3384 = vmatprep.subr.bf16.mxu0 0
  %3385 = vmatpush1.bf16.xpose.msra.mxu0 0
  %3386 = vmatprep.subr.bf16.mxu0 0
  %3387 = vmatpush1.bf16.xpose.msra.mxu0 0
  %3388 = vmatprep.subr.bf16.mxu0 0
  %3389 = vmatpush1.bf16.xpose.msra.mxu0 0
  %3390 = vmatprep.mubr.bf16.mxu0 %v1007
  %3391 = vmatmul.mubr.bf16.gmra.mrb[0].mxu0 %v1006
  %v3392 = vpop.f32.mrb[0].mxu0
  %v3393 = vadd.f32 %v3353, %v3392
  %v3394 = vpop.f32.mrb[0].mxu0
  %v3395 = vpop.f32.mrb[0].mxu0
  %v3396 = vpop.f32.mrb[0].mxu0
  %3397 = vdwg.mxu0
  %3398 = vmatprep.subr.bf16.mxu0 %v1995
  %3399 = vmatpush1.bf16.xpose.msra.mxu0 %v1994
  %3400 = vmatprep.subr.bf16.mxu0 %v2118
  %3401 = vmatpush1.bf16.xpose.msra.mxu0 %v2117
  %3402 = vmatprep.subr.bf16.mxu0 0
  %3403 = vmatpush1.bf16.xpose.msra.mxu0 0
  %3404 = vmatprep.subr.bf16.mxu0 0
  %3405 = vmatpush1.bf16.xpose.msra.mxu0 0
  %3406 = vmatprep.subr.bf16.mxu0 0
  %3407 = vmatpush1.bf16.xpose.msra.mxu0 0
  %3408 = vmatprep.subr.bf16.mxu0 0
  %3409 = vmatpush1.bf16.xpose.msra.mxu0 0
  %3410 = vmatprep.subr.bf16.mxu0 0
  %3411 = vmatpush1.bf16.xpose.msra.mxu0 0
  %3412 = vmatprep.subr.bf16.mxu0 0
  %3413 = vmatpush1.bf16.xpose.msra.mxu0 0
  %3414 = vmatprep.subr.bf16.mxu0 0
  %3415 = vmatpush1.bf16.xpose.msra.mxu0 0
  %3416 = vmatprep.subr.bf16.mxu0 0
  %3417 = vmatpush1.bf16.xpose.msra.mxu0 0
  %3418 = vmatprep.subr.bf16.mxu0 0
  %3419 = vmatpush1.bf16.xpose.msra.mxu0 0
  %3420 = vmatprep.subr.bf16.mxu0 0
  %3421 = vmatpush1.bf16.xpose.msra.mxu0 0
  %3422 = vmatprep.subr.bf16.mxu0 0
  %3423 = vmatpush1.bf16.xpose.msra.mxu0 0
  %3424 = vmatprep.subr.bf16.mxu0 0
  %3425 = vmatpush1.bf16.xpose.msra.mxu0 0
  %3426 = vmatprep.subr.bf16.mxu0 0
  %3427 = vmatpush1.bf16.xpose.msra.mxu0 0
  %3428 = vmatprep.subr.bf16.mxu0 0
  %3429 = vmatpush1.bf16.xpose.msra.mxu0 0
  %3430 = vmatprep.mubr.bf16.mxu0 %v1009
  %3431 = vmatmul.mubr.bf16.gmra.mrb[0].mxu0 %v1008
  %v3432 = vpop.f32.mrb[0].mxu0
  %v3433 = vadd.f32 %v3393, %v3432
  %v3434 = vpop.f32.mrb[0].mxu0
  %v3435 = vpop.f32.mrb[0].mxu0
  %v3436 = vpop.f32.mrb[0].mxu0
  %3437 = vdwg.mxu0
  %3438 = vmatprep.subr.bf16.mxu0 %v1997
  %3439 = vmatpush1.bf16.xpose.msra.mxu0 %v1996
  %3440 = vmatprep.subr.bf16.mxu0 %v2120
  %3441 = vmatpush1.bf16.xpose.msra.mxu0 %v2119
  %3442 = vmatprep.subr.bf16.mxu0 0
  %3443 = vmatpush1.bf16.xpose.msra.mxu0 0
  %3444 = vmatprep.subr.bf16.mxu0 0
  %3445 = vmatpush1.bf16.xpose.msra.mxu0 0
  %3446 = vmatprep.subr.bf16.mxu0 0
  %3447 = vmatpush1.bf16.xpose.msra.mxu0 0
  %3448 = vmatprep.subr.bf16.mxu0 0
  %3449 = vmatpush1.bf16.xpose.msra.mxu0 0
  %3450 = vmatprep.subr.bf16.mxu0 0
  %3451 = vmatpush1.bf16.xpose.msra.mxu0 0
  %3452 = vmatprep.subr.bf16.mxu0 0
  %3453 = vmatpush1.bf16.xpose.msra.mxu0 0
  %3454 = vmatprep.subr.bf16.mxu0 0
  %3455 = vmatpush1.bf16.xpose.msra.mxu0 0
  %3456 = vmatprep.subr.bf16.mxu0 0
  %3457 = vmatpush1.bf16.xpose.msra.mxu0 0
  %3458 = vmatprep.subr.bf16.mxu0 0
  %3459 = vmatpush1.bf16.xpose.msra.mxu0 0
  %3460 = vmatprep.subr.bf16.mxu0 0
  %3461 = vmatpush1.bf16.xpose.msra.mxu0 0
  %3462 = vmatprep.subr.bf16.mxu0 0
  %3463 = vmatpush1.bf16.xpose.msra.mxu0 0
  %3464 = vmatprep.subr.bf16.mxu0 0
  %3465 = vmatpush1.bf16.xpose.msra.mxu0 0
  %3466 = vmatprep.subr.bf16.mxu0 0
  %3467 = vmatpush1.bf16.xpose.msra.mxu0 0
  %3468 = vmatprep.subr.bf16.mxu0 0
  %3469 = vmatpush1.bf16.xpose.msra.mxu0 0
  %3470 = vmatprep.mubr.bf16.mxu0 %v1011
  %3471 = vmatmul.mubr.bf16.gmra.mrb[0].mxu0 %v1010
  %v3472 = vpop.f32.mrb[0].mxu0
  %v3473 = vadd.f32 %v3433, %v3472
  %v3474 = vpop.f32.mrb[0].mxu0
  %v3475 = vpop.f32.mrb[0].mxu0
  %v3476 = vpop.f32.mrb[0].mxu0
  %3477 = vdwg.mxu0
  %3478 = vmatprep.subr.bf16.mxu0 %v1999
  %3479 = vmatpush1.bf16.xpose.msra.mxu0 %v1998
  %3480 = vmatprep.subr.bf16.mxu0 %v2122
  %3481 = vmatpush1.bf16.xpose.msra.mxu0 %v2121
  %3482 = vmatprep.subr.bf16.mxu0 0
  %3483 = vmatpush1.bf16.xpose.msra.mxu0 0
  %3484 = vmatprep.subr.bf16.mxu0 0
  %3485 = vmatpush1.bf16.xpose.msra.mxu0 0
  %3486 = vmatprep.subr.bf16.mxu0 0
  %3487 = vmatpush1.bf16.xpose.msra.mxu0 0
  %3488 = vmatprep.subr.bf16.mxu0 0
  %3489 = vmatpush1.bf16.xpose.msra.mxu0 0
  %3490 = vmatprep.subr.bf16.mxu0 0
  %3491 = vmatpush1.bf16.xpose.msra.mxu0 0
  %3492 = vmatprep.subr.bf16.mxu0 0
  %3493 = vmatpush1.bf16.xpose.msra.mxu0 0
  %3494 = vmatprep.subr.bf16.mxu0 0
  %3495 = vmatpush1.bf16.xpose.msra.mxu0 0
  %3496 = vmatprep.subr.bf16.mxu0 0
  %3497 = vmatpush1.bf16.xpose.msra.mxu0 0
  %3498 = vmatprep.subr.bf16.mxu0 0
  %3499 = vmatpush1.bf16.xpose.msra.mxu0 0
  %3500 = vmatprep.subr.bf16.mxu0 0
  %3501 = vmatpush1.bf16.xpose.msra.mxu0 0
  %3502 = vmatprep.subr.bf16.mxu0 0
  %3503 = vmatpush1.bf16.xpose.msra.mxu0 0
  %3504 = vmatprep.subr.bf16.mxu0 0
  %3505 = vmatpush1.bf16.xpose.msra.mxu0 0
  %3506 = vmatprep.subr.bf16.mxu0 0
  %3507 = vmatpush1.bf16.xpose.msra.mxu0 0
  %3508 = vmatprep.subr.bf16.mxu0 0
  %3509 = vmatpush1.bf16.xpose.msra.mxu0 0
  %3510 = vmatprep.mubr.bf16.mxu0 %v1013
  %3511 = vmatmul.mubr.bf16.gmra.mrb[0].mxu0 %v1012
  %v3512 = vpop.f32.mrb[0].mxu0
  %v3513 = vadd.f32 %v3473, %v3512
  %v3514 = vpop.f32.mrb[0].mxu0
  %v3515 = vpop.f32.mrb[0].mxu0
  %v3516 = vpop.f32.mrb[0].mxu0
  %3517 = vdwg.mxu0
  %3518 = vmatprep.subr.bf16.mxu0 %v2001
  %3519 = vmatpush1.bf16.xpose.msra.mxu0 %v2000
  %3520 = vmatprep.subr.bf16.mxu0 %v2124
  %3521 = vmatpush1.bf16.xpose.msra.mxu0 %v2123
  %3522 = vmatprep.subr.bf16.mxu0 0
  %3523 = vmatpush1.bf16.xpose.msra.mxu0 0
  %3524 = vmatprep.subr.bf16.mxu0 0
  %3525 = vmatpush1.bf16.xpose.msra.mxu0 0
  %3526 = vmatprep.subr.bf16.mxu0 0
  %3527 = vmatpush1.bf16.xpose.msra.mxu0 0
  %3528 = vmatprep.subr.bf16.mxu0 0
  %3529 = vmatpush1.bf16.xpose.msra.mxu0 0
  %3530 = vmatprep.subr.bf16.mxu0 0
  %3531 = vmatpush1.bf16.xpose.msra.mxu0 0
  %3532 = vmatprep.subr.bf16.mxu0 0
  %3533 = vmatpush1.bf16.xpose.msra.mxu0 0
  %3534 = vmatprep.subr.bf16.mxu0 0
  %3535 = vmatpush1.bf16.xpose.msra.mxu0 0
  %3536 = vmatprep.subr.bf16.mxu0 0
  %3537 = vmatpush1.bf16.xpose.msra.mxu0 0
  %3538 = vmatprep.subr.bf16.mxu0 0
  %3539 = vmatpush1.bf16.xpose.msra.mxu0 0
  %3540 = vmatprep.subr.bf16.mxu0 0
  %3541 = vmatpush1.bf16.xpose.msra.mxu0 0
  %3542 = vmatprep.subr.bf16.mxu0 0
  %3543 = vmatpush1.bf16.xpose.msra.mxu0 0
  %3544 = vmatprep.subr.bf16.mxu0 0
  %3545 = vmatpush1.bf16.xpose.msra.mxu0 0
  %3546 = vmatprep.subr.bf16.mxu0 0
  %3547 = vmatpush1.bf16.xpose.msra.mxu0 0
  %3548 = vmatprep.subr.bf16.mxu0 0
  %3549 = vmatpush1.bf16.xpose.msra.mxu0 0
  %3550 = vmatprep.mubr.bf16.mxu0 %v1015
  %3551 = vmatmul.mubr.bf16.gmra.mrb[0].mxu0 %v1014
  %v3552 = vpop.f32.mrb[0].mxu0
  %v3553 = vadd.f32 %v3513, %v3552
  %v3554 = vpop.f32.mrb[0].mxu0
  %v3555 = vpop.f32.mrb[0].mxu0
  %v3556 = vpop.f32.mrb[0].mxu0
  %3557 = vdwg.mxu0
  %3558 = vmatprep.subr.bf16.mxu0 %v2003
  %3559 = vmatpush1.bf16.xpose.msra.mxu0 %v2002
  %3560 = vmatprep.subr.bf16.mxu0 %v2126
  %3561 = vmatpush1.bf16.xpose.msra.mxu0 %v2125
  %3562 = vmatprep.subr.bf16.mxu0 0
  %3563 = vmatpush1.bf16.xpose.msra.mxu0 0
  %3564 = vmatprep.subr.bf16.mxu0 0
  %3565 = vmatpush1.bf16.xpose.msra.mxu0 0
  %3566 = vmatprep.subr.bf16.mxu0 0
  %3567 = vmatpush1.bf16.xpose.msra.mxu0 0
  %3568 = vmatprep.subr.bf16.mxu0 0
  %3569 = vmatpush1.bf16.xpose.msra.mxu0 0
  %3570 = vmatprep.subr.bf16.mxu0 0
  %3571 = vmatpush1.bf16.xpose.msra.mxu0 0
  %3572 = vmatprep.subr.bf16.mxu0 0
  %3573 = vmatpush1.bf16.xpose.msra.mxu0 0
  %3574 = vmatprep.subr.bf16.mxu0 0
  %3575 = vmatpush1.bf16.xpose.msra.mxu0 0
  %3576 = vmatprep.subr.bf16.mxu0 0
  %3577 = vmatpush1.bf16.xpose.msra.mxu0 0
  %3578 = vmatprep.subr.bf16.mxu0 0
  %3579 = vmatpush1.bf16.xpose.msra.mxu0 0
  %3580 = vmatprep.subr.bf16.mxu0 0
  %3581 = vmatpush1.bf16.xpose.msra.mxu0 0
  %3582 = vmatprep.subr.bf16.mxu0 0
  %3583 = vmatpush1.bf16.xpose.msra.mxu0 0
  %3584 = vmatprep.subr.bf16.mxu0 0
  %3585 = vmatpush1.bf16.xpose.msra.mxu0 0
  %3586 = vmatprep.subr.bf16.mxu0 0
  %3587 = vmatpush1.bf16.xpose.msra.mxu0 0
  %3588 = vmatprep.subr.bf16.mxu0 0
  %3589 = vmatpush1.bf16.xpose.msra.mxu0 0
  %3590 = vmatprep.mubr.bf16.mxu0 %v1017
  %3591 = vmatmul.mubr.bf16.gmra.mrb[0].mxu0 %v1016
  %v3592 = vpop.f32.mrb[0].mxu0
  %v3593 = vadd.f32 %v3553, %v3592
  %v3594 = vpop.f32.mrb[0].mxu0
  %v3595 = vpop.f32.mrb[0].mxu0
  %v3596 = vpop.f32.mrb[0].mxu0
  %3597 = vdwg.mxu0
  %3598 = vmatprep.subr.bf16.mxu0 %v2005
  %3599 = vmatpush1.bf16.xpose.msra.mxu0 %v2004
  %3600 = vmatprep.subr.bf16.mxu0 %v2128
  %3601 = vmatpush1.bf16.xpose.msra.mxu0 %v2127
  %3602 = vmatprep.subr.bf16.mxu0 0
  %3603 = vmatpush1.bf16.xpose.msra.mxu0 0
  %3604 = vmatprep.subr.bf16.mxu0 0
  %3605 = vmatpush1.bf16.xpose.msra.mxu0 0
  %3606 = vmatprep.subr.bf16.mxu0 0
  %3607 = vmatpush1.bf16.xpose.msra.mxu0 0
  %3608 = vmatprep.subr.bf16.mxu0 0
  %3609 = vmatpush1.bf16.xpose.msra.mxu0 0
  %3610 = vmatprep.subr.bf16.mxu0 0
  %3611 = vmatpush1.bf16.xpose.msra.mxu0 0
  %3612 = vmatprep.subr.bf16.mxu0 0
  %3613 = vmatpush1.bf16.xpose.msra.mxu0 0
  %3614 = vmatprep.subr.bf16.mxu0 0
  %3615 = vmatpush1.bf16.xpose.msra.mxu0 0
  %3616 = vmatprep.subr.bf16.mxu0 0
  %3617 = vmatpush1.bf16.xpose.msra.mxu0 0
  %3618 = vmatprep.subr.bf16.mxu0 0
  %3619 = vmatpush1.bf16.xpose.msra.mxu0 0
  %3620 = vmatprep.subr.bf16.mxu0 0
  %3621 = vmatpush1.bf16.xpose.msra.mxu0 0
  %3622 = vmatprep.subr.bf16.mxu0 0
  %3623 = vmatpush1.bf16.xpose.msra.mxu0 0
  %3624 = vmatprep.subr.bf16.mxu0 0
  %3625 = vmatpush1.bf16.xpose.msra.mxu0 0
  %3626 = vmatprep.subr.bf16.mxu0 0
  %3627 = vmatpush1.bf16.xpose.msra.mxu0 0
  %3628 = vmatprep.subr.bf16.mxu0 0
  %3629 = vmatpush1.bf16.xpose.msra.mxu0 0
  %3630 = vmatprep.mubr.bf16.mxu0 %v1019
  %3631 = vmatmul.mubr.bf16.gmra.mrb[0].mxu0 %v1018
  %v3632 = vpop.f32.mrb[0].mxu0
  %v3633 = vadd.f32 %v3593, %v3632
  %v3634 = vpop.f32.mrb[0].mxu0
  %v3635 = vpop.f32.mrb[0].mxu0
  %v3636 = vpop.f32.mrb[0].mxu0
  %3637 = vdwg.mxu0
  %3638 = vmatprep.subr.bf16.mxu0 %v2007
  %3639 = vmatpush1.bf16.xpose.msra.mxu0 %v2006
  %3640 = vmatprep.subr.bf16.mxu0 %v2130
  %3641 = vmatpush1.bf16.xpose.msra.mxu0 %v2129
  %3642 = vmatprep.subr.bf16.mxu0 0
  %3643 = vmatpush1.bf16.xpose.msra.mxu0 0
  %3644 = vmatprep.subr.bf16.mxu0 0
  %3645 = vmatpush1.bf16.xpose.msra.mxu0 0
  %3646 = vmatprep.subr.bf16.mxu0 0
  %3647 = vmatpush1.bf16.xpose.msra.mxu0 0
  %3648 = vmatprep.subr.bf16.mxu0 0
  %3649 = vmatpush1.bf16.xpose.msra.mxu0 0
  %3650 = vmatprep.subr.bf16.mxu0 0
  %3651 = vmatpush1.bf16.xpose.msra.mxu0 0
  %3652 = vmatprep.subr.bf16.mxu0 0
  %3653 = vmatpush1.bf16.xpose.msra.mxu0 0
  %3654 = vmatprep.subr.bf16.mxu0 0
  %3655 = vmatpush1.bf16.xpose.msra.mxu0 0
  %3656 = vmatprep.subr.bf16.mxu0 0
  %3657 = vmatpush1.bf16.xpose.msra.mxu0 0
  %3658 = vmatprep.subr.bf16.mxu0 0
  %3659 = vmatpush1.bf16.xpose.msra.mxu0 0
  %3660 = vmatprep.subr.bf16.mxu0 0
  %3661 = vmatpush1.bf16.xpose.msra.mxu0 0
  %3662 = vmatprep.subr.bf16.mxu0 0
  %3663 = vmatpush1.bf16.xpose.msra.mxu0 0
  %3664 = vmatprep.subr.bf16.mxu0 0
  %3665 = vmatpush1.bf16.xpose.msra.mxu0 0
  %3666 = vmatprep.subr.bf16.mxu0 0
  %3667 = vmatpush1.bf16.xpose.msra.mxu0 0
  %3668 = vmatprep.subr.bf16.mxu0 0
  %3669 = vmatpush1.bf16.xpose.msra.mxu0 0
  %3670 = vmatprep.mubr.bf16.mxu0 %v1021
  %3671 = vmatmul.mubr.bf16.gmra.mrb[0].mxu0 %v1020
  %v3672 = vpop.f32.mrb[0].mxu0
  %v3673 = vadd.f32 %v3633, %v3672
  %v3674 = vpop.f32.mrb[0].mxu0
  %v3675 = vpop.f32.mrb[0].mxu0
  %v3676 = vpop.f32.mrb[0].mxu0
  %3677 = vdwg.mxu0
  %3678 = vmatprep.subr.bf16.mxu0 %v2009
  %3679 = vmatpush1.bf16.xpose.msra.mxu0 %v2008
  %3680 = vmatprep.subr.bf16.mxu0 %v2132
  %3681 = vmatpush1.bf16.xpose.msra.mxu0 %v2131
  %3682 = vmatprep.subr.bf16.mxu0 0
  %3683 = vmatpush1.bf16.xpose.msra.mxu0 0
  %3684 = vmatprep.subr.bf16.mxu0 0
  %3685 = vmatpush1.bf16.xpose.msra.mxu0 0
  %3686 = vmatprep.subr.bf16.mxu0 0
  %3687 = vmatpush1.bf16.xpose.msra.mxu0 0
  %3688 = vmatprep.subr.bf16.mxu0 0
  %3689 = vmatpush1.bf16.xpose.msra.mxu0 0
  %3690 = vmatprep.subr.bf16.mxu0 0
  %3691 = vmatpush1.bf16.xpose.msra.mxu0 0
  %3692 = vmatprep.subr.bf16.mxu0 0
  %3693 = vmatpush1.bf16.xpose.msra.mxu0 0
  %3694 = vmatprep.subr.bf16.mxu0 0
  %3695 = vmatpush1.bf16.xpose.msra.mxu0 0
  %3696 = vmatprep.subr.bf16.mxu0 0
  %3697 = vmatpush1.bf16.xpose.msra.mxu0 0
  %3698 = vmatprep.subr.bf16.mxu0 0
  %3699 = vmatpush1.bf16.xpose.msra.mxu0 0
  %3700 = vmatprep.subr.bf16.mxu0 0
  %3701 = vmatpush1.bf16.xpose.msra.mxu0 0
  %3702 = vmatprep.subr.bf16.mxu0 0
  %3703 = vmatpush1.bf16.xpose.msra.mxu0 0
  %3704 = vmatprep.subr.bf16.mxu0 0
  %3705 = vmatpush1.bf16.xpose.msra.mxu0 0
  %3706 = vmatprep.subr.bf16.mxu0 0
  %3707 = vmatpush1.bf16.xpose.msra.mxu0 0
  %3708 = vmatprep.subr.bf16.mxu0 0
  %3709 = vmatpush1.bf16.xpose.msra.mxu0 0
  %3710 = vmatprep.mubr.bf16.mxu0 %v1023
  %3711 = vmatmul.mubr.bf16.gmra.mrb[0].mxu0 %v1022
  %v3712 = vpop.f32.mrb[0].mxu0
  %v3713 = vadd.f32 %v3673, %v3712
  %v3714 = vpop.f32.mrb[0].mxu0
  %v3715 = vpop.f32.mrb[0].mxu0
  %v3716 = vpop.f32.mrb[0].mxu0
  %3717 = vdwg.mxu0
  %3718 = vmatprep.subr.bf16.mxu0 %v2011
  %3719 = vmatpush1.bf16.xpose.msra.mxu0 %v2010
  %3720 = vmatprep.subr.bf16.mxu0 %v2134
  %3721 = vmatpush1.bf16.xpose.msra.mxu0 %v2133
  %3722 = vmatprep.subr.bf16.mxu0 0
  %3723 = vmatpush1.bf16.xpose.msra.mxu0 0
  %3724 = vmatprep.subr.bf16.mxu0 0
  %3725 = vmatpush1.bf16.xpose.msra.mxu0 0
  %3726 = vmatprep.subr.bf16.mxu0 0
  %3727 = vmatpush1.bf16.xpose.msra.mxu0 0
  %3728 = vmatprep.subr.bf16.mxu0 0
  %3729 = vmatpush1.bf16.xpose.msra.mxu0 0
  %3730 = vmatprep.subr.bf16.mxu0 0
  %3731 = vmatpush1.bf16.xpose.msra.mxu0 0
  %3732 = vmatprep.subr.bf16.mxu0 0
  %3733 = vmatpush1.bf16.xpose.msra.mxu0 0
  %3734 = vmatprep.subr.bf16.mxu0 0
  %3735 = vmatpush1.bf16.xpose.msra.mxu0 0
  %3736 = vmatprep.subr.bf16.mxu0 0
  %3737 = vmatpush1.bf16.xpose.msra.mxu0 0
  %3738 = vmatprep.subr.bf16.mxu0 0
  %3739 = vmatpush1.bf16.xpose.msra.mxu0 0
  %3740 = vmatprep.subr.bf16.mxu0 0
  %3741 = vmatpush1.bf16.xpose.msra.mxu0 0
  %3742 = vmatprep.subr.bf16.mxu0 0
  %3743 = vmatpush1.bf16.xpose.msra.mxu0 0
  %3744 = vmatprep.subr.bf16.mxu0 0
  %3745 = vmatpush1.bf16.xpose.msra.mxu0 0
  %3746 = vmatprep.subr.bf16.mxu0 0
  %3747 = vmatpush1.bf16.xpose.msra.mxu0 0
  %3748 = vmatprep.subr.bf16.mxu0 0
  %3749 = vmatpush1.bf16.xpose.msra.mxu0 0
  %3750 = vmatprep.mubr.bf16.mxu0 %v1025
  %3751 = vmatmul.mubr.bf16.gmra.mrb[0].mxu0 %v1024
  %v3752 = vpop.f32.mrb[0].mxu0
  %v3753 = vadd.f32 %v3713, %v3752
  %v3754 = vpop.f32.mrb[0].mxu0
  %v3755 = vpop.f32.mrb[0].mxu0
  %v3756 = vpop.f32.mrb[0].mxu0
  %3757 = vdwg.mxu0
  %3758 = vmatprep.subr.bf16.mxu0 %v2013
  %3759 = vmatpush1.bf16.xpose.msra.mxu0 %v2012
  %3760 = vmatprep.subr.bf16.mxu0 %v2136
  %3761 = vmatpush1.bf16.xpose.msra.mxu0 %v2135
  %3762 = vmatprep.subr.bf16.mxu0 0
  %3763 = vmatpush1.bf16.xpose.msra.mxu0 0
  %3764 = vmatprep.subr.bf16.mxu0 0
  %3765 = vmatpush1.bf16.xpose.msra.mxu0 0
  %3766 = vmatprep.subr.bf16.mxu0 0
  %3767 = vmatpush1.bf16.xpose.msra.mxu0 0
  %3768 = vmatprep.subr.bf16.mxu0 0
  %3769 = vmatpush1.bf16.xpose.msra.mxu0 0
  %3770 = vmatprep.subr.bf16.mxu0 0
  %3771 = vmatpush1.bf16.xpose.msra.mxu0 0
  %3772 = vmatprep.subr.bf16.mxu0 0
  %3773 = vmatpush1.bf16.xpose.msra.mxu0 0
  %3774 = vmatprep.subr.bf16.mxu0 0
  %3775 = vmatpush1.bf16.xpose.msra.mxu0 0
  %3776 = vmatprep.subr.bf16.mxu0 0
  %3777 = vmatpush1.bf16.xpose.msra.mxu0 0
  %3778 = vmatprep.subr.bf16.mxu0 0
  %3779 = vmatpush1.bf16.xpose.msra.mxu0 0
  %3780 = vmatprep.subr.bf16.mxu0 0
  %3781 = vmatpush1.bf16.xpose.msra.mxu0 0
  %3782 = vmatprep.subr.bf16.mxu0 0
  %3783 = vmatpush1.bf16.xpose.msra.mxu0 0
  %3784 = vmatprep.subr.bf16.mxu0 0
  %3785 = vmatpush1.bf16.xpose.msra.mxu0 0
  %3786 = vmatprep.subr.bf16.mxu0 0
  %3787 = vmatpush1.bf16.xpose.msra.mxu0 0
  %3788 = vmatprep.subr.bf16.mxu0 0
  %3789 = vmatpush1.bf16.xpose.msra.mxu0 0
  %3790 = vmatprep.mubr.bf16.mxu0 %v1027
  %3791 = vmatmul.mubr.bf16.gmra.mrb[0].mxu0 %v1026
  %v3792 = vpop.f32.mrb[0].mxu0
  %v3793 = vadd.f32 %v3753, %v3792
  %v3794 = vpop.f32.mrb[0].mxu0
  %v3795 = vpop.f32.mrb[0].mxu0
  %v3796 = vpop.f32.mrb[0].mxu0
  %3797 = vdwg.mxu0
  %3798 = vmatprep.subr.bf16.mxu0 %v2015
  %3799 = vmatpush1.bf16.xpose.msra.mxu0 %v2014
  %3800 = vmatprep.subr.bf16.mxu0 %v2138
  %3801 = vmatpush1.bf16.xpose.msra.mxu0 %v2137
  %3802 = vmatprep.subr.bf16.mxu0 0
  %3803 = vmatpush1.bf16.xpose.msra.mxu0 0
  %3804 = vmatprep.subr.bf16.mxu0 0
  %3805 = vmatpush1.bf16.xpose.msra.mxu0 0
  %3806 = vmatprep.subr.bf16.mxu0 0
  %3807 = vmatpush1.bf16.xpose.msra.mxu0 0
  %3808 = vmatprep.subr.bf16.mxu0 0
  %3809 = vmatpush1.bf16.xpose.msra.mxu0 0
  %3810 = vmatprep.subr.bf16.mxu0 0
  %3811 = vmatpush1.bf16.xpose.msra.mxu0 0
  %3812 = vmatprep.subr.bf16.mxu0 0
  %3813 = vmatpush1.bf16.xpose.msra.mxu0 0
  %3814 = vmatprep.subr.bf16.mxu0 0
  %3815 = vmatpush1.bf16.xpose.msra.mxu0 0
  %3816 = vmatprep.subr.bf16.mxu0 0
  %3817 = vmatpush1.bf16.xpose.msra.mxu0 0
  %3818 = vmatprep.subr.bf16.mxu0 0
  %3819 = vmatpush1.bf16.xpose.msra.mxu0 0
  %3820 = vmatprep.subr.bf16.mxu0 0
  %3821 = vmatpush1.bf16.xpose.msra.mxu0 0
  %3822 = vmatprep.subr.bf16.mxu0 0
  %3823 = vmatpush1.bf16.xpose.msra.mxu0 0
  %3824 = vmatprep.subr.bf16.mxu0 0
  %3825 = vmatpush1.bf16.xpose.msra.mxu0 0
  %3826 = vmatprep.subr.bf16.mxu0 0
  %3827 = vmatpush1.bf16.xpose.msra.mxu0 0
  %3828 = vmatprep.subr.bf16.mxu0 0
  %3829 = vmatpush1.bf16.xpose.msra.mxu0 0
  %3830 = vmatprep.mubr.bf16.mxu0 %v1029
  %3831 = vmatmul.mubr.bf16.gmra.mrb[0].mxu0 %v1028
  %v3832 = vpop.f32.mrb[0].mxu0
  %v3833 = vadd.f32 %v3793, %v3832
  %v3834 = vpop.f32.mrb[0].mxu0
  %v3835 = vpop.f32.mrb[0].mxu0
  %v3836 = vpop.f32.mrb[0].mxu0
  %3837 = vdwg.mxu0
  %3838 = vmatprep.subr.bf16.mxu0 %v2017
  %3839 = vmatpush1.bf16.xpose.msra.mxu0 %v2016
  %3840 = vmatprep.subr.bf16.mxu0 %v2140
  %3841 = vmatpush1.bf16.xpose.msra.mxu0 %v2139
  %3842 = vmatprep.subr.bf16.mxu0 0
  %3843 = vmatpush1.bf16.xpose.msra.mxu0 0
  %3844 = vmatprep.subr.bf16.mxu0 0
  %3845 = vmatpush1.bf16.xpose.msra.mxu0 0
  %3846 = vmatprep.subr.bf16.mxu0 0
  %3847 = vmatpush1.bf16.xpose.msra.mxu0 0
  %3848 = vmatprep.subr.bf16.mxu0 0
  %3849 = vmatpush1.bf16.xpose.msra.mxu0 0
  %3850 = vmatprep.subr.bf16.mxu0 0
  %3851 = vmatpush1.bf16.xpose.msra.mxu0 0
  %3852 = vmatprep.subr.bf16.mxu0 0
  %3853 = vmatpush1.bf16.xpose.msra.mxu0 0
  %3854 = vmatprep.subr.bf16.mxu0 0
  %3855 = vmatpush1.bf16.xpose.msra.mxu0 0
  %3856 = vmatprep.subr.bf16.mxu0 0
  %3857 = vmatpush1.bf16.xpose.msra.mxu0 0
  %3858 = vmatprep.subr.bf16.mxu0 0
  %3859 = vmatpush1.bf16.xpose.msra.mxu0 0
  %3860 = vmatprep.subr.bf16.mxu0 0
  %3861 = vmatpush1.bf16.xpose.msra.mxu0 0
  %3862 = vmatprep.subr.bf16.mxu0 0
  %3863 = vmatpush1.bf16.xpose.msra.mxu0 0
  %3864 = vmatprep.subr.bf16.mxu0 0
  %3865 = vmatpush1.bf16.xpose.msra.mxu0 0
  %3866 = vmatprep.subr.bf16.mxu0 0
  %3867 = vmatpush1.bf16.xpose.msra.mxu0 0
  %3868 = vmatprep.subr.bf16.mxu0 0
  %3869 = vmatpush1.bf16.xpose.msra.mxu0 0
  %3870 = vmatprep.mubr.bf16.mxu0 %v1031
  %3871 = vmatmul.mubr.bf16.gmra.mrb[0].mxu0 %v1030
  %v3872 = vpop.f32.mrb[0].mxu0
  %v3873 = vadd.f32 %v3833, %v3872
  %v3874 = vpop.f32.mrb[0].mxu0
  %v3875 = vpop.f32.mrb[0].mxu0
  %v3876 = vpop.f32.mrb[0].mxu0
  %3877 = vdwg.mxu0
  %3878 = vmatprep.subr.bf16.mxu0 %v2019
  %3879 = vmatpush1.bf16.xpose.msra.mxu0 %v2018
  %3880 = vmatprep.subr.bf16.mxu0 %v2142
  %3881 = vmatpush1.bf16.xpose.msra.mxu0 %v2141
  %3882 = vmatprep.subr.bf16.mxu0 0
  %3883 = vmatpush1.bf16.xpose.msra.mxu0 0
  %3884 = vmatprep.subr.bf16.mxu0 0
  %3885 = vmatpush1.bf16.xpose.msra.mxu0 0
  %3886 = vmatprep.subr.bf16.mxu0 0
  %3887 = vmatpush1.bf16.xpose.msra.mxu0 0
  %3888 = vmatprep.subr.bf16.mxu0 0
  %3889 = vmatpush1.bf16.xpose.msra.mxu0 0
  %3890 = vmatprep.subr.bf16.mxu0 0
  %3891 = vmatpush1.bf16.xpose.msra.mxu0 0
  %3892 = vmatprep.subr.bf16.mxu0 0
  %3893 = vmatpush1.bf16.xpose.msra.mxu0 0
  %3894 = vmatprep.subr.bf16.mxu0 0
  %3895 = vmatpush1.bf16.xpose.msra.mxu0 0
  %3896 = vmatprep.subr.bf16.mxu0 0
  %3897 = vmatpush1.bf16.xpose.msra.mxu0 0
  %3898 = vmatprep.subr.bf16.mxu0 0
  %3899 = vmatpush1.bf16.xpose.msra.mxu0 0
  %3900 = vmatprep.subr.bf16.mxu0 0
  %3901 = vmatpush1.bf16.xpose.msra.mxu0 0
  %3902 = vmatprep.subr.bf16.mxu0 0
  %3903 = vmatpush1.bf16.xpose.msra.mxu0 0
  %3904 = vmatprep.subr.bf16.mxu0 0
  %3905 = vmatpush1.bf16.xpose.msra.mxu0 0
  %3906 = vmatprep.subr.bf16.mxu0 0
  %3907 = vmatpush1.bf16.xpose.msra.mxu0 0
  %3908 = vmatprep.subr.bf16.mxu0 0
  %3909 = vmatpush1.bf16.xpose.msra.mxu0 0
  %3910 = vmatprep.mubr.bf16.mxu0 %v1033
  %3911 = vmatmul.mubr.bf16.gmra.mrb[0].mxu0 %v1032
  %v3912 = vpop.f32.mrb[0].mxu0
  %v3913 = vadd.f32 %v3873, %v3912
  %v3914 = vpop.f32.mrb[0].mxu0
  %v3915 = vpop.f32.mrb[0].mxu0
  %v3916 = vpop.f32.mrb[0].mxu0
  %3917 = vdwg.mxu0
  %3918 = vmatprep.subr.bf16.mxu0 %v2021
  %3919 = vmatpush1.bf16.xpose.msra.mxu0 %v2020
  %3920 = vmatprep.subr.bf16.mxu0 %v2144
  %3921 = vmatpush1.bf16.xpose.msra.mxu0 %v2143
  %3922 = vmatprep.subr.bf16.mxu0 0
  %3923 = vmatpush1.bf16.xpose.msra.mxu0 0
  %3924 = vmatprep.subr.bf16.mxu0 0
  %3925 = vmatpush1.bf16.xpose.msra.mxu0 0
  %3926 = vmatprep.subr.bf16.mxu0 0
  %3927 = vmatpush1.bf16.xpose.msra.mxu0 0
  %3928 = vmatprep.subr.bf16.mxu0 0
  %3929 = vmatpush1.bf16.xpose.msra.mxu0 0
  %3930 = vmatprep.subr.bf16.mxu0 0
  %3931 = vmatpush1.bf16.xpose.msra.mxu0 0
  %3932 = vmatprep.subr.bf16.mxu0 0
  %3933 = vmatpush1.bf16.xpose.msra.mxu0 0
  %3934 = vmatprep.subr.bf16.mxu0 0
  %3935 = vmatpush1.bf16.xpose.msra.mxu0 0
  %3936 = vmatprep.subr.bf16.mxu0 0
  %3937 = vmatpush1.bf16.xpose.msra.mxu0 0
  %3938 = vmatprep.subr.bf16.mxu0 0
  %3939 = vmatpush1.bf16.xpose.msra.mxu0 0
  %3940 = vmatprep.subr.bf16.mxu0 0
  %3941 = vmatpush1.bf16.xpose.msra.mxu0 0
  %3942 = vmatprep.subr.bf16.mxu0 0
  %3943 = vmatpush1.bf16.xpose.msra.mxu0 0
  %3944 = vmatprep.subr.bf16.mxu0 0
  %3945 = vmatpush1.bf16.xpose.msra.mxu0 0
  %3946 = vmatprep.subr.bf16.mxu0 0
  %3947 = vmatpush1.bf16.xpose.msra.mxu0 0
  %3948 = vmatprep.subr.bf16.mxu0 0
  %3949 = vmatpush1.bf16.xpose.msra.mxu0 0
  %3950 = vmatprep.mubr.bf16.mxu0 %v1035
  %3951 = vmatmul.mubr.bf16.gmra.mrb[0].mxu0 %v1034
  %v3952 = vpop.f32.mrb[0].mxu0
  %v3953 = vadd.f32 %v3913, %v3952
  %v3954 = vpop.f32.mrb[0].mxu0
  %v3955 = vpop.f32.mrb[0].mxu0
  %v3956 = vpop.f32.mrb[0].mxu0
  %3957 = vdwg.mxu0
  %3958 = vmatprep.subr.bf16.mxu0 %v2023
  %3959 = vmatpush1.bf16.xpose.msra.mxu0 %v2022
  %3960 = vmatprep.subr.bf16.mxu0 %v2146
  %3961 = vmatpush1.bf16.xpose.msra.mxu0 %v2145
  %3962 = vmatprep.subr.bf16.mxu0 0
  %3963 = vmatpush1.bf16.xpose.msra.mxu0 0
  %3964 = vmatprep.subr.bf16.mxu0 0
  %3965 = vmatpush1.bf16.xpose.msra.mxu0 0
  %3966 = vmatprep.subr.bf16.mxu0 0
  %3967 = vmatpush1.bf16.xpose.msra.mxu0 0
  %3968 = vmatprep.subr.bf16.mxu0 0
  %3969 = vmatpush1.bf16.xpose.msra.mxu0 0
  %3970 = vmatprep.subr.bf16.mxu0 0
  %3971 = vmatpush1.bf16.xpose.msra.mxu0 0
  %3972 = vmatprep.subr.bf16.mxu0 0
  %3973 = vmatpush1.bf16.xpose.msra.mxu0 0
  %3974 = vmatprep.subr.bf16.mxu0 0
  %3975 = vmatpush1.bf16.xpose.msra.mxu0 0
  %3976 = vmatprep.subr.bf16.mxu0 0
  %3977 = vmatpush1.bf16.xpose.msra.mxu0 0
  %3978 = vmatprep.subr.bf16.mxu0 0
  %3979 = vmatpush1.bf16.xpose.msra.mxu0 0
  %3980 = vmatprep.subr.bf16.mxu0 0
  %3981 = vmatpush1.bf16.xpose.msra.mxu0 0
  %3982 = vmatprep.subr.bf16.mxu0 0
  %3983 = vmatpush1.bf16.xpose.msra.mxu0 0
  %3984 = vmatprep.subr.bf16.mxu0 0
  %3985 = vmatpush1.bf16.xpose.msra.mxu0 0
  %3986 = vmatprep.subr.bf16.mxu0 0
  %3987 = vmatpush1.bf16.xpose.msra.mxu0 0
  %3988 = vmatprep.subr.bf16.mxu0 0
  %3989 = vmatpush1.bf16.xpose.msra.mxu0 0
  %3990 = vmatprep.mubr.bf16.mxu0 %v1037
  %3991 = vmatmul.mubr.bf16.gmra.mrb[0].mxu0 %v1036
  %v3992 = vpop.f32.mrb[0].mxu0
  %v3993 = vadd.f32 %v3953, %v3992
  %v3994 = vpop.f32.mrb[0].mxu0
  %v3995 = vpop.f32.mrb[0].mxu0
  %v3996 = vpop.f32.mrb[0].mxu0
  %3997 = vdwg.mxu0
  %3998 = vmatprep.subr.bf16.mxu0 %v2025
  %3999 = vmatpush1.bf16.xpose.msra.mxu0 %v2024
  %4000 = vmatprep.subr.bf16.mxu0 %v2148
  %4001 = vmatpush1.bf16.xpose.msra.mxu0 %v2147
  %4002 = vmatprep.subr.bf16.mxu0 0
  %4003 = vmatpush1.bf16.xpose.msra.mxu0 0
  %4004 = vmatprep.subr.bf16.mxu0 0
  %4005 = vmatpush1.bf16.xpose.msra.mxu0 0
  %4006 = vmatprep.subr.bf16.mxu0 0
  %4007 = vmatpush1.bf16.xpose.msra.mxu0 0
  %4008 = vmatprep.subr.bf16.mxu0 0
  %4009 = vmatpush1.bf16.xpose.msra.mxu0 0
  %4010 = vmatprep.subr.bf16.mxu0 0
  %4011 = vmatpush1.bf16.xpose.msra.mxu0 0
  %4012 = vmatprep.subr.bf16.mxu0 0
  %4013 = vmatpush1.bf16.xpose.msra.mxu0 0
  %4014 = vmatprep.subr.bf16.mxu0 0
  %4015 = vmatpush1.bf16.xpose.msra.mxu0 0
  %4016 = vmatprep.subr.bf16.mxu0 0
  %4017 = vmatpush1.bf16.xpose.msra.mxu0 0
  %4018 = vmatprep.subr.bf16.mxu0 0
  %4019 = vmatpush1.bf16.xpose.msra.mxu0 0
  %4020 = vmatprep.subr.bf16.mxu0 0
  %4021 = vmatpush1.bf16.xpose.msra.mxu0 0
  %4022 = vmatprep.subr.bf16.mxu0 0
  %4023 = vmatpush1.bf16.xpose.msra.mxu0 0
  %4024 = vmatprep.subr.bf16.mxu0 0
  %4025 = vmatpush1.bf16.xpose.msra.mxu0 0
  %4026 = vmatprep.subr.bf16.mxu0 0
  %4027 = vmatpush1.bf16.xpose.msra.mxu0 0
  %4028 = vmatprep.subr.bf16.mxu0 0
  %4029 = vmatpush1.bf16.xpose.msra.mxu0 0
  %4030 = vmatprep.mubr.bf16.mxu0 %v1039
  %4031 = vmatmul.mubr.bf16.gmra.mrb[0].mxu0 %v1038
  %v4032 = vpop.f32.mrb[0].mxu0
  %v4033 = vadd.f32 %v3993, %v4032
  %v4034 = vpop.f32.mrb[0].mxu0
  %v4035 = vpop.f32.mrb[0].mxu0
  %v4036 = vpop.f32.mrb[0].mxu0
  %4037 = vdwg.mxu0
  %4038 = vmatprep.subr.bf16.mxu0 %v2027
  %4039 = vmatpush1.bf16.xpose.msra.mxu0 %v2026
  %4040 = vmatprep.subr.bf16.mxu0 %v2150
  %4041 = vmatpush1.bf16.xpose.msra.mxu0 %v2149
  %4042 = vmatprep.subr.bf16.mxu0 0
  %4043 = vmatpush1.bf16.xpose.msra.mxu0 0
  %4044 = vmatprep.subr.bf16.mxu0 0
  %4045 = vmatpush1.bf16.xpose.msra.mxu0 0
  %4046 = vmatprep.subr.bf16.mxu0 0
  %4047 = vmatpush1.bf16.xpose.msra.mxu0 0
  %4048 = vmatprep.subr.bf16.mxu0 0
  %4049 = vmatpush1.bf16.xpose.msra.mxu0 0
  %4050 = vmatprep.subr.bf16.mxu0 0
  %4051 = vmatpush1.bf16.xpose.msra.mxu0 0
  %4052 = vmatprep.subr.bf16.mxu0 0
  %4053 = vmatpush1.bf16.xpose.msra.mxu0 0
  %4054 = vmatprep.subr.bf16.mxu0 0
  %4055 = vmatpush1.bf16.xpose.msra.mxu0 0
  %4056 = vmatprep.subr.bf16.mxu0 0
  %4057 = vmatpush1.bf16.xpose.msra.mxu0 0
  %4058 = vmatprep.subr.bf16.mxu0 0
  %4059 = vmatpush1.bf16.xpose.msra.mxu0 0
  %4060 = vmatprep.subr.bf16.mxu0 0
  %4061 = vmatpush1.bf16.xpose.msra.mxu0 0
  %4062 = vmatprep.subr.bf16.mxu0 0
  %4063 = vmatpush1.bf16.xpose.msra.mxu0 0
  %4064 = vmatprep.subr.bf16.mxu0 0
  %4065 = vmatpush1.bf16.xpose.msra.mxu0 0
  %4066 = vmatprep.subr.bf16.mxu0 0
  %4067 = vmatpush1.bf16.xpose.msra.mxu0 0
  %4068 = vmatprep.subr.bf16.mxu0 0
  %4069 = vmatpush1.bf16.xpose.msra.mxu0 0
  %4070 = vmatprep.mubr.bf16.mxu0 %v1041
  %4071 = vmatmul.mubr.bf16.gmra.mrb[0].mxu0 %v1040
  %v4072 = vpop.f32.mrb[0].mxu0
  %v4073 = vadd.f32 %v4033, %v4072
  %v4074 = vpop.f32.mrb[0].mxu0
  %v4075 = vpop.f32.mrb[0].mxu0
  %v4076 = vpop.f32.mrb[0].mxu0
  %4077 = vdwg.mxu0
  %4078 = vmatprep.subr.bf16.mxu0 %v2029
  %4079 = vmatpush1.bf16.xpose.msra.mxu0 %v2028
  %4080 = vmatprep.subr.bf16.mxu0 %v2152
  %4081 = vmatpush1.bf16.xpose.msra.mxu0 %v2151
  %4082 = vmatprep.subr.bf16.mxu0 0
  %4083 = vmatpush1.bf16.xpose.msra.mxu0 0
  %4084 = vmatprep.subr.bf16.mxu0 0
  %4085 = vmatpush1.bf16.xpose.msra.mxu0 0
  %4086 = vmatprep.subr.bf16.mxu0 0
  %4087 = vmatpush1.bf16.xpose.msra.mxu0 0
  %4088 = vmatprep.subr.bf16.mxu0 0
  %4089 = vmatpush1.bf16.xpose.msra.mxu0 0
  %4090 = vmatprep.subr.bf16.mxu0 0
  %4091 = vmatpush1.bf16.xpose.msra.mxu0 0
  %4092 = vmatprep.subr.bf16.mxu0 0
  %4093 = vmatpush1.bf16.xpose.msra.mxu0 0
  %4094 = vmatprep.subr.bf16.mxu0 0
  %4095 = vmatpush1.bf16.xpose.msra.mxu0 0
  %4096 = vmatprep.subr.bf16.mxu0 0
  %4097 = vmatpush1.bf16.xpose.msra.mxu0 0
  %4098 = vmatprep.subr.bf16.mxu0 0
  %4099 = vmatpush1.bf16.xpose.msra.mxu0 0
  %4100 = vmatprep.subr.bf16.mxu0 0
  %4101 = vmatpush1.bf16.xpose.msra.mxu0 0
  %4102 = vmatprep.subr.bf16.mxu0 0
  %4103 = vmatpush1.bf16.xpose.msra.mxu0 0
  %4104 = vmatprep.subr.bf16.mxu0 0
  %4105 = vmatpush1.bf16.xpose.msra.mxu0 0
  %4106 = vmatprep.subr.bf16.mxu0 0
  %4107 = vmatpush1.bf16.xpose.msra.mxu0 0
  %4108 = vmatprep.subr.bf16.mxu0 0
  %4109 = vmatpush1.bf16.xpose.msra.mxu0 0
  %4110 = vmatprep.mubr.bf16.mxu0 %v1043
  %4111 = vmatmul.mubr.bf16.gmra.mrb[0].mxu0 %v1042
  %v4112 = vpop.f32.mrb[0].mxu0
  %v4113 = vadd.f32 %v4073, %v4112
  %v4114 = vpop.f32.mrb[0].mxu0
  %v4115 = vpop.f32.mrb[0].mxu0
  %v4116 = vpop.f32.mrb[0].mxu0
  %4117 = vdwg.mxu0
  %4118 = vmatprep.subr.bf16.mxu0 %v2031
  %4119 = vmatpush1.bf16.xpose.msra.mxu0 %v2030
  %4120 = vmatprep.subr.bf16.mxu0 %v2154
  %4121 = vmatpush1.bf16.xpose.msra.mxu0 %v2153
  %4122 = vmatprep.subr.bf16.mxu0 0
  %4123 = vmatpush1.bf16.xpose.msra.mxu0 0
  %4124 = vmatprep.subr.bf16.mxu0 0
  %4125 = vmatpush1.bf16.xpose.msra.mxu0 0
  %4126 = vmatprep.subr.bf16.mxu0 0
  %4127 = vmatpush1.bf16.xpose.msra.mxu0 0
  %4128 = vmatprep.subr.bf16.mxu0 0
  %4129 = vmatpush1.bf16.xpose.msra.mxu0 0
  %4130 = vmatprep.subr.bf16.mxu0 0
  %4131 = vmatpush1.bf16.xpose.msra.mxu0 0
  %4132 = vmatprep.subr.bf16.mxu0 0
  %4133 = vmatpush1.bf16.xpose.msra.mxu0 0
  %4134 = vmatprep.subr.bf16.mxu0 0
  %4135 = vmatpush1.bf16.xpose.msra.mxu0 0
  %4136 = vmatprep.subr.bf16.mxu0 0
  %4137 = vmatpush1.bf16.xpose.msra.mxu0 0
  %4138 = vmatprep.subr.bf16.mxu0 0
  %4139 = vmatpush1.bf16.xpose.msra.mxu0 0
  %4140 = vmatprep.subr.bf16.mxu0 0
  %4141 = vmatpush1.bf16.xpose.msra.mxu0 0
  %4142 = vmatprep.subr.bf16.mxu0 0
  %4143 = vmatpush1.bf16.xpose.msra.mxu0 0
  %4144 = vmatprep.subr.bf16.mxu0 0
  %4145 = vmatpush1.bf16.xpose.msra.mxu0 0
  %4146 = vmatprep.subr.bf16.mxu0 0
  %4147 = vmatpush1.bf16.xpose.msra.mxu0 0
  %4148 = vmatprep.subr.bf16.mxu0 0
  %4149 = vmatpush1.bf16.xpose.msra.mxu0 0
  %4150 = vmatprep.mubr.bf16.mxu0 %v1045
  %4151 = vmatmul.mubr.bf16.gmra.mrb[0].mxu0 %v1044
  %v4152 = vpop.f32.mrb[0].mxu0
  %v4153 = vadd.f32 %v4113, %v4152
  %v4154 = vpop.f32.mrb[0].mxu0
  %v4155 = vpop.f32.mrb[0].mxu0
  %v4156 = vpop.f32.mrb[0].mxu0
  %4157 = vdwg.mxu0
  %4158 = vmatprep.subr.bf16.mxu0 %v2033
  %4159 = vmatpush1.bf16.xpose.msra.mxu0 %v2032
  %4160 = vmatprep.subr.bf16.mxu0 %v2156
  %4161 = vmatpush1.bf16.xpose.msra.mxu0 %v2155
  %4162 = vmatprep.subr.bf16.mxu0 0
  %4163 = vmatpush1.bf16.xpose.msra.mxu0 0
  %4164 = vmatprep.subr.bf16.mxu0 0
  %4165 = vmatpush1.bf16.xpose.msra.mxu0 0
  %4166 = vmatprep.subr.bf16.mxu0 0
  %4167 = vmatpush1.bf16.xpose.msra.mxu0 0
  %4168 = vmatprep.subr.bf16.mxu0 0
  %4169 = vmatpush1.bf16.xpose.msra.mxu0 0
  %4170 = vmatprep.subr.bf16.mxu0 0
  %4171 = vmatpush1.bf16.xpose.msra.mxu0 0
  %4172 = vmatprep.subr.bf16.mxu0 0
  %4173 = vmatpush1.bf16.xpose.msra.mxu0 0
  %4174 = vmatprep.subr.bf16.mxu0 0
  %4175 = vmatpush1.bf16.xpose.msra.mxu0 0
  %4176 = vmatprep.subr.bf16.mxu0 0
  %4177 = vmatpush1.bf16.xpose.msra.mxu0 0
  %4178 = vmatprep.subr.bf16.mxu0 0
  %4179 = vmatpush1.bf16.xpose.msra.mxu0 0
  %4180 = vmatprep.subr.bf16.mxu0 0
  %4181 = vmatpush1.bf16.xpose.msra.mxu0 0
  %4182 = vmatprep.subr.bf16.mxu0 0
  %4183 = vmatpush1.bf16.xpose.msra.mxu0 0
  %4184 = vmatprep.subr.bf16.mxu0 0
  %4185 = vmatpush1.bf16.xpose.msra.mxu0 0
  %4186 = vmatprep.subr.bf16.mxu0 0
  %4187 = vmatpush1.bf16.xpose.msra.mxu0 0
  %4188 = vmatprep.subr.bf16.mxu0 0
  %4189 = vmatpush1.bf16.xpose.msra.mxu0 0
  %4190 = vmatprep.mubr.bf16.mxu0 %v1047
  %4191 = vmatmul.mubr.bf16.gmra.mrb[0].mxu0 %v1046
  %v4192 = vpop.f32.mrb[0].mxu0
  %v4193 = vadd.f32 %v4153, %v4192
  %v4194 = vpop.f32.mrb[0].mxu0
  %v4195 = vpop.f32.mrb[0].mxu0
  %v4196 = vpop.f32.mrb[0].mxu0
  %4197 = vdwg.mxu0
  %4198 = vmatprep.subr.bf16.mxu0 %v2035
  %4199 = vmatpush1.bf16.xpose.msra.mxu0 %v2034
  %4200 = vmatprep.subr.bf16.mxu0 %v2158
  %4201 = vmatpush1.bf16.xpose.msra.mxu0 %v2157
  %4202 = vmatprep.subr.bf16.mxu0 0
  %4203 = vmatpush1.bf16.xpose.msra.mxu0 0
  %4204 = vmatprep.subr.bf16.mxu0 0
  %4205 = vmatpush1.bf16.xpose.msra.mxu0 0
  %4206 = vmatprep.subr.bf16.mxu0 0
  %4207 = vmatpush1.bf16.xpose.msra.mxu0 0
  %4208 = vmatprep.subr.bf16.mxu0 0
  %4209 = vmatpush1.bf16.xpose.msra.mxu0 0
  %4210 = vmatprep.subr.bf16.mxu0 0
  %4211 = vmatpush1.bf16.xpose.msra.mxu0 0
  %4212 = vmatprep.subr.bf16.mxu0 0
  %4213 = vmatpush1.bf16.xpose.msra.mxu0 0
  %4214 = vmatprep.subr.bf16.mxu0 0
  %4215 = vmatpush1.bf16.xpose.msra.mxu0 0
  %4216 = vmatprep.subr.bf16.mxu0 0
  %4217 = vmatpush1.bf16.xpose.msra.mxu0 0
  %4218 = vmatprep.subr.bf16.mxu0 0
  %4219 = vmatpush1.bf16.xpose.msra.mxu0 0
  %4220 = vmatprep.subr.bf16.mxu0 0
  %4221 = vmatpush1.bf16.xpose.msra.mxu0 0
  %4222 = vmatprep.subr.bf16.mxu0 0
  %4223 = vmatpush1.bf16.xpose.msra.mxu0 0
  %4224 = vmatprep.subr.bf16.mxu0 0
  %4225 = vmatpush1.bf16.xpose.msra.mxu0 0
  %4226 = vmatprep.subr.bf16.mxu0 0
  %4227 = vmatpush1.bf16.xpose.msra.mxu0 0
  %4228 = vmatprep.subr.bf16.mxu0 0
  %4229 = vmatpush1.bf16.xpose.msra.mxu0 0
  %4230 = vmatprep.mubr.bf16.mxu0 %v1049
  %4231 = vmatmul.mubr.bf16.gmra.mrb[0].mxu0 %v1048
  %v4232 = vpop.f32.mrb[0].mxu0
  %v4233 = vadd.f32 %v4193, %v4232
  %v4234 = vpop.f32.mrb[0].mxu0
  %v4235 = vpop.f32.mrb[0].mxu0
  %v4236 = vpop.f32.mrb[0].mxu0
  %4237 = vdwg.mxu0
  %4238 = vmatprep.subr.bf16.mxu0 %v2037
  %4239 = vmatpush1.bf16.xpose.msra.mxu0 %v2036
  %4240 = vmatprep.subr.bf16.mxu0 %v2160
  %4241 = vmatpush1.bf16.xpose.msra.mxu0 %v2159
  %4242 = vmatprep.subr.bf16.mxu0 0
  %4243 = vmatpush1.bf16.xpose.msra.mxu0 0
  %4244 = vmatprep.subr.bf16.mxu0 0
  %4245 = vmatpush1.bf16.xpose.msra.mxu0 0
  %4246 = vmatprep.subr.bf16.mxu0 0
  %4247 = vmatpush1.bf16.xpose.msra.mxu0 0
  %4248 = vmatprep.subr.bf16.mxu0 0
  %4249 = vmatpush1.bf16.xpose.msra.mxu0 0
  %4250 = vmatprep.subr.bf16.mxu0 0
  %4251 = vmatpush1.bf16.xpose.msra.mxu0 0
  %4252 = vmatprep.subr.bf16.mxu0 0
  %4253 = vmatpush1.bf16.xpose.msra.mxu0 0
  %4254 = vmatprep.subr.bf16.mxu0 0
  %4255 = vmatpush1.bf16.xpose.msra.mxu0 0
  %4256 = vmatprep.subr.bf16.mxu0 0
  %4257 = vmatpush1.bf16.xpose.msra.mxu0 0
  %4258 = vmatprep.subr.bf16.mxu0 0
  %4259 = vmatpush1.bf16.xpose.msra.mxu0 0
  %4260 = vmatprep.subr.bf16.mxu0 0
  %4261 = vmatpush1.bf16.xpose.msra.mxu0 0
  %4262 = vmatprep.subr.bf16.mxu0 0
  %4263 = vmatpush1.bf16.xpose.msra.mxu0 0
  %4264 = vmatprep.subr.bf16.mxu0 0
  %4265 = vmatpush1.bf16.xpose.msra.mxu0 0
  %4266 = vmatprep.subr.bf16.mxu0 0
  %4267 = vmatpush1.bf16.xpose.msra.mxu0 0
  %4268 = vmatprep.subr.bf16.mxu0 0
  %4269 = vmatpush1.bf16.xpose.msra.mxu0 0
  %4270 = vmatprep.mubr.bf16.mxu0 %v1051
  %4271 = vmatmul.mubr.bf16.gmra.mrb[0].mxu0 %v1050
  %v4272 = vpop.f32.mrb[0].mxu0
  %v4273 = vadd.f32 %v4233, %v4272
  %v4274 = vpop.f32.mrb[0].mxu0
  %v4275 = vpop.f32.mrb[0].mxu0
  %v4276 = vpop.f32.mrb[0].mxu0
  %4277 = vdwg.mxu0
  %4278 = vmatprep.subr.bf16.mxu0 %v2039
  %4279 = vmatpush1.bf16.xpose.msra.mxu0 %v2038
  %4280 = vmatprep.subr.bf16.mxu0 %v2162
  %4281 = vmatpush1.bf16.xpose.msra.mxu0 %v2161
  %4282 = vmatprep.subr.bf16.mxu0 0
  %4283 = vmatpush1.bf16.xpose.msra.mxu0 0
  %4284 = vmatprep.subr.bf16.mxu0 0
  %4285 = vmatpush1.bf16.xpose.msra.mxu0 0
  %4286 = vmatprep.subr.bf16.mxu0 0
  %4287 = vmatpush1.bf16.xpose.msra.mxu0 0
  %4288 = vmatprep.subr.bf16.mxu0 0
  %4289 = vmatpush1.bf16.xpose.msra.mxu0 0
  %4290 = vmatprep.subr.bf16.mxu0 0
  %4291 = vmatpush1.bf16.xpose.msra.mxu0 0
  %4292 = vmatprep.subr.bf16.mxu0 0
  %4293 = vmatpush1.bf16.xpose.msra.mxu0 0
  %4294 = vmatprep.subr.bf16.mxu0 0
  %4295 = vmatpush1.bf16.xpose.msra.mxu0 0
  %4296 = vmatprep.subr.bf16.mxu0 0
  %4297 = vmatpush1.bf16.xpose.msra.mxu0 0
  %4298 = vmatprep.subr.bf16.mxu0 0
  %4299 = vmatpush1.bf16.xpose.msra.mxu0 0
  %4300 = vmatprep.subr.bf16.mxu0 0
  %4301 = vmatpush1.bf16.xpose.msra.mxu0 0
  %4302 = vmatprep.subr.bf16.mxu0 0
  %4303 = vmatpush1.bf16.xpose.msra.mxu0 0
  %4304 = vmatprep.subr.bf16.mxu0 0
  %4305 = vmatpush1.bf16.xpose.msra.mxu0 0
  %4306 = vmatprep.subr.bf16.mxu0 0
  %4307 = vmatpush1.bf16.xpose.msra.mxu0 0
  %4308 = vmatprep.subr.bf16.mxu0 0
  %4309 = vmatpush1.bf16.xpose.msra.mxu0 0
  %4310 = vmatprep.mubr.bf16.mxu0 %v1053
  %4311 = vmatmul.mubr.bf16.gmra.mrb[0].mxu0 %v1052
  %v4312 = vpop.f32.mrb[0].mxu0
  %v4313 = vadd.f32 %v4273, %v4312
  %v4314 = vpop.f32.mrb[0].mxu0
  %v4315 = vpop.f32.mrb[0].mxu0
  %v4316 = vpop.f32.mrb[0].mxu0
  %4317 = vdwg.mxu0
  %4318 = vmatprep.subr.bf16.mxu0 %v2041
  %4319 = vmatpush1.bf16.xpose.msra.mxu0 %v2040
  %4320 = vmatprep.subr.bf16.mxu0 %v2164
  %4321 = vmatpush1.bf16.xpose.msra.mxu0 %v2163
  %4322 = vmatprep.subr.bf16.mxu0 0
  %4323 = vmatpush1.bf16.xpose.msra.mxu0 0
  %4324 = vmatprep.subr.bf16.mxu0 0
  %4325 = vmatpush1.bf16.xpose.msra.mxu0 0
  %4326 = vmatprep.subr.bf16.mxu0 0
  %4327 = vmatpush1.bf16.xpose.msra.mxu0 0
  %4328 = vmatprep.subr.bf16.mxu0 0
  %4329 = vmatpush1.bf16.xpose.msra.mxu0 0
  %4330 = vmatprep.subr.bf16.mxu0 0
  %4331 = vmatpush1.bf16.xpose.msra.mxu0 0
  %4332 = vmatprep.subr.bf16.mxu0 0
  %4333 = vmatpush1.bf16.xpose.msra.mxu0 0
  %4334 = vmatprep.subr.bf16.mxu0 0
  %4335 = vmatpush1.bf16.xpose.msra.mxu0 0
  %4336 = vmatprep.subr.bf16.mxu0 0
  %4337 = vmatpush1.bf16.xpose.msra.mxu0 0
  %4338 = vmatprep.subr.bf16.mxu0 0
  %4339 = vmatpush1.bf16.xpose.msra.mxu0 0
  %4340 = vmatprep.subr.bf16.mxu0 0
  %4341 = vmatpush1.bf16.xpose.msra.mxu0 0
  %4342 = vmatprep.subr.bf16.mxu0 0
  %4343 = vmatpush1.bf16.xpose.msra.mxu0 0
  %4344 = vmatprep.subr.bf16.mxu0 0
  %4345 = vmatpush1.bf16.xpose.msra.mxu0 0
  %4346 = vmatprep.subr.bf16.mxu0 0
  %4347 = vmatpush1.bf16.xpose.msra.mxu0 0
  %4348 = vmatprep.subr.bf16.mxu0 0
  %4349 = vmatpush1.bf16.xpose.msra.mxu0 0
  %4350 = vmatprep.mubr.bf16.mxu0 %v1055
  %4351 = vmatmul.mubr.bf16.gmra.mrb[0].mxu0 %v1054
  %v4352 = vpop.f32.mrb[0].mxu0
  %v4353 = vadd.f32 %v4313, %v4352
  %v4354 = vpop.f32.mrb[0].mxu0
  %v4355 = vpop.f32.mrb[0].mxu0
  %v4356 = vpop.f32.mrb[0].mxu0
  %4357 = vdwg.mxu0
  %4358 = vmatprep.subr.bf16.mxu0 %v2043
  %4359 = vmatpush1.bf16.xpose.msra.mxu0 %v2042
  %4360 = vmatprep.subr.bf16.mxu0 %v2166
  %4361 = vmatpush1.bf16.xpose.msra.mxu0 %v2165
  %4362 = vmatprep.subr.bf16.mxu0 0
  %4363 = vmatpush1.bf16.xpose.msra.mxu0 0
  %4364 = vmatprep.subr.bf16.mxu0 0
  %4365 = vmatpush1.bf16.xpose.msra.mxu0 0
  %4366 = vmatprep.subr.bf16.mxu0 0
  %4367 = vmatpush1.bf16.xpose.msra.mxu0 0
  %4368 = vmatprep.subr.bf16.mxu0 0
  %4369 = vmatpush1.bf16.xpose.msra.mxu0 0
  %4370 = vmatprep.subr.bf16.mxu0 0
  %4371 = vmatpush1.bf16.xpose.msra.mxu0 0
  %4372 = vmatprep.subr.bf16.mxu0 0
  %4373 = vmatpush1.bf16.xpose.msra.mxu0 0
  %4374 = vmatprep.subr.bf16.mxu0 0
  %4375 = vmatpush1.bf16.xpose.msra.mxu0 0
  %4376 = vmatprep.subr.bf16.mxu0 0
  %4377 = vmatpush1.bf16.xpose.msra.mxu0 0
  %4378 = vmatprep.subr.bf16.mxu0 0
  %4379 = vmatpush1.bf16.xpose.msra.mxu0 0
  %4380 = vmatprep.subr.bf16.mxu0 0
  %4381 = vmatpush1.bf16.xpose.msra.mxu0 0
  %4382 = vmatprep.subr.bf16.mxu0 0
  %4383 = vmatpush1.bf16.xpose.msra.mxu0 0
  %4384 = vmatprep.subr.bf16.mxu0 0
  %4385 = vmatpush1.bf16.xpose.msra.mxu0 0
  %4386 = vmatprep.subr.bf16.mxu0 0
  %4387 = vmatpush1.bf16.xpose.msra.mxu0 0
  %4388 = vmatprep.subr.bf16.mxu0 0
  %4389 = vmatpush1.bf16.xpose.msra.mxu0 0
  %4390 = vmatprep.mubr.bf16.mxu0 %v1057
  %4391 = vmatmul.mubr.bf16.gmra.mrb[0].mxu0 %v1056
  %v4392 = vpop.f32.mrb[0].mxu0
  %v4393 = vadd.f32 %v4353, %v4392
  %v4394 = vpop.f32.mrb[0].mxu0
  %v4395 = vpop.f32.mrb[0].mxu0
  %v4396 = vpop.f32.mrb[0].mxu0
  %4397 = vdwg.mxu0
  %4398 = vmatprep.subr.bf16.mxu0 %v2045
  %4399 = vmatpush1.bf16.xpose.msra.mxu0 %v2044
  %4400 = vmatprep.subr.bf16.mxu0 %v2168
  %4401 = vmatpush1.bf16.xpose.msra.mxu0 %v2167
  %4402 = vmatprep.subr.bf16.mxu0 0
  %4403 = vmatpush1.bf16.xpose.msra.mxu0 0
  %4404 = vmatprep.subr.bf16.mxu0 0
  %4405 = vmatpush1.bf16.xpose.msra.mxu0 0
  %4406 = vmatprep.subr.bf16.mxu0 0
  %4407 = vmatpush1.bf16.xpose.msra.mxu0 0
  %4408 = vmatprep.subr.bf16.mxu0 0
  %4409 = vmatpush1.bf16.xpose.msra.mxu0 0
  %4410 = vmatprep.subr.bf16.mxu0 0
  %4411 = vmatpush1.bf16.xpose.msra.mxu0 0
  %4412 = vmatprep.subr.bf16.mxu0 0
  %4413 = vmatpush1.bf16.xpose.msra.mxu0 0
  %4414 = vmatprep.subr.bf16.mxu0 0
  %4415 = vmatpush1.bf16.xpose.msra.mxu0 0
  %4416 = vmatprep.subr.bf16.mxu0 0
  %4417 = vmatpush1.bf16.xpose.msra.mxu0 0
  %4418 = vmatprep.subr.bf16.mxu0 0
  %4419 = vmatpush1.bf16.xpose.msra.mxu0 0
  %4420 = vmatprep.subr.bf16.mxu0 0
  %4421 = vmatpush1.bf16.xpose.msra.mxu0 0
  %4422 = vmatprep.subr.bf16.mxu0 0
  %4423 = vmatpush1.bf16.xpose.msra.mxu0 0
  %4424 = vmatprep.subr.bf16.mxu0 0
  %4425 = vmatpush1.bf16.xpose.msra.mxu0 0
  %4426 = vmatprep.subr.bf16.mxu0 0
  %4427 = vmatpush1.bf16.xpose.msra.mxu0 0
  %4428 = vmatprep.subr.bf16.mxu0 0
  %4429 = vmatpush1.bf16.xpose.msra.mxu0 0
  %4430 = vmatprep.mubr.bf16.mxu0 %v1059
  %4431 = vmatmul.mubr.bf16.gmra.mrb[0].mxu0 %v1058
  %v4432 = vpop.f32.mrb[0].mxu0
  %v4433 = vadd.f32 %v4393, %v4432
  %v4434 = vpop.f32.mrb[0].mxu0
  %v4435 = vpop.f32.mrb[0].mxu0
  %v4436 = vpop.f32.mrb[0].mxu0
  %4437 = vdwg.mxu0
  %4438 = vmatprep.subr.bf16.mxu0 %v2047
  %4439 = vmatpush1.bf16.xpose.msra.mxu0 %v2046
  %4440 = vmatprep.subr.bf16.mxu0 %v2170
  %4441 = vmatpush1.bf16.xpose.msra.mxu0 %v2169
  %4442 = vmatprep.subr.bf16.mxu0 0
  %4443 = vmatpush1.bf16.xpose.msra.mxu0 0
  %4444 = vmatprep.subr.bf16.mxu0 0
  %4445 = vmatpush1.bf16.xpose.msra.mxu0 0
  %4446 = vmatprep.subr.bf16.mxu0 0
  %4447 = vmatpush1.bf16.xpose.msra.mxu0 0
  %4448 = vmatprep.subr.bf16.mxu0 0
  %4449 = vmatpush1.bf16.xpose.msra.mxu0 0
  %4450 = vmatprep.subr.bf16.mxu0 0
  %4451 = vmatpush1.bf16.xpose.msra.mxu0 0
  %4452 = vmatprep.subr.bf16.mxu0 0
  %4453 = vmatpush1.bf16.xpose.msra.mxu0 0
  %4454 = vmatprep.subr.bf16.mxu0 0
  %4455 = vmatpush1.bf16.xpose.msra.mxu0 0
  %4456 = vmatprep.subr.bf16.mxu0 0
  %4457 = vmatpush1.bf16.xpose.msra.mxu0 0
  %4458 = vmatprep.subr.bf16.mxu0 0
  %4459 = vmatpush1.bf16.xpose.msra.mxu0 0
  %4460 = vmatprep.subr.bf16.mxu0 0
  %4461 = vmatpush1.bf16.xpose.msra.mxu0 0
  %4462 = vmatprep.subr.bf16.mxu0 0
  %4463 = vmatpush1.bf16.xpose.msra.mxu0 0
  %4464 = vmatprep.subr.bf16.mxu0 0
  %4465 = vmatpush1.bf16.xpose.msra.mxu0 0
  %4466 = vmatprep.subr.bf16.mxu0 0
  %4467 = vmatpush1.bf16.xpose.msra.mxu0 0
  %4468 = vmatprep.subr.bf16.mxu0 0
  %4469 = vmatpush1.bf16.xpose.msra.mxu0 0
  %4470 = vmatprep.mubr.bf16.mxu0 %v1061
  %4471 = vmatmul.mubr.bf16.gmra.mrb[0].mxu0 %v1060
  %v4472 = vpop.f32.mrb[0].mxu0
  %v4473 = vadd.f32 %v4433, %v4472
  %v4474 = vpop.f32.mrb[0].mxu0
  %v4475 = vpop.f32.mrb[0].mxu0
  %v4476 = vpop.f32.mrb[0].mxu0
  %4477 = vdwg.mxu0
  %4478 = vmatprep.subr.bf16.mxu0 %v2049
  %4479 = vmatpush1.bf16.xpose.msra.mxu0 %v2048
  %4480 = vmatprep.subr.bf16.mxu0 %v2172
  %4481 = vmatpush1.bf16.xpose.msra.mxu0 %v2171
  %4482 = vmatprep.subr.bf16.mxu0 0
  %4483 = vmatpush1.bf16.xpose.msra.mxu0 0
  %4484 = vmatprep.subr.bf16.mxu0 0
  %4485 = vmatpush1.bf16.xpose.msra.mxu0 0
  %4486 = vmatprep.subr.bf16.mxu0 0
  %4487 = vmatpush1.bf16.xpose.msra.mxu0 0
  %4488 = vmatprep.subr.bf16.mxu0 0
  %4489 = vmatpush1.bf16.xpose.msra.mxu0 0
  %4490 = vmatprep.subr.bf16.mxu0 0
  %4491 = vmatpush1.bf16.xpose.msra.mxu0 0
  %4492 = vmatprep.subr.bf16.mxu0 0
  %4493 = vmatpush1.bf16.xpose.msra.mxu0 0
  %4494 = vmatprep.subr.bf16.mxu0 0
  %4495 = vmatpush1.bf16.xpose.msra.mxu0 0
  %4496 = vmatprep.subr.bf16.mxu0 0
  %4497 = vmatpush1.bf16.xpose.msra.mxu0 0
  %4498 = vmatprep.subr.bf16.mxu0 0
  %4499 = vmatpush1.bf16.xpose.msra.mxu0 0
  %4500 = vmatprep.subr.bf16.mxu0 0
  %4501 = vmatpush1.bf16.xpose.msra.mxu0 0
  %4502 = vmatprep.subr.bf16.mxu0 0
  %4503 = vmatpush1.bf16.xpose.msra.mxu0 0
  %4504 = vmatprep.subr.bf16.mxu0 0
  %4505 = vmatpush1.bf16.xpose.msra.mxu0 0
  %4506 = vmatprep.subr.bf16.mxu0 0
  %4507 = vmatpush1.bf16.xpose.msra.mxu0 0
  %4508 = vmatprep.subr.bf16.mxu0 0
  %4509 = vmatpush1.bf16.xpose.msra.mxu0 0
  %4510 = vmatprep.mubr.bf16.mxu0 %v1063
  %4511 = vmatmul.mubr.bf16.gmra.mrb[0].mxu0 %v1062
  %v4512 = vpop.f32.mrb[0].mxu0
  %v4513 = vadd.f32 %v4473, %v4512
  %v4514 = vpop.f32.mrb[0].mxu0
  %v4515 = vpop.f32.mrb[0].mxu0
  %v4516 = vpop.f32.mrb[0].mxu0
  %4517 = vdwg.mxu0
  %4518 = vmatprep.subr.bf16.mxu0 %v2051
  %4519 = vmatpush1.bf16.xpose.msra.mxu0 %v2050
  %4520 = vmatprep.subr.bf16.mxu0 %v2174
  %4521 = vmatpush1.bf16.xpose.msra.mxu0 %v2173
  %4522 = vmatprep.subr.bf16.mxu0 0
  %4523 = vmatpush1.bf16.xpose.msra.mxu0 0
  %4524 = vmatprep.subr.bf16.mxu0 0
  %4525 = vmatpush1.bf16.xpose.msra.mxu0 0
  %4526 = vmatprep.subr.bf16.mxu0 0
  %4527 = vmatpush1.bf16.xpose.msra.mxu0 0
  %4528 = vmatprep.subr.bf16.mxu0 0
  %4529 = vmatpush1.bf16.xpose.msra.mxu0 0
  %4530 = vmatprep.subr.bf16.mxu0 0
  %4531 = vmatpush1.bf16.xpose.msra.mxu0 0
  %4532 = vmatprep.subr.bf16.mxu0 0
  %4533 = vmatpush1.bf16.xpose.msra.mxu0 0
  %4534 = vmatprep.subr.bf16.mxu0 0
  %4535 = vmatpush1.bf16.xpose.msra.mxu0 0
  %4536 = vmatprep.subr.bf16.mxu0 0
  %4537 = vmatpush1.bf16.xpose.msra.mxu0 0
  %4538 = vmatprep.subr.bf16.mxu0 0
  %4539 = vmatpush1.bf16.xpose.msra.mxu0 0
  %4540 = vmatprep.subr.bf16.mxu0 0
  %4541 = vmatpush1.bf16.xpose.msra.mxu0 0
  %4542 = vmatprep.subr.bf16.mxu0 0
  %4543 = vmatpush1.bf16.xpose.msra.mxu0 0
  %4544 = vmatprep.subr.bf16.mxu0 0
  %4545 = vmatpush1.bf16.xpose.msra.mxu0 0
  %4546 = vmatprep.subr.bf16.mxu0 0
  %4547 = vmatpush1.bf16.xpose.msra.mxu0 0
  %4548 = vmatprep.subr.bf16.mxu0 0
  %4549 = vmatpush1.bf16.xpose.msra.mxu0 0
  %4550 = vmatprep.mubr.bf16.mxu0 %v1065
  %4551 = vmatmul.mubr.bf16.gmra.mrb[0].mxu0 %v1064
  %v4552 = vpop.f32.mrb[0].mxu0
  %v4553 = vadd.f32 %v4513, %v4552
  %v4554 = vpop.f32.mrb[0].mxu0
  %v4555 = vpop.f32.mrb[0].mxu0
  %v4556 = vpop.f32.mrb[0].mxu0
  %4557 = vdwg.mxu0
  %4558 = vmatprep.subr.bf16.mxu0 %v2053
  %4559 = vmatpush1.bf16.xpose.msra.mxu0 %v2052
  %4560 = vmatprep.subr.bf16.mxu0 %v2176
  %4561 = vmatpush1.bf16.xpose.msra.mxu0 %v2175
  %4562 = vmatprep.subr.bf16.mxu0 0
  %4563 = vmatpush1.bf16.xpose.msra.mxu0 0
  %4564 = vmatprep.subr.bf16.mxu0 0
  %4565 = vmatpush1.bf16.xpose.msra.mxu0 0
  %4566 = vmatprep.subr.bf16.mxu0 0
  %4567 = vmatpush1.bf16.xpose.msra.mxu0 0
  %4568 = vmatprep.subr.bf16.mxu0 0
  %4569 = vmatpush1.bf16.xpose.msra.mxu0 0
  %4570 = vmatprep.subr.bf16.mxu0 0
  %4571 = vmatpush1.bf16.xpose.msra.mxu0 0
  %4572 = vmatprep.subr.bf16.mxu0 0
  %4573 = vmatpush1.bf16.xpose.msra.mxu0 0
  %4574 = vmatprep.subr.bf16.mxu0 0
  %4575 = vmatpush1.bf16.xpose.msra.mxu0 0
  %4576 = vmatprep.subr.bf16.mxu0 0
  %4577 = vmatpush1.bf16.xpose.msra.mxu0 0
  %4578 = vmatprep.subr.bf16.mxu0 0
  %4579 = vmatpush1.bf16.xpose.msra.mxu0 0
  %4580 = vmatprep.subr.bf16.mxu0 0
  %4581 = vmatpush1.bf16.xpose.msra.mxu0 0
  %4582 = vmatprep.subr.bf16.mxu0 0
  %4583 = vmatpush1.bf16.xpose.msra.mxu0 0
  %4584 = vmatprep.subr.bf16.mxu0 0
  %4585 = vmatpush1.bf16.xpose.msra.mxu0 0
  %4586 = vmatprep.subr.bf16.mxu0 0
  %4587 = vmatpush1.bf16.xpose.msra.mxu0 0
  %4588 = vmatprep.subr.bf16.mxu0 0
  %4589 = vmatpush1.bf16.xpose.msra.mxu0 0
  %4590 = vmatprep.mubr.bf16.mxu0 %v1067
  %4591 = vmatmul.mubr.bf16.gmra.mrb[0].mxu0 %v1066
  %v4592 = vpop.f32.mrb[0].mxu0
  %v4593 = vadd.f32 %v4553, %v4592
  %v4594 = vpop.f32.mrb[0].mxu0
  %v4595 = vpop.f32.mrb[0].mxu0
  %v4596 = vpop.f32.mrb[0].mxu0
  %4597 = vdwg.mxu0
  %4598 = vmatprep.subr.bf16.mxu0 %v2055
  %4599 = vmatpush1.bf16.xpose.msra.mxu0 %v2054
  %4600 = vmatprep.subr.bf16.mxu0 %v2178
  %4601 = vmatpush1.bf16.xpose.msra.mxu0 %v2177
  %4602 = vmatprep.subr.bf16.mxu0 0
  %4603 = vmatpush1.bf16.xpose.msra.mxu0 0
  %4604 = vmatprep.subr.bf16.mxu0 0
  %4605 = vmatpush1.bf16.xpose.msra.mxu0 0
  %4606 = vmatprep.subr.bf16.mxu0 0
  %4607 = vmatpush1.bf16.xpose.msra.mxu0 0
  %4608 = vmatprep.subr.bf16.mxu0 0
  %4609 = vmatpush1.bf16.xpose.msra.mxu0 0
  %4610 = vmatprep.subr.bf16.mxu0 0
  %4611 = vmatpush1.bf16.xpose.msra.mxu0 0
  %4612 = vmatprep.subr.bf16.mxu0 0
  %4613 = vmatpush1.bf16.xpose.msra.mxu0 0
  %4614 = vmatprep.subr.bf16.mxu0 0
  %4615 = vmatpush1.bf16.xpose.msra.mxu0 0
  %4616 = vmatprep.subr.bf16.mxu0 0
  %4617 = vmatpush1.bf16.xpose.msra.mxu0 0
  %4618 = vmatprep.subr.bf16.mxu0 0
  %4619 = vmatpush1.bf16.xpose.msra.mxu0 0
  %4620 = vmatprep.subr.bf16.mxu0 0
  %4621 = vmatpush1.bf16.xpose.msra.mxu0 0
  %4622 = vmatprep.subr.bf16.mxu0 0
  %4623 = vmatpush1.bf16.xpose.msra.mxu0 0
  %4624 = vmatprep.subr.bf16.mxu0 0
  %4625 = vmatpush1.bf16.xpose.msra.mxu0 0
  %4626 = vmatprep.subr.bf16.mxu0 0
  %4627 = vmatpush1.bf16.xpose.msra.mxu0 0
  %4628 = vmatprep.subr.bf16.mxu0 0
  %4629 = vmatpush1.bf16.xpose.msra.mxu0 0
  %4630 = vmatprep.mubr.bf16.mxu0 %v1069
  %4631 = vmatmul.mubr.bf16.gmra.mrb[0].mxu0 %v1068
  %v4632 = vpop.f32.mrb[0].mxu0
  %v4633 = vadd.f32 %v4593, %v4632
  %v4634 = vpop.f32.mrb[0].mxu0
  %v4635 = vpop.f32.mrb[0].mxu0
  %v4636 = vpop.f32.mrb[0].mxu0
  %4637 = vdwg.mxu0
  %4638 = vmatprep.subr.bf16.mxu0 %v2057
  %4639 = vmatpush1.bf16.xpose.msra.mxu0 %v2056
  %4640 = vmatprep.subr.bf16.mxu0 %v2180
  %4641 = vmatpush1.bf16.xpose.msra.mxu0 %v2179
  %4642 = vmatprep.subr.bf16.mxu0 0
  %4643 = vmatpush1.bf16.xpose.msra.mxu0 0
  %4644 = vmatprep.subr.bf16.mxu0 0
  %4645 = vmatpush1.bf16.xpose.msra.mxu0 0
  %4646 = vmatprep.subr.bf16.mxu0 0
  %4647 = vmatpush1.bf16.xpose.msra.mxu0 0
  %4648 = vmatprep.subr.bf16.mxu0 0
  %4649 = vmatpush1.bf16.xpose.msra.mxu0 0
  %4650 = vmatprep.subr.bf16.mxu0 0
  %4651 = vmatpush1.bf16.xpose.msra.mxu0 0
  %4652 = vmatprep.subr.bf16.mxu0 0
  %4653 = vmatpush1.bf16.xpose.msra.mxu0 0
  %4654 = vmatprep.subr.bf16.mxu0 0
  %4655 = vmatpush1.bf16.xpose.msra.mxu0 0
  %4656 = vmatprep.subr.bf16.mxu0 0
  %4657 = vmatpush1.bf16.xpose.msra.mxu0 0
  %4658 = vmatprep.subr.bf16.mxu0 0
  %4659 = vmatpush1.bf16.xpose.msra.mxu0 0
  %4660 = vmatprep.subr.bf16.mxu0 0
  %4661 = vmatpush1.bf16.xpose.msra.mxu0 0
  %4662 = vmatprep.subr.bf16.mxu0 0
  %4663 = vmatpush1.bf16.xpose.msra.mxu0 0
  %4664 = vmatprep.subr.bf16.mxu0 0
  %4665 = vmatpush1.bf16.xpose.msra.mxu0 0
  %4666 = vmatprep.subr.bf16.mxu0 0
  %4667 = vmatpush1.bf16.xpose.msra.mxu0 0
  %4668 = vmatprep.subr.bf16.mxu0 0
  %4669 = vmatpush1.bf16.xpose.msra.mxu0 0
  %4670 = vmatprep.mubr.bf16.mxu0 %v1071
  %4671 = vmatmul.mubr.bf16.gmra.mrb[0].mxu0 %v1070
  %v4672 = vpop.f32.mrb[0].mxu0
  %v4673 = vadd.f32 %v4633, %v4672
  %v4674 = vpop.f32.mrb[0].mxu0
  %v4675 = vpop.f32.mrb[0].mxu0
  %v4676 = vpop.f32.mrb[0].mxu0
  %4677 = vdwg.mxu0
  %4678 = vmatprep.subr.bf16.mxu0 %v2059
  %4679 = vmatpush1.bf16.xpose.msra.mxu0 %v2058
  %4680 = vmatprep.subr.bf16.mxu0 %v2182
  %4681 = vmatpush1.bf16.xpose.msra.mxu0 %v2181
  %4682 = vmatprep.subr.bf16.mxu0 0
  %4683 = vmatpush1.bf16.xpose.msra.mxu0 0
  %4684 = vmatprep.subr.bf16.mxu0 0
  %4685 = vmatpush1.bf16.xpose.msra.mxu0 0
  %4686 = vmatprep.subr.bf16.mxu0 0
  %4687 = vmatpush1.bf16.xpose.msra.mxu0 0
  %4688 = vmatprep.subr.bf16.mxu0 0
  %4689 = vmatpush1.bf16.xpose.msra.mxu0 0
  %4690 = vmatprep.subr.bf16.mxu0 0
  %4691 = vmatpush1.bf16.xpose.msra.mxu0 0
  %4692 = vmatprep.subr.bf16.mxu0 0
  %4693 = vmatpush1.bf16.xpose.msra.mxu0 0
  %4694 = vmatprep.subr.bf16.mxu0 0
  %4695 = vmatpush1.bf16.xpose.msra.mxu0 0
  %4696 = vmatprep.subr.bf16.mxu0 0
  %4697 = vmatpush1.bf16.xpose.msra.mxu0 0
  %4698 = vmatprep.subr.bf16.mxu0 0
  %4699 = vmatpush1.bf16.xpose.msra.mxu0 0
  %4700 = vmatprep.subr.bf16.mxu0 0
  %4701 = vmatpush1.bf16.xpose.msra.mxu0 0
  %4702 = vmatprep.subr.bf16.mxu0 0
  %4703 = vmatpush1.bf16.xpose.msra.mxu0 0
  %4704 = vmatprep.subr.bf16.mxu0 0
  %4705 = vmatpush1.bf16.xpose.msra.mxu0 0
  %4706 = vmatprep.subr.bf16.mxu0 0
  %4707 = vmatpush1.bf16.xpose.msra.mxu0 0
  %4708 = vmatprep.subr.bf16.mxu0 0
  %4709 = vmatpush1.bf16.xpose.msra.mxu0 0
  %4710 = vmatprep.mubr.bf16.mxu0 %v1073
  %4711 = vmatmul.mubr.bf16.gmra.mrb[0].mxu0 %v1072
  %v4712 = vpop.f32.mrb[0].mxu0
  %v4713 = vadd.f32 %v4673, %v4712
  %v4714 = vpop.f32.mrb[0].mxu0
  %v4715 = vpop.f32.mrb[0].mxu0
  %v4716 = vpop.f32.mrb[0].mxu0
  %4717 = vdwg.mxu0
  %4718 = vmatprep.subr.bf16.mxu0 %v2061
  %4719 = vmatpush1.bf16.xpose.msra.mxu0 %v2060
  %4720 = vmatprep.subr.bf16.mxu0 %v2184
  %4721 = vmatpush1.bf16.xpose.msra.mxu0 %v2183
  %4722 = vmatprep.subr.bf16.mxu0 0
  %4723 = vmatpush1.bf16.xpose.msra.mxu0 0
  %4724 = vmatprep.subr.bf16.mxu0 0
  %4725 = vmatpush1.bf16.xpose.msra.mxu0 0
  %4726 = vmatprep.subr.bf16.mxu0 0
  %4727 = vmatpush1.bf16.xpose.msra.mxu0 0
  %4728 = vmatprep.subr.bf16.mxu0 0
  %4729 = vmatpush1.bf16.xpose.msra.mxu0 0
  %4730 = vmatprep.subr.bf16.mxu0 0
  %4731 = vmatpush1.bf16.xpose.msra.mxu0 0
  %4732 = vmatprep.subr.bf16.mxu0 0
  %4733 = vmatpush1.bf16.xpose.msra.mxu0 0
  %4734 = vmatprep.subr.bf16.mxu0 0
  %4735 = vmatpush1.bf16.xpose.msra.mxu0 0
  %4736 = vmatprep.subr.bf16.mxu0 0
  %4737 = vmatpush1.bf16.xpose.msra.mxu0 0
  %4738 = vmatprep.subr.bf16.mxu0 0
  %4739 = vmatpush1.bf16.xpose.msra.mxu0 0
  %4740 = vmatprep.subr.bf16.mxu0 0
  %4741 = vmatpush1.bf16.xpose.msra.mxu0 0
  %4742 = vmatprep.subr.bf16.mxu0 0
  %4743 = vmatpush1.bf16.xpose.msra.mxu0 0
  %4744 = vmatprep.subr.bf16.mxu0 0
  %4745 = vmatpush1.bf16.xpose.msra.mxu0 0
  %4746 = vmatprep.subr.bf16.mxu0 0
  %4747 = vmatpush1.bf16.xpose.msra.mxu0 0
  %4748 = vmatprep.subr.bf16.mxu0 0
  %4749 = vmatpush1.bf16.xpose.msra.mxu0 0
  %4750 = vmatprep.mubr.bf16.mxu0 %v1075
  %4751 = vmatmul.mubr.bf16.gmra.mrb[0].mxu0 %v1074
  %v4752 = vpop.f32.mrb[0].mxu0
  %v4753 = vadd.f32 %v4713, %v4752
  %v4754 = vpop.f32.mrb[0].mxu0
  %v4755 = vpop.f32.mrb[0].mxu0
  %v4756 = vpop.f32.mrb[0].mxu0
  %4757 = vdwg.mxu0
  %4758 = vmatprep.subr.bf16.mxu0 %v2063
  %4759 = vmatpush1.bf16.xpose.msra.mxu0 %v2062
  %4760 = vmatprep.subr.bf16.mxu0 %v2186
  %4761 = vmatpush1.bf16.xpose.msra.mxu0 %v2185
  %4762 = vmatprep.subr.bf16.mxu0 0
  %4763 = vmatpush1.bf16.xpose.msra.mxu0 0
  %4764 = vmatprep.subr.bf16.mxu0 0
  %4765 = vmatpush1.bf16.xpose.msra.mxu0 0
  %4766 = vmatprep.subr.bf16.mxu0 0
  %4767 = vmatpush1.bf16.xpose.msra.mxu0 0
  %4768 = vmatprep.subr.bf16.mxu0 0
  %4769 = vmatpush1.bf16.xpose.msra.mxu0 0
  %4770 = vmatprep.subr.bf16.mxu0 0
  %4771 = vmatpush1.bf16.xpose.msra.mxu0 0
  %4772 = vmatprep.subr.bf16.mxu0 0
  %4773 = vmatpush1.bf16.xpose.msra.mxu0 0
  %4774 = vmatprep.subr.bf16.mxu0 0
  %4775 = vmatpush1.bf16.xpose.msra.mxu0 0
  %4776 = vmatprep.subr.bf16.mxu0 0
  %4777 = vmatpush1.bf16.xpose.msra.mxu0 0
  %4778 = vmatprep.subr.bf16.mxu0 0
  %4779 = vmatpush1.bf16.xpose.msra.mxu0 0
  %4780 = vmatprep.subr.bf16.mxu0 0
  %4781 = vmatpush1.bf16.xpose.msra.mxu0 0
  %4782 = vmatprep.subr.bf16.mxu0 0
  %4783 = vmatpush1.bf16.xpose.msra.mxu0 0
  %4784 = vmatprep.subr.bf16.mxu0 0
  %4785 = vmatpush1.bf16.xpose.msra.mxu0 0
  %4786 = vmatprep.subr.bf16.mxu0 0
  %4787 = vmatpush1.bf16.xpose.msra.mxu0 0
  %4788 = vmatprep.subr.bf16.mxu0 0
  %4789 = vmatpush1.bf16.xpose.msra.mxu0 0
  %4790 = vmatprep.mubr.bf16.mxu0 %v1077
  %4791 = vmatmul.mubr.bf16.gmra.mrb[0].mxu0 %v1076
  %v4792 = vpop.f32.mrb[0].mxu0
  %v4793 = vadd.f32 %v4753, %v4792
  %v4794 = vpop.f32.mrb[0].mxu0
  %v4795 = vpop.f32.mrb[0].mxu0
  %v4796 = vpop.f32.mrb[0].mxu0
  %4797 = vdwg.mxu0
  %4798 = vmatprep.subr.bf16.mxu0 %v2065
  %4799 = vmatpush1.bf16.xpose.msra.mxu0 %v2064
  %4800 = vmatprep.subr.bf16.mxu0 %v2188
  %4801 = vmatpush1.bf16.xpose.msra.mxu0 %v2187
  %4802 = vmatprep.subr.bf16.mxu0 0
  %4803 = vmatpush1.bf16.xpose.msra.mxu0 0
  %4804 = vmatprep.subr.bf16.mxu0 0
  %4805 = vmatpush1.bf16.xpose.msra.mxu0 0
  %4806 = vmatprep.subr.bf16.mxu0 0
  %4807 = vmatpush1.bf16.xpose.msra.mxu0 0
  %4808 = vmatprep.subr.bf16.mxu0 0
  %4809 = vmatpush1.bf16.xpose.msra.mxu0 0
  %4810 = vmatprep.subr.bf16.mxu0 0
  %4811 = vmatpush1.bf16.xpose.msra.mxu0 0
  %4812 = vmatprep.subr.bf16.mxu0 0
  %4813 = vmatpush1.bf16.xpose.msra.mxu0 0
  %4814 = vmatprep.subr.bf16.mxu0 0
  %4815 = vmatpush1.bf16.xpose.msra.mxu0 0
  %4816 = vmatprep.subr.bf16.mxu0 0
  %4817 = vmatpush1.bf16.xpose.msra.mxu0 0
  %4818 = vmatprep.subr.bf16.mxu0 0
  %4819 = vmatpush1.bf16.xpose.msra.mxu0 0
  %4820 = vmatprep.subr.bf16.mxu0 0
  %4821 = vmatpush1.bf16.xpose.msra.mxu0 0
  %4822 = vmatprep.subr.bf16.mxu0 0
  %4823 = vmatpush1.bf16.xpose.msra.mxu0 0
  %4824 = vmatprep.subr.bf16.mxu0 0
  %4825 = vmatpush1.bf16.xpose.msra.mxu0 0
  %4826 = vmatprep.subr.bf16.mxu0 0
  %4827 = vmatpush1.bf16.xpose.msra.mxu0 0
  %4828 = vmatprep.subr.bf16.mxu0 0
  %4829 = vmatpush1.bf16.xpose.msra.mxu0 0
  %4830 = vmatprep.mubr.bf16.mxu0 %v1079
  %4831 = vmatmul.mubr.bf16.gmra.mrb[0].mxu0 %v1078
  %v4832 = vpop.f32.mrb[0].mxu0
  %v4833 = vadd.f32 %v4793, %v4832
  %v4834 = vpop.f32.mrb[0].mxu0
  %v4835 = vpop.f32.mrb[0].mxu0
  %v4836 = vpop.f32.mrb[0].mxu0
  %4837 = vdwg.mxu0
  %4838 = vmatprep.subr.bf16.mxu0 %v2067
  %4839 = vmatpush1.bf16.xpose.msra.mxu0 %v2066
  %4840 = vmatprep.subr.bf16.mxu0 %v2190
  %4841 = vmatpush1.bf16.xpose.msra.mxu0 %v2189
  %4842 = vmatprep.subr.bf16.mxu0 0
  %4843 = vmatpush1.bf16.xpose.msra.mxu0 0
  %4844 = vmatprep.subr.bf16.mxu0 0
  %4845 = vmatpush1.bf16.xpose.msra.mxu0 0
  %4846 = vmatprep.subr.bf16.mxu0 0
  %4847 = vmatpush1.bf16.xpose.msra.mxu0 0
  %4848 = vmatprep.subr.bf16.mxu0 0
  %4849 = vmatpush1.bf16.xpose.msra.mxu0 0
  %4850 = vmatprep.subr.bf16.mxu0 0
  %4851 = vmatpush1.bf16.xpose.msra.mxu0 0
  %4852 = vmatprep.subr.bf16.mxu0 0
  %4853 = vmatpush1.bf16.xpose.msra.mxu0 0
  %4854 = vmatprep.subr.bf16.mxu0 0
  %4855 = vmatpush1.bf16.xpose.msra.mxu0 0
  %4856 = vmatprep.subr.bf16.mxu0 0
  %4857 = vmatpush1.bf16.xpose.msra.mxu0 0
  %4858 = vmatprep.subr.bf16.mxu0 0
  %4859 = vmatpush1.bf16.xpose.msra.mxu0 0
  %4860 = vmatprep.subr.bf16.mxu0 0
  %4861 = vmatpush1.bf16.xpose.msra.mxu0 0
  %4862 = vmatprep.subr.bf16.mxu0 0
  %4863 = vmatpush1.bf16.xpose.msra.mxu0 0
  %4864 = vmatprep.subr.bf16.mxu0 0
  %4865 = vmatpush1.bf16.xpose.msra.mxu0 0
  %4866 = vmatprep.subr.bf16.mxu0 0
  %4867 = vmatpush1.bf16.xpose.msra.mxu0 0
  %4868 = vmatprep.subr.bf16.mxu0 0
  %4869 = vmatpush1.bf16.xpose.msra.mxu0 0
  %4870 = vmatprep.mubr.bf16.mxu0 %v1081
  %4871 = vmatmul.mubr.bf16.gmra.mrb[0].mxu0 %v1080
  %v4872 = vpop.f32.mrb[0].mxu0
  %v4873 = vadd.f32 %v4833, %v4872
  %v4874 = vpop.f32.mrb[0].mxu0
  %v4875 = vpop.f32.mrb[0].mxu0
  %v4876 = vpop.f32.mrb[0].mxu0
  %4877 = vdwg.mxu0
  %4878 = vmatprep.subr.bf16.mxu0 0
  %4879 = vmatpush1.bf16.xpose.msra.mxu0 %v2068
  %4880 = vmatprep.subr.bf16.mxu0 0
  %4881 = vmatpush1.bf16.xpose.msra.mxu0 %v2191
  %4882 = vmatprep.subr.bf16.mxu0 0
  %4883 = vmatpush1.bf16.xpose.msra.mxu0 0
  %4884 = vmatprep.subr.bf16.mxu0 0
  %4885 = vmatpush1.bf16.xpose.msra.mxu0 0
  %4886 = vmatprep.subr.bf16.mxu0 0
  %4887 = vmatpush1.bf16.xpose.msra.mxu0 0
  %4888 = vmatprep.subr.bf16.mxu0 0
  %4889 = vmatpush1.bf16.xpose.msra.mxu0 0
  %4890 = vmatprep.subr.bf16.mxu0 0
  %4891 = vmatpush1.bf16.xpose.msra.mxu0 0
  %4892 = vmatprep.subr.bf16.mxu0 0
  %4893 = vmatpush1.bf16.xpose.msra.mxu0 0
  %4894 = vmatprep.subr.bf16.mxu0 0
  %4895 = vmatpush1.bf16.xpose.msra.mxu0 0
  %4896 = vmatprep.subr.bf16.mxu0 0
  %4897 = vmatpush1.bf16.xpose.msra.mxu0 0
  %4898 = vmatprep.subr.bf16.mxu0 0
  %4899 = vmatpush1.bf16.xpose.msra.mxu0 0
  %4900 = vmatprep.subr.bf16.mxu0 0
  %4901 = vmatpush1.bf16.xpose.msra.mxu0 0
  %4902 = vmatprep.subr.bf16.mxu0 0
  %4903 = vmatpush1.bf16.xpose.msra.mxu0 0
  %4904 = vmatprep.subr.bf16.mxu0 0
  %4905 = vmatpush1.bf16.xpose.msra.mxu0 0
  %4906 = vmatprep.subr.bf16.mxu0 0
  %4907 = vmatpush1.bf16.xpose.msra.mxu0 0
  %4908 = vmatprep.subr.bf16.mxu0 0
  %4909 = vmatpush1.bf16.xpose.msra.mxu0 0
  %4910 = vmatprep.mubr.bf16.mxu0 0
  %4911 = vmatmul.mubr.bf16.gmra.mrb[0].mxu0 %v1082
  %v4912 = vpop.f32.mrb[0].mxu0
  %v4913 = vadd.f32 %v4873, %v4912
  %v4914 = vpop.f32.mrb[0].mxu0
  %v4915 = vpop.f32.mrb[0].mxu0
  %v4916 = vpop.f32.mrb[0].mxu0
  %4917 = vdwg.mxu0
  %v4918 = vld [vmem:[%s4] sm:$0x1]
  %v4920 = vlaneseq
  %v4921 = vshrl.u32 %v4920, 7
  %v4922 = vsub.s32 0, %v4921
  %v4923 = vrot.slane %v4918, %v4922
  %v4925 = vadd.f32 %v4913, %v4923
  %v4926 = vld [vmem:[%s5] sm:$0xff]
  %v4927 = vld [vmem:[%s5 + $0x8] sm:$0xff]
  %v4928 = vld [vmem:[%s5 + $0x10] sm:$0xff]
  %v4929 = vld [vmem:[%s5 + $0x18] sm:$0xff]
  %v4930 = vld [vmem:[%s6] sm:$0x1]
  %v4932 = vlaneseq
  %v4933 = vshrl.u32 %v4932, 7
  %v4934 = vsub.s32 0, %v4933
  %v4935 = vrot.slane %v4930, %v4934
  %vm4937 = vcmask 261120
  %v4939 = vsel %vm4937, %v4925, 0
  %4941 = vmatprep.subr.mxu0 0.0
  %4942 = vmatpush1.msra.mxu0 %v4926
  %4943 = vmatprep.subr.mxu0 0.0
  %4944 = vmatpush1.msra.mxu0 %v4927
  %4945 = vmatprep.subr.mxu0 0.0
  %4946 = vmatpush1.msra.mxu0 %v4928
  %4947 = vmatprep.subr.mxu0 0.0
  %4948 = vmatpush1.msra.mxu0 %v4929
  %4949 = vmatprep.subr.mxu0 0.0
  %4950 = vmatpush1.msra.mxu0 0.0
  %4951 = vmatprep.subr.mxu0 0.0
  %4952 = vmatpush1.msra.mxu0 0.0
  %4953 = vmatprep.subr.mxu0 0.0
  %4954 = vmatpush1.msra.mxu0 0.0
  %4955 = vmatprep.subr.mxu0 0.0
  %4956 = vmatpush1.msra.mxu0 0.0
  %4957 = vmatprep.subr.mxu0 0.0
  %4958 = vmatpush1.msra.mxu0 0.0
  %4959 = vmatprep.subr.mxu0 0.0
  %4960 = vmatpush1.msra.mxu0 0.0
  %4961 = vmatprep.subr.mxu0 0.0
  %4962 = vmatpush1.msra.mxu0 0.0
  %4963 = vmatprep.subr.mxu0 0.0
  %4964 = vmatpush1.msra.mxu0 0.0
  %4965 = vmatprep.subr.mxu0 0.0
  %4966 = vmatpush1.msra.mxu0 0.0
  %4967 = vmatprep.subr.mxu0 0.0
  %4968 = vmatpush1.msra.mxu0 0.0
  %4969 = vmatprep.subr.mxu0 0.0
  %4970 = vmatpush1.msra.mxu0 0.0
  %4971 = vmatprep.subr.mxu0 0.0
  %4972 = vmatpush1.msra.mxu0 0.0
  %4973 = vmatprep.subr.mxu0 0.0
  %4974 = vmatpush1.msra.mxu0 0.0
  %4975 = vmatprep.subr.mxu0 0.0
  %4976 = vmatpush1.msra.mxu0 0.0
  %4977 = vmatprep.subr.mxu0 0.0
  %4978 = vmatpush1.msra.mxu0 0.0
  %4979 = vmatprep.subr.mxu0 0.0
  %4980 = vmatpush1.msra.mxu0 0.0
  %4981 = vmatprep.subr.mxu0 0.0
  %4982 = vmatpush1.msra.mxu0 0.0
  %4983 = vmatprep.subr.mxu0 0.0
  %4984 = vmatpush1.msra.mxu0 0.0
  %4985 = vmatprep.subr.mxu0 0.0
  %4986 = vmatpush1.msra.mxu0 0.0
  %4987 = vmatprep.subr.mxu0 0.0
  %4988 = vmatpush1.msra.mxu0 0.0
  %4989 = vmatprep.subr.mxu0 0.0
  %4990 = vmatpush1.msra.mxu0 0.0
  %4991 = vmatprep.subr.mxu0 0.0
  %4992 = vmatpush1.msra.mxu0 0.0
  %4993 = vmatprep.subr.mxu0 0.0
  %4994 = vmatpush1.msra.mxu0 0.0
  %4995 = vmatprep.subr.mxu0 0.0
  %4996 = vmatpush1.msra.mxu0 0.0
  %4997 = vmatprep.subr.mxu0 0.0
  %4998 = vmatpush1.msra.mxu0 0.0
  %4999 = vmatprep.subr.mxu0 0.0
  %5000 = vmatpush1.msra.mxu0 0.0
  %5001 = vmatprep.subr.mxu0 0.0
  %5002 = vmatpush1.msra.mxu0 0.0
  %5003 = vmatprep.subr.mxu0 0.0
  %5004 = vmatpush1.msra.mxu0 0.0
  %5005 = vmatprep.mubr.f32.mxu0 0.0
  %5006 = vmatmul.mubr.f32.gmra.mrb[0].mxu0 %v4939
  %v5007 = vpop.f32.mrb[0].mxu0
  %v5008 = vadd.f32 %v4935, %v5007
  %v5009 = vpop.f32.mrb[0].mxu0
  %5010 = vdwg.mxu0
  %v5011 = vmax.f32 %v5008, 0.0
  %v5013 = vsel %vm4937, %v5011, 0
  %5015 = vmatprep.subr.mxu0 0.0
  %5016 = vmatpush1.msra.mxu0 %v4926
  %5017 = vmatprep.subr.mxu0 0.0
  %5018 = vmatpush1.msra.mxu0 %v4927
  %5019 = vmatprep.subr.mxu0 0.0
  %5020 = vmatpush1.msra.mxu0 %v4928
  %5021 = vmatprep.subr.mxu0 0.0
  %5022 = vmatpush1.msra.mxu0 %v4929
  %5023 = vmatprep.subr.mxu0 0.0
  %5024 = vmatpush1.msra.mxu0 0.0
  %5025 = vmatprep.subr.mxu0 0.0
  %5026 = vmatpush1.msra.mxu0 0.0
  %5027 = vmatprep.subr.mxu0 0.0
  %5028 = vmatpush1.msra.mxu0 0.0
  %5029 = vmatprep.subr.mxu0 0.0
  %5030 = vmatpush1.msra.mxu0 0.0
  %5031 = vmatprep.subr.mxu0 0.0
  %5032 = vmatpush1.msra.mxu0 0.0
  %5033 = vmatprep.subr.mxu0 0.0
  %5034 = vmatpush1.msra.mxu0 0.0
  %5035 = vmatprep.subr.mxu0 0.0
  %5036 = vmatpush1.msra.mxu0 0.0
  %5037 = vmatprep.subr.mxu0 0.0
  %5038 = vmatpush1.msra.mxu0 0.0
  %5039 = vmatprep.subr.mxu0 0.0
  %5040 = vmatpush1.msra.mxu0 0.0
  %5041 = vmatprep.subr.mxu0 0.0
  %5042 = vmatpush1.msra.mxu0 0.0
  %5043 = vmatprep.subr.mxu0 0.0
  %5044 = vmatpush1.msra.mxu0 0.0
  %5045 = vmatprep.subr.mxu0 0.0
  %5046 = vmatpush1.msra.mxu0 0.0
  %5047 = vmatprep.subr.mxu0 0.0
  %5048 = vmatpush1.msra.mxu0 0.0
  %5049 = vmatprep.subr.mxu0 0.0
  %5050 = vmatpush1.msra.mxu0 0.0
  %5051 = vmatprep.subr.mxu0 0.0
  %5052 = vmatpush1.msra.mxu0 0.0
  %5053 = vmatprep.subr.mxu0 0.0
  %5054 = vmatpush1.msra.mxu0 0.0
  %5055 = vmatprep.subr.mxu0 0.0
  %5056 = vmatpush1.msra.mxu0 0.0
  %5057 = vmatprep.subr.mxu0 0.0
  %5058 = vmatpush1.msra.mxu0 0.0
  %5059 = vmatprep.subr.mxu0 0.0
  %5060 = vmatpush1.msra.mxu0 0.0
  %5061 = vmatprep.subr.mxu0 0.0
  %5062 = vmatpush1.msra.mxu0 0.0
  %5063 = vmatprep.subr.mxu0 0.0
  %5064 = vmatpush1.msra.mxu0 0.0
  %5065 = vmatprep.subr.mxu0 0.0
  %5066 = vmatpush1.msra.mxu0 0.0
  %5067 = vmatprep.subr.mxu0 0.0
  %5068 = vmatpush1.msra.mxu0 0.0
  %5069 = vmatprep.subr.mxu0 0.0
  %5070 = vmatpush1.msra.mxu0 0.0
  %5071 = vmatprep.subr.mxu0 0.0
  %5072 = vmatpush1.msra.mxu0 0.0
  %5073 = vmatprep.subr.mxu0 0.0
  %5074 = vmatpush1.msra.mxu0 0.0
  %5075 = vmatprep.subr.mxu0 0.0
  %5076 = vmatpush1.msra.mxu0 0.0
  %5077 = vmatprep.subr.mxu0 0.0
  %5078 = vmatpush1.msra.mxu0 0.0
  %5079 = vmatprep.mubr.f32.mxu0 0.0
  %5080 = vmatmul.mubr.f32.gmra.mrb[0].mxu0 %v5013
  %v5081 = vpop.f32.mrb[0].mxu0
  %v5082 = vadd.f32 %v4935, %v5081
  %v5083 = vpop.f32.mrb[0].mxu0
  %5084 = vdwg.mxu0
  %v5085 = vmax.f32 %v5082, 0.0
  %v5086 = vld [vmem:[%s7] sm:$0xff]
  %v5087 = vld [vmem:[%s7 + $0x8] sm:$0xff]
  %v5088 = vld [vmem:[%s7 + $0x10] sm:$0xff]
  %v5089 = vld [vmem:[%s7 + $0x18] sm:$0xff]
  %v5090 = vld [vmem:[%s8] sm:$0x1]
  %v5092 = vlaneseq
  %v5093 = vshrl.u32 %v5092, 7
  %v5094 = vsub.s32 0, %v5093
  %v5095 = vrot.slane %v5090, %v5094
  %v5098 = vsel %vm4937, %v5085, 0
  %5100 = vmatprep.subr.mxu0 0.0
  %5101 = vmatpush1.msra.mxu0 %v5086
  %5102 = vmatprep.subr.mxu0 0.0
  %5103 = vmatpush1.msra.mxu0 %v5087
  %5104 = vmatprep.subr.mxu0 0.0
  %5105 = vmatpush1.msra.mxu0 %v5088
  %5106 = vmatprep.subr.mxu0 0.0
  %5107 = vmatpush1.msra.mxu0 %v5089
  %5108 = vmatprep.subr.mxu0 0.0
  %5109 = vmatpush1.msra.mxu0 0.0
  %5110 = vmatprep.subr.mxu0 0.0
  %5111 = vmatpush1.msra.mxu0 0.0
  %5112 = vmatprep.subr.mxu0 0.0
  %5113 = vmatpush1.msra.mxu0 0.0
  %5114 = vmatprep.subr.mxu0 0.0
  %5115 = vmatpush1.msra.mxu0 0.0
  %5116 = vmatprep.subr.mxu0 0.0
  %5117 = vmatpush1.msra.mxu0 0.0
  %5118 = vmatprep.subr.mxu0 0.0
  %5119 = vmatpush1.msra.mxu0 0.0
  %5120 = vmatprep.subr.mxu0 0.0
  %5121 = vmatpush1.msra.mxu0 0.0
  %5122 = vmatprep.subr.mxu0 0.0
  %5123 = vmatpush1.msra.mxu0 0.0
  %5124 = vmatprep.subr.mxu0 0.0
  %5125 = vmatpush1.msra.mxu0 0.0
  %5126 = vmatprep.subr.mxu0 0.0
  %5127 = vmatpush1.msra.mxu0 0.0
  %5128 = vmatprep.subr.mxu0 0.0
  %5129 = vmatpush1.msra.mxu0 0.0
  %5130 = vmatprep.subr.mxu0 0.0
  %5131 = vmatpush1.msra.mxu0 0.0
  %5132 = vmatprep.subr.mxu0 0.0
  %5133 = vmatpush1.msra.mxu0 0.0
  %5134 = vmatprep.subr.mxu0 0.0
  %5135 = vmatpush1.msra.mxu0 0.0
  %5136 = vmatprep.subr.mxu0 0.0
  %5137 = vmatpush1.msra.mxu0 0.0
  %5138 = vmatprep.subr.mxu0 0.0
  %5139 = vmatpush1.msra.mxu0 0.0
  %5140 = vmatprep.subr.mxu0 0.0
  %5141 = vmatpush1.msra.mxu0 0.0
  %5142 = vmatprep.subr.mxu0 0.0
  %5143 = vmatpush1.msra.mxu0 0.0
  %5144 = vmatprep.subr.mxu0 0.0
  %5145 = vmatpush1.msra.mxu0 0.0
  %5146 = vmatprep.subr.mxu0 0.0
  %5147 = vmatpush1.msra.mxu0 0.0
  %5148 = vmatprep.subr.mxu0 0.0
  %5149 = vmatpush1.msra.mxu0 0.0
  %5150 = vmatprep.subr.mxu0 0.0
  %5151 = vmatpush1.msra.mxu0 0.0
  %5152 = vmatprep.subr.mxu0 0.0
  %5153 = vmatpush1.msra.mxu0 0.0
  %5154 = vmatprep.subr.mxu0 0.0
  %5155 = vmatpush1.msra.mxu0 0.0
  %5156 = vmatprep.subr.mxu0 0.0
  %5157 = vmatpush1.msra.mxu0 0.0
  %5158 = vmatprep.subr.mxu0 0.0
  %5159 = vmatpush1.msra.mxu0 0.0
  %5160 = vmatprep.subr.mxu0 0.0
  %5161 = vmatpush1.msra.mxu0 0.0
  %5162 = vmatprep.subr.mxu0 0.0
  %5163 = vmatpush1.msra.mxu0 0.0
  %5164 = vmatprep.mubr.f32.mxu0 0.0
  %5165 = vmatmul.mubr.f32.gmra.mrb[0].mxu0 %v5098
  %v5166 = vpop.f32.mrb[0].mxu0
  %v5167 = vadd.f32 %v5095, %v5166
  %v5168 = vpop.f32.mrb[0].mxu0
  %5169 = vdwg.mxu0
  %v5170 = vlaneseq
  %v5171 = vand.u32 %v5170, 127
  %vm5172 = vcmp.lt.s32.totalorder %v5171, 2
  %v5173 = vsel %vm5172, %v5167, -inf
  %5174 = vmax.xlane.f32.xlu0 %v5173
  %v5175 = vpop.xlane.xlu0 %5174
  %v5176 = vsub.f32 %v5173, %v5175
  %v5177 = vmul.f32 %v5176, 1.442695
  %v5178 = vpow.pop %v5177
  %5179 = vadd.xlane.f32.xlu0 %v5178
  %v5180 = vpop.xlane.xlu0 %5179
  %v5181 = vrcp.pop %v5180
  %v5182 = vmul.f32 %v5178, %v5181
  %5183 = vst [vmem:[%s9] sm:$0xff] %v5182
  // Predicated region
  $region38: #{classifier_net_forward.1} parent=0 // pred_check
    _
  $region39: #{classifier_net_forward.1} parent=0 // pred_check_branch
    %5185 = sbr.rel (0) target = $region41
  $region40: #{classifier_net_forward.1} parent=0 // pred_region
    _
  $region41: #{classifier_net_forward.1} parent=0 // pred_fallthru
    _
  // Predicated region
  $region42: #{classifier_net_forward.1} parent=0 // pred_check
    _
  $region43: #{classifier_net_forward.1} parent=0 // pred_check_branch
    %5187 = sbr.rel (0) target = $region45
  $region44: #{classifier_net_forward.1} parent=0 // pred_region
    _
  $region45: #{classifier_net_forward.1} parent=0 // pred_fallthru
    _

</llo_original>
